<compile_context>
chip_gen: v7x
topology: tpu7x:2x2x1
jax: 0.10.0
libtpu: 0.0.40
codegen_flags: <defaults>
</compile_context>

<pallas_src>
import functools
import math

import jax
import jax.numpy as jnp
from jax.experimental import pallas as pl
from jax.experimental.pallas import tpu as pltpu


# ---------------- Pallas kernel ----------------

def _psp_kernel(x_ref, at_ref, ut_ref, ws_ref, wb_ref, b_ref, o_ref, *, num_stages):
    # x_ref : (1, C, HW)            input feature map (transposed layout)
    # at_ref: (S, HW, SSMAX)        adaptive-avg-pool matrices (transposed, zero padded)
    # ut_ref: (S, SSMAX, HW)        bilinear-upsample matrices (transposed, zero padded)
    # ws_ref: (S, C, C)             per-stage 1x1 conv weights (O, I)
    # wb_ref: (S+1, O, C)           bottleneck 1x1 conv weight chunks (stages..., feats)
    # b_ref : (O, 1)                bottleneck bias
    # o_ref : (1, O, HW)            output
    xT = x_ref[0]                                                            # (C, HW)

    # Identity (feats) branch of the concat -> last bottleneck-weight chunk.
    acc = jnp.dot(wb_ref[num_stages], xT, preferred_element_type=jnp.float32)  # (O, HW)

    for s in range(num_stages):  # static, unrolled (4 tiny stages)
        # adaptive average pool (spatial linear map), channels stay on sublanes
        pooled = jnp.dot(xT, at_ref[s], preferred_element_type=jnp.float32)    # (C, SSMAX)
        # per-stage 1x1 conv (no bias)
        conv = jnp.dot(ws_ref[s], pooled, preferred_element_type=jnp.float32)  # (C, SSMAX)
        # bottleneck 1x1-conv chunk applied in pooled space (cheaper; exact by linearity)
        proj = jnp.dot(wb_ref[s], conv, preferred_element_type=jnp.float32)    # (O, SSMAX)
        # bilinear upsample back to (H, W) as a matmul, accumulate
        acc = acc + jnp.dot(proj, ut_ref[s], preferred_element_type=jnp.float32)  # (O, HW)

    o_ref[0] = jnp.maximum(acc + b_ref[...], 0.0).astype(o_ref.dtype)


# ---------------- static pooling / upsampling matrices (host glue) ----------------

def _adaptive_pool_matrix(in_size, out_size):
    """(out_size, in_size): row i averages input[floor(i*I/O) : ceil((i+1)*I/O)]."""
    rows = []
    for i in range(out_size):
        lo = (i * in_size) // out_size
        hi = -((-(i + 1) * in_size) // out_size)  # ceil
        row = [1.0 / (hi - lo) if lo <= h < hi else 0.0 for h in range(in_size)]
        rows.append(row)
    return jnp.array(rows, dtype=jnp.float32)


def _bilinear_upsample_matrix(out_size, in_size):
    """(out_size, in_size): PyTorch bilinear upsample, align_corners=False."""
    scale = in_size / out_size
    rows = []
    for i in range(out_size):
        src = (i + 0.5) * scale - 0.5
        src = max(src, 0.0)
        i0 = min(int(math.floor(src)), in_size - 1)
        i1 = min(i0 + 1, in_size - 1)
        lam = src - i0
        row = [0.0] * in_size
        row[i0] += 1.0 - lam
        row[i1] += lam
        rows.append(row)
    return jnp.array(rows, dtype=jnp.float32)


# ---------------- wrapper ----------------

def psp_forward(x_nchw, params, sizes=(1, 2, 3, 6)):
    """PSPModule forward.  x_nchw: (N, C, H, W) f32.  Returns (N, out_features, H, W)."""
    stage_ws, wb, bb = params
    n, c, h, w = x_nchw.shape
    hw = h * w
    out_f = wb.shape[0]
    s_count = len(sizes)
    ss_max = max(s * s for s in sizes)

    # Precompute (static) spatial pooling / interpolation matrices, transposed layout.
    at_list, ut_list = [], []
    for s in sizes:
        ph = _adaptive_pool_matrix(h, s)                                  # (s, H)
        pw = _adaptive_pool_matrix(w, s)                                  # (s, W)
        a = jnp.einsum("ih,jw->ijhw", ph, pw).reshape(s * s, hw)          # (ss, HW)
        uh = _bilinear_upsample_matrix(h, s)                              # (H, s)
        uw = _bilinear_upsample_matrix(w, s)                              # (W, s)
        u = jnp.einsum("hi,wj->hwij", uh, uw).reshape(hw, s * s)          # (HW, ss)
        at_list.append(jnp.pad(a.T, ((0, 0), (0, ss_max - s * s))))       # (HW, SSMAX)
        ut_list.append(jnp.pad(u.T, ((0, ss_max - s * s), (0, 0))))       # (SSMAX, HW)
    at_all = jnp.stack(at_list)                                           # (S, HW, SSMAX)
    ut_all = jnp.stack(ut_list)                                           # (S, SSMAX, HW)

    ws_all = jnp.stack([wgt[:, :, 0, 0] for wgt in stage_ws])             # (S, C, C)
    wb_all = jnp.stack([wb[:, i * c:(i + 1) * c, 0, 0]
                        for i in range(s_count + 1)])                     # (S+1, O, C)
    bias = bb.reshape(out_f, 1)

    x_flat = x_nchw.reshape(n, c, hw)   # free reshape, NO transpose

    kernel = functools.partial(_psp_kernel, num_stages=s_count)

    out = pl.pallas_call(
        kernel,
        out_shape=jax.ShapeDtypeStruct((n, out_f, hw), jnp.float32),
        grid=(n,),
        in_specs=[
            pl.BlockSpec((1, c, hw), lambda i: (i, 0, 0)),                # x (per batch)
            pl.BlockSpec((s_count, hw, ss_max), lambda i: (0, 0, 0)),     # pool mats
            pl.BlockSpec((s_count, ss_max, hw), lambda i: (0, 0, 0)),     # upsample mats
            pl.BlockSpec((s_count, c, c), lambda i: (0, 0, 0)),           # stage conv w
            pl.BlockSpec((s_count + 1, out_f, c), lambda i: (0, 0, 0)),   # bottleneck w
            pl.BlockSpec((out_f, 1), lambda i: (0, 0)),                   # bottleneck b
        ],
        out_specs=pl.BlockSpec((1, out_f, hw), lambda i: (i, 0, 0)),
        compiler_params=pltpu.CompilerParams(dimension_semantics=("parallel",)),
    )(x_flat, at_all, ut_all, ws_all, wb_all, bias)

    return out.reshape(n, out_f, h, w)   # already channel-major -> free reshape to NCHW


# ---------------- pure-JAX reference (for sanity) ----------------

def _ref_forward(x, params, sizes=(1, 2, 3, 6)):
    stage_ws, wb, bb = params
    n, c, h, w = x.shape
    hp = jax.lax.Precision.HIGHEST

    def adaptive_pool(img, s):
        rows = []
        for i in range(s):
            h0 = (i * h) // s
            h1 = -((-(i + 1) * h) // s)
            cols = []
            for j in range(s):
                w0 = (j * w) // s
                w1 = -((-(j + 1) * w) // s)
                cols.append(jnp.mean(img[:, :, h0:h1, w0:w1], axis=(2, 3)))
            rows.append(jnp.stack(cols, axis=-1))
        return jnp.stack(rows, axis=-2)            # (N, C, s, s)

    def conv1x1(img, wgt):
        return jnp.einsum("oi,nihw->nohw", wgt[:, :, 0, 0], img, precision=hp)

    priors = []
    for s, ws_ in zip(sizes, stage_ws):
        p = adaptive_pool(x, s)
        p = conv1x1(p, ws_)
        p = jax.image.resize(p, (n, c, h, w), method="bilinear")
        priors.append(p)
    cat = jnp.concatenate(priors + [x], axis=1)
    out = conv1x1(cat, wb) + bb.reshape(1, -1, 1, 1)
    return jnp.maximum(out, 0.0)


# ---------------- main ----------------

if __name__ == "__main__":
    N, C, H, W = 2, 4, 16, 16
    OUT_F = 128                     # lane-dense output channel count for the test
    SIZES = (1, 2, 3, 6)

    key = jax.random.PRNGKey(0)
    keys = jax.random.split(key, 3 + len(SIZES))
    x = jax.random.normal(keys[0], (N, C, H, W), dtype=jnp.float32)
    stage_ws = [0.1 * jax.random.normal(keys[1 + i], (C, C, 1, 1), dtype=jnp.float32)
                for i in range(len(SIZES))]
    wb = 0.1 * jax.random.normal(keys[1 + len(SIZES)],
                                 (OUT_F, C * (len(SIZES) + 1), 1, 1), dtype=jnp.float32)
    bb = 0.1 * jax.random.normal(keys[2 + len(SIZES)], (OUT_F,), dtype=jnp.float32)
    params = (stage_ws, wb, bb)

    fwd = jax.jit(functools.partial(psp_forward, sizes=SIZES))
    out = jax.block_until_ready(fwd(x, params))

    with jax.default_matmul_precision("highest"):
        ref = jax.block_until_ready(_ref_forward(x, params, SIZES))

    assert out.shape == (N, OUT_F, H, W)
    assert jnp.allclose(out, ref, atol=1e-3, rtol=1e-3), float(jnp.max(jnp.abs(out - ref)))

    print("KERNEL_OK")
</pallas_src>

<mosaic_0001>
module attributes {stable_mosaic.version = 11 : i64} {
  func.func @_psp_kernel(%arg0: i32, %arg1: memref<1x4x256xf32, #tpu.memory_space<vmem>>, %arg2: memref<4x256x36xf32, #tpu.memory_space<vmem>>, %arg3: memref<4x36x256xf32, #tpu.memory_space<vmem>>, %arg4: memref<4x4x4xf32, #tpu.memory_space<vmem>>, %arg5: memref<5x128x4xf32, #tpu.memory_space<vmem>>, %arg6: memref<128x1xf32, #tpu.memory_space<vmem>>, %arg7: memref<1x128x256xf32, #tpu.memory_space<vmem>>) attributes {dimension_semantics = [#tpu.dimension_semantics<parallel>], iteration_bounds = array<i64: 2>, scalar_prefetch = 0 : i64, scratch_operands = 0 : i64, tpu.core_type = #tpu.core_type<tc>, window_params = [{transform_indices = @transform_0, window_bounds = array<i64: 1, 4, 256>}, {pipeline_mode = #tpu.pipeline_mode<synchronous>, transform_indices = @transform_1, window_bounds = array<i64: 4, 256, 36>}, {pipeline_mode = #tpu.pipeline_mode<synchronous>, transform_indices = @transform_2, window_bounds = array<i64: 4, 36, 256>}, {pipeline_mode = #tpu.pipeline_mode<synchronous>, transform_indices = @transform_3, window_bounds = array<i64: 4, 4, 4>}, {pipeline_mode = #tpu.pipeline_mode<synchronous>, transform_indices = @transform_4, window_bounds = array<i64: 5, 128, 4>}, {pipeline_mode = #tpu.pipeline_mode<synchronous>, transform_indices = @transform_5, window_bounds = array<i64: 128, 1>}, {transform_indices = @transform_6, window_bounds = array<i64: 1, 128, 256>}]} {
    %c0 = arith.constant 0 : index
    %c0_0 = arith.constant 0 : index
    %c0_1 = arith.constant 0 : index
    %0 = vector.load %arg1[%c0, %c0_0, %c0_1] : memref<1x4x256xf32, #tpu.memory_space<vmem>>, vector<1x4x256xf32>
    %1 = vector.shape_cast %0 : vector<1x4x256xf32> to vector<4x256xf32>
    %c4 = arith.constant 4 : index
    %c0_2 = arith.constant 0 : index
    %c0_3 = arith.constant 0 : index
    %2 = vector.load %arg5[%c4, %c0_2, %c0_3] : memref<5x128x4xf32, #tpu.memory_space<vmem>>, vector<1x128x4xf32>
    %3 = vector.shape_cast %2 : vector<1x128x4xf32> to vector<128x4xf32>
    %cst = arith.constant dense<0.000000e+00> : vector<128x256xf32>
    %4 = tpu.matmul %3, %1, %cst {dimension_numbers = #tpu.dot_dimension_numbers<[1], [0], [0], [1], [0, 0, 1, 1], [], []>} : vector<128x4xf32>, vector<4x256xf32>, vector<128x256xf32> -> vector<128x256xf32>
    %c0_4 = arith.constant 0 : index
    %c0_5 = arith.constant 0 : index
    %c0_6 = arith.constant 0 : index
    %5 = vector.load %arg2[%c0_4, %c0_5, %c0_6] : memref<4x256x36xf32, #tpu.memory_space<vmem>>, vector<1x256x36xf32>
    %6 = vector.shape_cast %5 : vector<1x256x36xf32> to vector<256x36xf32>
    %cst_7 = arith.constant dense<0.000000e+00> : vector<4x36xf32>
    %7 = tpu.matmul %1, %6, %cst_7 {dimension_numbers = #tpu.dot_dimension_numbers<[1], [0], [0], [1], [0, 0, 1, 1], [], []>} : vector<4x256xf32>, vector<256x36xf32>, vector<4x36xf32> -> vector<4x36xf32>
    %c0_8 = arith.constant 0 : index
    %c0_9 = arith.constant 0 : index
    %c0_10 = arith.constant 0 : index
    %8 = vector.load %arg4[%c0_8, %c0_9, %c0_10] : memref<4x4x4xf32, #tpu.memory_space<vmem>>, vector<1x4x4xf32>
    %9 = vector.shape_cast %8 : vector<1x4x4xf32> to vector<4x4xf32>
    %cst_11 = arith.constant dense<0.000000e+00> : vector<4x36xf32>
    %10 = tpu.matmul %9, %7, %cst_11 {dimension_numbers = #tpu.dot_dimension_numbers<[1], [0], [0], [1], [0, 0, 1, 1], [], []>} : vector<4x4xf32>, vector<4x36xf32>, vector<4x36xf32> -> vector<4x36xf32>
    %c0_12 = arith.constant 0 : index
    %c0_13 = arith.constant 0 : index
    %c0_14 = arith.constant 0 : index
    %11 = vector.load %arg5[%c0_12, %c0_13, %c0_14] : memref<5x128x4xf32, #tpu.memory_space<vmem>>, vector<1x128x4xf32>
    %12 = vector.shape_cast %11 : vector<1x128x4xf32> to vector<128x4xf32>
    %cst_15 = arith.constant dense<0.000000e+00> : vector<128x36xf32>
    %13 = tpu.matmul %12, %10, %cst_15 {dimension_numbers = #tpu.dot_dimension_numbers<[1], [0], [0], [1], [0, 0, 1, 1], [], []>} : vector<128x4xf32>, vector<4x36xf32>, vector<128x36xf32> -> vector<128x36xf32>
    %c0_16 = arith.constant 0 : index
    %c0_17 = arith.constant 0 : index
    %c0_18 = arith.constant 0 : index
    %14 = vector.load %arg3[%c0_16, %c0_17, %c0_18] : memref<4x36x256xf32, #tpu.memory_space<vmem>>, vector<1x36x256xf32>
    %15 = vector.shape_cast %14 : vector<1x36x256xf32> to vector<36x256xf32>
    %cst_19 = arith.constant dense<0.000000e+00> : vector<128x256xf32>
    %16 = tpu.matmul %13, %15, %cst_19 {dimension_numbers = #tpu.dot_dimension_numbers<[1], [0], [0], [1], [0, 0, 1, 1], [], []>} : vector<128x36xf32>, vector<36x256xf32>, vector<128x256xf32> -> vector<128x256xf32>
    %17 = arith.addf %4, %16 : vector<128x256xf32>
    %c1 = arith.constant 1 : index
    %c0_20 = arith.constant 0 : index
    %c0_21 = arith.constant 0 : index
    %18 = vector.load %arg2[%c1, %c0_20, %c0_21] : memref<4x256x36xf32, #tpu.memory_space<vmem>>, vector<1x256x36xf32>
    %19 = vector.shape_cast %18 : vector<1x256x36xf32> to vector<256x36xf32>
    %cst_22 = arith.constant dense<0.000000e+00> : vector<4x36xf32>
    %20 = tpu.matmul %1, %19, %cst_22 {dimension_numbers = #tpu.dot_dimension_numbers<[1], [0], [0], [1], [0, 0, 1, 1], [], []>} : vector<4x256xf32>, vector<256x36xf32>, vector<4x36xf32> -> vector<4x36xf32>
    %c1_23 = arith.constant 1 : index
    %c0_24 = arith.constant 0 : index
    %c0_25 = arith.constant 0 : index
    %21 = vector.load %arg4[%c1_23, %c0_24, %c0_25] : memref<4x4x4xf32, #tpu.memory_space<vmem>>, vector<1x4x4xf32>
    %22 = vector.shape_cast %21 : vector<1x4x4xf32> to vector<4x4xf32>
    %cst_26 = arith.constant dense<0.000000e+00> : vector<4x36xf32>
    %23 = tpu.matmul %22, %20, %cst_26 {dimension_numbers = #tpu.dot_dimension_numbers<[1], [0], [0], [1], [0, 0, 1, 1], [], []>} : vector<4x4xf32>, vector<4x36xf32>, vector<4x36xf32> -> vector<4x36xf32>
    %c1_27 = arith.constant 1 : index
    %c0_28 = arith.constant 0 : index
    %c0_29 = arith.constant 0 : index
    %24 = vector.load %arg5[%c1_27, %c0_28, %c0_29] : memref<5x128x4xf32, #tpu.memory_space<vmem>>, vector<1x128x4xf32>
    %25 = vector.shape_cast %24 : vector<1x128x4xf32> to vector<128x4xf32>
    %cst_30 = arith.constant dense<0.000000e+00> : vector<128x36xf32>
    %26 = tpu.matmul %25, %23, %cst_30 {dimension_numbers = #tpu.dot_dimension_numbers<[1], [0], [0], [1], [0, 0, 1, 1], [], []>} : vector<128x4xf32>, vector<4x36xf32>, vector<128x36xf32> -> vector<128x36xf32>
    %c1_31 = arith.constant 1 : index
    %c0_32 = arith.constant 0 : index
    %c0_33 = arith.constant 0 : index
    %27 = vector.load %arg3[%c1_31, %c0_32, %c0_33] : memref<4x36x256xf32, #tpu.memory_space<vmem>>, vector<1x36x256xf32>
    %28 = vector.shape_cast %27 : vector<1x36x256xf32> to vector<36x256xf32>
    %cst_34 = arith.constant dense<0.000000e+00> : vector<128x256xf32>
    %29 = tpu.matmul %26, %28, %cst_34 {dimension_numbers = #tpu.dot_dimension_numbers<[1], [0], [0], [1], [0, 0, 1, 1], [], []>} : vector<128x36xf32>, vector<36x256xf32>, vector<128x256xf32> -> vector<128x256xf32>
    %30 = arith.addf %17, %29 : vector<128x256xf32>
    %c2 = arith.constant 2 : index
    %c0_35 = arith.constant 0 : index
    %c0_36 = arith.constant 0 : index
    %31 = vector.load %arg2[%c2, %c0_35, %c0_36] : memref<4x256x36xf32, #tpu.memory_space<vmem>>, vector<1x256x36xf32>
    %32 = vector.shape_cast %31 : vector<1x256x36xf32> to vector<256x36xf32>
    %cst_37 = arith.constant dense<0.000000e+00> : vector<4x36xf32>
    %33 = tpu.matmul %1, %32, %cst_37 {dimension_numbers = #tpu.dot_dimension_numbers<[1], [0], [0], [1], [0, 0, 1, 1], [], []>} : vector<4x256xf32>, vector<256x36xf32>, vector<4x36xf32> -> vector<4x36xf32>
    %c2_38 = arith.constant 2 : index
    %c0_39 = arith.constant 0 : index
    %c0_40 = arith.constant 0 : index
    %34 = vector.load %arg4[%c2_38, %c0_39, %c0_40] : memref<4x4x4xf32, #tpu.memory_space<vmem>>, vector<1x4x4xf32>
    %35 = vector.shape_cast %34 : vector<1x4x4xf32> to vector<4x4xf32>
    %cst_41 = arith.constant dense<0.000000e+00> : vector<4x36xf32>
    %36 = tpu.matmul %35, %33, %cst_41 {dimension_numbers = #tpu.dot_dimension_numbers<[1], [0], [0], [1], [0, 0, 1, 1], [], []>} : vector<4x4xf32>, vector<4x36xf32>, vector<4x36xf32> -> vector<4x36xf32>
    %c2_42 = arith.constant 2 : index
    %c0_43 = arith.constant 0 : index
    %c0_44 = arith.constant 0 : index
    %37 = vector.load %arg5[%c2_42, %c0_43, %c0_44] : memref<5x128x4xf32, #tpu.memory_space<vmem>>, vector<1x128x4xf32>
    %38 = vector.shape_cast %37 : vector<1x128x4xf32> to vector<128x4xf32>
    %cst_45 = arith.constant dense<0.000000e+00> : vector<128x36xf32>
    %39 = tpu.matmul %38, %36, %cst_45 {dimension_numbers = #tpu.dot_dimension_numbers<[1], [0], [0], [1], [0, 0, 1, 1], [], []>} : vector<128x4xf32>, vector<4x36xf32>, vector<128x36xf32> -> vector<128x36xf32>
    %c2_46 = arith.constant 2 : index
    %c0_47 = arith.constant 0 : index
    %c0_48 = arith.constant 0 : index
    %40 = vector.load %arg3[%c2_46, %c0_47, %c0_48] : memref<4x36x256xf32, #tpu.memory_space<vmem>>, vector<1x36x256xf32>
    %41 = vector.shape_cast %40 : vector<1x36x256xf32> to vector<36x256xf32>
    %cst_49 = arith.constant dense<0.000000e+00> : vector<128x256xf32>
    %42 = tpu.matmul %39, %41, %cst_49 {dimension_numbers = #tpu.dot_dimension_numbers<[1], [0], [0], [1], [0, 0, 1, 1], [], []>} : vector<128x36xf32>, vector<36x256xf32>, vector<128x256xf32> -> vector<128x256xf32>
    %43 = arith.addf %30, %42 : vector<128x256xf32>
    %c3 = arith.constant 3 : index
    %c0_50 = arith.constant 0 : index
    %c0_51 = arith.constant 0 : index
    %44 = vector.load %arg2[%c3, %c0_50, %c0_51] : memref<4x256x36xf32, #tpu.memory_space<vmem>>, vector<1x256x36xf32>
    %45 = vector.shape_cast %44 : vector<1x256x36xf32> to vector<256x36xf32>
    %cst_52 = arith.constant dense<0.000000e+00> : vector<4x36xf32>
    %46 = tpu.matmul %1, %45, %cst_52 {dimension_numbers = #tpu.dot_dimension_numbers<[1], [0], [0], [1], [0, 0, 1, 1], [], []>} : vector<4x256xf32>, vector<256x36xf32>, vector<4x36xf32> -> vector<4x36xf32>
    %c3_53 = arith.constant 3 : index
    %c0_54 = arith.constant 0 : index
    %c0_55 = arith.constant 0 : index
    %47 = vector.load %arg4[%c3_53, %c0_54, %c0_55] : memref<4x4x4xf32, #tpu.memory_space<vmem>>, vector<1x4x4xf32>
    %48 = vector.shape_cast %47 : vector<1x4x4xf32> to vector<4x4xf32>
    %cst_56 = arith.constant dense<0.000000e+00> : vector<4x36xf32>
    %49 = tpu.matmul %48, %46, %cst_56 {dimension_numbers = #tpu.dot_dimension_numbers<[1], [0], [0], [1], [0, 0, 1, 1], [], []>} : vector<4x4xf32>, vector<4x36xf32>, vector<4x36xf32> -> vector<4x36xf32>
    %c3_57 = arith.constant 3 : index
    %c0_58 = arith.constant 0 : index
    %c0_59 = arith.constant 0 : index
    %50 = vector.load %arg5[%c3_57, %c0_58, %c0_59] : memref<5x128x4xf32, #tpu.memory_space<vmem>>, vector<1x128x4xf32>
    %51 = vector.shape_cast %50 : vector<1x128x4xf32> to vector<128x4xf32>
    %cst_60 = arith.constant dense<0.000000e+00> : vector<128x36xf32>
    %52 = tpu.matmul %51, %49, %cst_60 {dimension_numbers = #tpu.dot_dimension_numbers<[1], [0], [0], [1], [0, 0, 1, 1], [], []>} : vector<128x4xf32>, vector<4x36xf32>, vector<128x36xf32> -> vector<128x36xf32>
    %c3_61 = arith.constant 3 : index
    %c0_62 = arith.constant 0 : index
    %c0_63 = arith.constant 0 : index
    %53 = vector.load %arg3[%c3_61, %c0_62, %c0_63] : memref<4x36x256xf32, #tpu.memory_space<vmem>>, vector<1x36x256xf32>
    %54 = vector.shape_cast %53 : vector<1x36x256xf32> to vector<36x256xf32>
    %cst_64 = arith.constant dense<0.000000e+00> : vector<128x256xf32>
    %55 = tpu.matmul %52, %54, %cst_64 {dimension_numbers = #tpu.dot_dimension_numbers<[1], [0], [0], [1], [0, 0, 1, 1], [], []>} : vector<128x36xf32>, vector<36x256xf32>, vector<128x256xf32> -> vector<128x256xf32>
    %56 = arith.addf %43, %55 : vector<128x256xf32>
    %c0_65 = arith.constant 0 : index
    %c0_66 = arith.constant 0 : index
    %57 = vector.load %arg6[%c0_65, %c0_66] : memref<128x1xf32, #tpu.memory_space<vmem>>, vector<128x1xf32>
    %58 = vector.broadcast %57 : vector<128x1xf32> to vector<128x256xf32>
    %59 = arith.addf %56, %58 : vector<128x256xf32>
    %cst_67 = arith.constant 0.000000e+00 : f32
    %60 = vector.broadcast %cst_67 : f32 to vector<128x256xf32>
    %61 = arith.maximumf %59, %60 : vector<128x256xf32>
    %c0_68 = arith.constant 0 : index
    %c0_69 = arith.constant 0 : index
    %c0_70 = arith.constant 0 : index
    %62 = vector.load %arg7[%c0_68, %c0_69, %c0_70] : memref<1x128x256xf32, #tpu.memory_space<vmem>>, vector<1x128x256xf32>
    %63 = vector.shape_cast %62 : vector<1x128x256xf32> to vector<128x256xf32>
    %64 = vector.shape_cast %61 : vector<128x256xf32> to vector<1x128x256xf32>
    tpu.vector_store %arg7[%c0_68, %c0_69, %c0_70], %64 {strides = array<i32>} : memref<1x128x256xf32, #tpu.memory_space<vmem>>, vector<1x128x256xf32>,
    return
  }
  func.func @transform_0(%arg0: i32) -> (i32, i32, i32) {
    %c0_i32 = arith.constant 0 : i32
    %c0_i32_0 = arith.constant 0 : i32
    %c0_i32_1 = arith.constant 0 : i32
    return %arg0, %c0_i32, %c0_i32_0 : i32, i32, i32
  }
  func.func @transform_1(%arg0: i32) -> (i32, i32, i32) {
    %c0_i32 = arith.constant 0 : i32
    %c0_i32_0 = arith.constant 0 : i32
    %c0_i32_1 = arith.constant 0 : i32
    %c0_i32_2 = arith.constant 0 : i32
    return %c0_i32, %c0_i32_0, %c0_i32_1 : i32, i32, i32
  }
  func.func @transform_2(%arg0: i32) -> (i32, i32, i32) {
    %c0_i32 = arith.constant 0 : i32
    %c0_i32_0 = arith.constant 0 : i32
    %c0_i32_1 = arith.constant 0 : i32
    %c0_i32_2 = arith.constant 0 : i32
    return %c0_i32, %c0_i32_0, %c0_i32_1 : i32, i32, i32
  }
  func.func @transform_3(%arg0: i32) -> (i32, i32, i32) {
    %c0_i32 = arith.constant 0 : i32
    %c0_i32_0 = arith.constant 0 : i32
    %c0_i32_1 = arith.constant 0 : i32
    %c0_i32_2 = arith.constant 0 : i32
    return %c0_i32, %c0_i32_0, %c0_i32_1 : i32, i32, i32
  }
  func.func @transform_4(%arg0: i32) -> (i32, i32, i32) {
    %c0_i32 = arith.constant 0 : i32
    %c0_i32_0 = arith.constant 0 : i32
    %c0_i32_1 = arith.constant 0 : i32
    %c0_i32_2 = arith.constant 0 : i32
    return %c0_i32, %c0_i32_0, %c0_i32_1 : i32, i32, i32
  }
  func.func @transform_5(%arg0: i32) -> (i32, i32) {
    %c0_i32 = arith.constant 0 : i32
    %c0_i32_0 = arith.constant 0 : i32
    %c0_i32_1 = arith.constant 0 : i32
    return %c0_i32, %c0_i32_0 : i32, i32
  }
  func.func @transform_6(%arg0: i32) -> (i32, i32, i32) {
    %c0_i32 = arith.constant 0 : i32
    %c0_i32_0 = arith.constant 0 : i32
    %c0_i32_1 = arith.constant 0 : i32
    return %arg0, %c0_i32, %c0_i32_0 : i32, i32, i32
  }
}

</mosaic_0001>

<llo_original>
// kernel: psp_forward.1
$region0: #{psp_forward.1}
  #allocation0 [shape = 'u32[]', space=smem, size = 0x4, offset = 0x4, fixed_abs, tag = 'smem constant byte address 0x4 - core index']
  #allocation1 [shape = 'u32[144,128]{1,0:T(1,128)}', space=vmem, size = 0x12000, scoped, tag = 'internal scratch']
  %s0 = inlined_call_operand.vmem [shape: f32[2,4,256], index: 0, kind: input, shape index: {}]
  %s1 = inlined_call_operand.vmem [shape: f32[4,256,36], index: 1, kind: input, shape index: {}]
  %s2 = inlined_call_operand.hbm [shape: f32[4,36,256], index: 2, kind: input, shape index: {}]
  %s3 = inlined_call_operand.vmem [shape: f32[4,4,4], index: 3, kind: input, shape index: {}]
  %s4 = inlined_call_operand.vmem [shape: f32[5,128,4], index: 4, kind: input, shape index: {}]
  %s5 = inlined_call_operand.vmem [shape: f32[128,1], index: 5, kind: input, shape index: {}]
  %s6 = inlined_call_operand.vmem [shape: f32[2,128,256], index: 6, kind: output, shape index: {}]
  %s7 = sld [smem:[#allocation0]]
  $region61: #{psp_forward.1} parent=0
    _
  %s9 = ssub.s32 1, %s7
  %s10 = scalar_select 0, %s9, %s7
  $region1: #{psp_forward.1} parent=0
    #allocation2 [shape = 'u8[163840]{0}', space=vmem, size = 0x28000, scoped, tag = 'input window, operand 2, single buffered']
    #allocation3 [shape = 's32[2]{0}', space=sflag, size = 0x8, scoped, tag = 'scoped memory for psp_forward.1']
    %11 = vsyncpa [#allocation3], 0
    loop: start=0, step=1, limit=4
    $region2: #{psp_forward.1} parent=1 // loop_pre_header
      _
    $region3: #{psp_forward.1} parent=1 // loop_header
      %s13 = sphi 0, %s17
      %p14 = scmp.ge.s32.totalorder %s13, 4
      %s23 = sphi 0, %s25
      %s26 = sphi 0, %s23
      %s27 = sphi 0, %s26
      %s43 = sphi 0, %s27
      %s47 = sphi 0, %s47
      %s49 = sphi 0, %s47
      %s50 = sphi 0, %s49
      %s64 = sphi 0, %s50
      %s68 = sphi 0, %s68
      %s70 = sphi 0, %s68
      %s71 = sphi 0, %s70
      %s85 = sphi 0, %s71
      %s89 = sphi 0, %s89
      %s91 = sphi 0, %s89
      %s92 = sphi 0, %s91
      %s106 = sphi 0, %s92
      %s110 = sphi 0, %s110
      %s112 = sphi 0, %s110
      %s113 = sphi 0, %s112
      %s127 = sphi 0, %s113
      %s131 = sphi 0, %s131
      %s133 = sphi 0, %s131
      %s134 = sphi 0, %s133
      %s148 = sphi 0, %s134
      %s154 = sphi 0, %s156
      %s157 = sphi 0, %s154
      %s158 = sphi 0, %s157
      %s174 = sphi 0, %s158
    $region4: #{psp_forward.1} parent=1 // loop_header_branch
      %16 = sbr.rel (%p14) target = $region8
    $region5: #{psp_forward.1} parent=1 // loop_body
      %s18 = ssub.s32 %s13, 1
      %s19 = ssub.s32 %s13, 2
      %s20 = sadd.s32 %s13, 1
      %s21 = ssub.s32 %s13, %s20
      %p22 = scmp.eq.s32.totalorder %s21, 0
      %s24 = sadd.s32 %s23, 1
      %s25 = scalar_select %p22, %s23, %s24
      %p28 = pneg %p22
      %p29 = scmp.eq.s32.totalorder %s13, 1
      %p30 = por %p28, %p29
      %p31 = scmp.ne.s32.totalorder %s23, %s26
      %p32 = scmp.eq.s32.totalorder %s13, 0
      %p33 = por %p31, %p32
      %p34 = scmp.ne.s32.totalorder %s23, %s26
      %p35 = scmp.eq.s32.totalorder %s18, 1
      %p36 = por %p34, %p35
      %p37 = scmp.ne.s32.totalorder %s26, %s27
      %p38 = scmp.eq.s32.totalorder %s18, 0
      %p39 = por %p37, %p38
      %p40 = scmp.ne.s32.totalorder %s26, %s27
      %p41 = scmp.eq.s32.totalorder %s19, 1
      %p42 = por %p40, %p41
      %p44 = scmp.ne.s32.totalorder %s27, %s43
      %p45 = scmp.eq.s32.totalorder %s19, 0
      %p46 = por %p44, %p45
      %s48 = sadd.s32 %s47, 1
      %p51 = scmp.eq.s32.totalorder %s13, 1
      %p52 = scmp.ne.s32.totalorder %s47, %s49
      %p53 = scmp.eq.s32.totalorder %s13, 0
      %p54 = por %p52, %p53
      %p55 = scmp.ne.s32.totalorder %s47, %s49
      %p56 = scmp.eq.s32.totalorder %s18, 1
      %p57 = por %p55, %p56
      %p58 = scmp.ne.s32.totalorder %s49, %s50
      %p59 = scmp.eq.s32.totalorder %s18, 0
      %p60 = por %p58, %p59
      %p61 = scmp.ne.s32.totalorder %s49, %s50
      %p62 = scmp.eq.s32.totalorder %s19, 1
      %p63 = por %p61, %p62
      %p65 = scmp.ne.s32.totalorder %s50, %s64
      %p66 = scmp.eq.s32.totalorder %s19, 0
      %p67 = por %p65, %p66
      %s69 = sadd.s32 %s68, 1
      %p72 = scmp.eq.s32.totalorder %s13, 1
      %p73 = scmp.ne.s32.totalorder %s68, %s70
      %p74 = scmp.eq.s32.totalorder %s13, 0
      %p75 = por %p73, %p74
      %p76 = scmp.ne.s32.totalorder %s68, %s70
      %p77 = scmp.eq.s32.totalorder %s18, 1
      %p78 = por %p76, %p77
      %p79 = scmp.ne.s32.totalorder %s70, %s71
      %p80 = scmp.eq.s32.totalorder %s18, 0
      %p81 = por %p79, %p80
      %p82 = scmp.ne.s32.totalorder %s70, %s71
      %p83 = scmp.eq.s32.totalorder %s19, 1
      %p84 = por %p82, %p83
      %p86 = scmp.ne.s32.totalorder %s71, %s85
      %p87 = scmp.eq.s32.totalorder %s19, 0
      %p88 = por %p86, %p87
      %s90 = sadd.s32 %s89, 1
      %p93 = scmp.eq.s32.totalorder %s13, 1
      %p94 = scmp.ne.s32.totalorder %s89, %s91
      %p95 = scmp.eq.s32.totalorder %s13, 0
      %p96 = por %p94, %p95
      %p97 = scmp.ne.s32.totalorder %s89, %s91
      %p98 = scmp.eq.s32.totalorder %s18, 1
      %p99 = por %p97, %p98
      %p100 = scmp.ne.s32.totalorder %s91, %s92
      %p101 = scmp.eq.s32.totalorder %s18, 0
      %p102 = por %p100, %p101
      %p103 = scmp.ne.s32.totalorder %s91, %s92
      %p104 = scmp.eq.s32.totalorder %s19, 1
      %p105 = por %p103, %p104
      %p107 = scmp.ne.s32.totalorder %s92, %s106
      %p108 = scmp.eq.s32.totalorder %s19, 0
      %p109 = por %p107, %p108
      %s111 = sadd.s32 %s110, 1
      %p114 = scmp.eq.s32.totalorder %s13, 1
      %p115 = scmp.ne.s32.totalorder %s110, %s112
      %p116 = scmp.eq.s32.totalorder %s13, 0
      %p117 = por %p115, %p116
      %p118 = scmp.ne.s32.totalorder %s110, %s112
      %p119 = scmp.eq.s32.totalorder %s18, 1
      %p120 = por %p118, %p119
      %p121 = scmp.ne.s32.totalorder %s112, %s113
      %p122 = scmp.eq.s32.totalorder %s18, 0
      %p123 = por %p121, %p122
      %p124 = scmp.ne.s32.totalorder %s112, %s113
      %p125 = scmp.eq.s32.totalorder %s19, 1
      %p126 = por %p124, %p125
      %p128 = scmp.ne.s32.totalorder %s113, %s127
      %p129 = scmp.eq.s32.totalorder %s19, 0
      %p130 = por %p128, %p129
      %s132 = sadd.s32 %s131, 1
      %p135 = scmp.eq.s32.totalorder %s13, 1
      %p136 = scmp.ne.s32.totalorder %s131, %s133
      %p137 = scmp.eq.s32.totalorder %s13, 0
      %p138 = por %p136, %p137
      %p139 = scmp.ne.s32.totalorder %s131, %s133
      %p140 = scmp.eq.s32.totalorder %s18, 1
      %p141 = por %p139, %p140
      %p142 = scmp.ne.s32.totalorder %s133, %s134
      %p143 = scmp.eq.s32.totalorder %s18, 0
      %p144 = por %p142, %p143
      %p145 = scmp.ne.s32.totalorder %s133, %s134
      %p146 = scmp.eq.s32.totalorder %s19, 1
      %p147 = por %p145, %p146
      %p149 = scmp.ne.s32.totalorder %s134, %s148
      %p150 = scmp.eq.s32.totalorder %s19, 0
      %p151 = por %p149, %p150
      %s152 = ssub.s32 %s13, %s20
      %p153 = scmp.eq.s32.totalorder %s152, 0
      %s155 = sadd.s32 %s154, 1
      %s156 = scalar_select %p153, %s154, %s155
      %p159 = pneg %p153
      %p160 = scmp.eq.s32.totalorder %s13, 1
      %p161 = por %p159, %p160
      %p162 = scmp.ne.s32.totalorder %s154, %s157
      %p163 = scmp.eq.s32.totalorder %s13, 0
      %p164 = por %p162, %p163
      %p165 = scmp.ne.s32.totalorder %s154, %s157
      %p166 = scmp.eq.s32.totalorder %s18, 1
      %p167 = por %p165, %p166
      %p168 = scmp.ne.s32.totalorder %s157, %s158
      %p169 = scmp.eq.s32.totalorder %s18, 0
      %p170 = por %p168, %p169
      %p171 = scmp.ne.s32.totalorder %s157, %s158
      %p172 = scmp.eq.s32.totalorder %s19, 1
      %p173 = por %p171, %p172
      %p175 = scmp.ne.s32.totalorder %s158, %s174
      %p176 = scmp.eq.s32.totalorder %s19, 0
      %p177 = por %p175, %p176
      %p178 = scmp.le.s32.totalorder 1, %s13
      %p179 = scmp.lt.s32.totalorder %s13, 3
      %p180 = pnand %p178, %p179
      %p181 = pneg %p180
      // Predicated region
      $region9: #{psp_forward.1} parent=5 // pred_check
        _
      $region10: #{psp_forward.1} parent=5 // pred_check_branch
        %183 = sbr.rel (%p180) target = $region12
      $region11: #{psp_forward.1} parent=5 // pred_region
        %s184 = ssub.s32 %s13, 1
        // Predicated region
        $region13: #{psp_forward.1} parent=11 // pred_check
          %p185 = pneg %p60
        $region14: #{psp_forward.1} parent=11 // pred_check_branch
          %187 = sbr.rel (%p185) target = $region16
        $region15: #{psp_forward.1} parent=11 // pred_region
          _
        $region16: #{psp_forward.1} parent=11 // pred_fallthru
          _
        // Predicated region
        $region17: #{psp_forward.1} parent=11 // pred_check
          %p188 = pneg %p81
        $region18: #{psp_forward.1} parent=11 // pred_check_branch
          %190 = sbr.rel (%p188) target = $region20
        $region19: #{psp_forward.1} parent=11 // pred_region
          %s192 = ssub.s32 5120, 5120
          %193 = vsyncadd [#allocation3], %s192
          %s194 = sshll.u32 [#allocation2], 4
          %s195 = int_to_ptr.vmem [resolvable:$true] %s194
          %200 = dma.hbm_to_vmem [thread:$0]  %s2, 5120, %s195, [#allocation3], 256, 256, 16
        $region20: #{psp_forward.1} parent=11 // pred_fallthru
          _
        // Predicated region
        $region21: #{psp_forward.1} parent=11 // pred_check
          %p201 = pneg %p102
        $region22: #{psp_forward.1} parent=11 // pred_check_branch
          %203 = sbr.rel (%p201) target = $region24
        $region23: #{psp_forward.1} parent=11 // pred_region
          _
        $region24: #{psp_forward.1} parent=11 // pred_fallthru
          _
        // Predicated region
        $region25: #{psp_forward.1} parent=11 // pred_check
          %p204 = pneg %p123
        $region26: #{psp_forward.1} parent=11 // pred_check_branch
          %206 = sbr.rel (%p204) target = $region28
        $region27: #{psp_forward.1} parent=11 // pred_region
          _
        $region28: #{psp_forward.1} parent=11 // pred_fallthru
          _
        // Predicated region
        $region29: #{psp_forward.1} parent=11 // pred_check
          %p207 = pneg %p144
        $region30: #{psp_forward.1} parent=11 // pred_check_branch
          %209 = sbr.rel (%p207) target = $region32
        $region31: #{psp_forward.1} parent=11 // pred_region
          _
        $region32: #{psp_forward.1} parent=11 // pred_fallthru
          _
      $region12: #{psp_forward.1} parent=5 // pred_fallthru
        _
      %p210 = scmp.lt.s32.totalorder %s13, 2
      // Predicated region
      $region33: #{psp_forward.1} parent=5 // pred_check
        %p211 = pneg %p210
      $region34: #{psp_forward.1} parent=5 // pred_check_branch
        %213 = sbr.rel (%p211) target = $region36
      $region35: #{psp_forward.1} parent=5 // pred_region
        // Predicated region
        $region37: #{psp_forward.1} parent=35 // pred_check
          %p214 = pneg %p33
        $region38: #{psp_forward.1} parent=35 // pred_check_branch
          %216 = sbr.rel (%p214) target = $region40
        $region39: #{psp_forward.1} parent=35 // pred_region
          %p217 = scmp.lt.s32.totalorder %s13, 1
          %s218 = scalar_select %p217, %s13, 1
          %s219 = smul.addr %s218, 2
          %s220 = smul.addr %s219, 4
          %s221 = scalar_lea.vmem %s0, %s220
        $region40: #{psp_forward.1} parent=35 // pred_fallthru
          _
      $region36: #{psp_forward.1} parent=5 // pred_fallthru
        _
      %p222 = scmp.le.s32.totalorder 1, %s13
      %p223 = scmp.lt.s32.totalorder %s13, 3
      %p224 = pnand %p222, %p223
      %p225 = pneg %p224
      // Predicated region
      $region41: #{psp_forward.1} parent=5 // pred_check
        _
      $region42: #{psp_forward.1} parent=5 // pred_check_branch
        %227 = sbr.rel (%p224) target = $region44
      $region43: #{psp_forward.1} parent=5 // pred_region
        %s228 = ssub.s32 %s13, 1
        // Predicated region
        $region45: #{psp_forward.1} parent=43 // pred_check
          %p229 = pneg %p81
        $region46: #{psp_forward.1} parent=43 // pred_check_branch
          %231 = sbr.rel (%p229) target = $region48
        $region47: #{psp_forward.1} parent=43 // pred_region
          %232 = dma.done [#allocation3], 5120
        $region48: #{psp_forward.1} parent=43 // pred_fallthru
          _
        %p233 = scmp.lt.s32.totalorder %s18, 1
        %s234 = scalar_select %p233, %s18, 1
        %s235 = smul.addr %s234, 2
        %s236 = smul.addr %s235, 4
        %s237 = scalar_lea.vmem %s0, %s236
        %p238 = pneg %p39
        %p239 = pneg %p36
        %p240 = pneg %p60
        %p241 = pneg %p57
        %p242 = pneg %p81
        %p243 = pneg %p78
        %p244 = pneg %p102
        %p245 = pneg %p99
        %p246 = pneg %p123
        %p247 = pneg %p120
        %p248 = pneg %p144
        %p249 = pneg %p141
        %p250 = pneg %p170
        %p251 = pneg %p167
        %p252 = scmp.lt.s32.totalorder %s18, 1
        %s253 = scalar_select %p252, %s18, 1
        %s254 = smul.addr %s253, 32
        %s255 = smul.addr %s254, 8
        %s256 = scalar_lea.vmem %s6, %s255
        %p257 = scmp.lt.s32.totalorder %s18, 1
        %s258 = scalar_select %p257, %s18, 1
        %s259 = smul.addr %s258, 2
        %s260 = smul.addr %s259, 4
        %s261 = scalar_lea.vmem %s0, %s260
        %p262 = scmp.lt.s32.totalorder %s18, 1
        %s263 = scalar_select %p262, %s18, 1
        %s264 = smul.addr %s263, 32
        %s265 = smul.addr %s264, 8
        %s266 = scalar_lea.vmem %s6, %s265
        %v267 = vld [vmem:[%s261] sm:$0xff]
        %s268 = scalar_lea.vmem %s4, 512
        %v269 = vld [vmem:[%s268] sm:$0xff]
        %v270 = vld [vmem:[%s268 + $0x8] sm:$0xff]
        %v271 = vld [vmem:[%s268 + $0x10] sm:$0xff]
        %v272 = vld [vmem:[%s268 + $0x18] sm:$0xff]
        %v273 = vld [vmem:[%s268 + $0x20] sm:$0xff]
        %v274 = vld [vmem:[%s268 + $0x28] sm:$0xff]
        %v275 = vld [vmem:[%s268 + $0x30] sm:$0xff]
        %v276 = vld [vmem:[%s268 + $0x38] sm:$0xff]
        %v277 = vld [vmem:[%s268 + $0x40] sm:$0xff]
        %v278 = vld [vmem:[%s268 + $0x48] sm:$0xff]
        %v279 = vld [vmem:[%s268 + $0x50] sm:$0xff]
        %v280 = vld [vmem:[%s268 + $0x58] sm:$0xff]
        %v281 = vld [vmem:[%s268 + $0x60] sm:$0xff]
        %v282 = vld [vmem:[%s268 + $0x68] sm:$0xff]
        %v283 = vld [vmem:[%s268 + $0x70] sm:$0xff]
        %v284 = vld [vmem:[%s268 + $0x78] sm:$0xff]
        %v285 = vld [vmem:[%s1] sm:$0xff]
        %v286 = vld [vmem:[%s1 + $0x8] sm:$0xff]
        %v287 = vld [vmem:[%s1 + $0x10] sm:$0xff]
        %v288 = vld [vmem:[%s1 + $0x18] sm:$0xff]
        %v289 = vld [vmem:[%s1 + $0x20] sm:$0xff]
        %v290 = vld [vmem:[%s1 + $0x28] sm:$0xff]
        %v291 = vld [vmem:[%s1 + $0x30] sm:$0xff]
        %v292 = vld [vmem:[%s1 + $0x38] sm:$0xff]
        %v293 = vld [vmem:[%s1 + $0x40] sm:$0xff]
        %v294 = vld [vmem:[%s1 + $0x48] sm:$0xff]
        %v295 = vld [vmem:[%s1 + $0x50] sm:$0xff]
        %v296 = vld [vmem:[%s1 + $0x58] sm:$0xff]
        %v297 = vld [vmem:[%s1 + $0x60] sm:$0xff]
        %v298 = vld [vmem:[%s1 + $0x68] sm:$0xff]
        %v299 = vld [vmem:[%s1 + $0x70] sm:$0xff]
        %v300 = vld [vmem:[%s1 + $0x78] sm:$0xff]
        %v301 = vld [vmem:[%s1 + $0x80] sm:$0xff]
        %v302 = vld [vmem:[%s1 + $0x88] sm:$0xff]
        %v303 = vld [vmem:[%s1 + $0x90] sm:$0xff]
        %v304 = vld [vmem:[%s1 + $0x98] sm:$0xff]
        %v305 = vld [vmem:[%s1 + $0xa0] sm:$0xff]
        %v306 = vld [vmem:[%s1 + $0xa8] sm:$0xff]
        %v307 = vld [vmem:[%s1 + $0xb0] sm:$0xff]
        %v308 = vld [vmem:[%s1 + $0xb8] sm:$0xff]
        %v309 = vld [vmem:[%s1 + $0xc0] sm:$0xff]
        %v310 = vld [vmem:[%s1 + $0xc8] sm:$0xff]
        %v311 = vld [vmem:[%s1 + $0xd0] sm:$0xff]
        %v312 = vld [vmem:[%s1 + $0xd8] sm:$0xff]
        %v313 = vld [vmem:[%s1 + $0xe0] sm:$0xff]
        %v314 = vld [vmem:[%s1 + $0xe8] sm:$0xff]
        %v315 = vld [vmem:[%s1 + $0xf0] sm:$0xff]
        %v316 = vld [vmem:[%s1 + $0xf8] sm:$0xff]
        %v318 = vcombine.high %v267, %v267
        %320 = vmatprep.subr.mxu0 0.0
        %321 = vmatpush1.msra.mxu0 %v285
        %322 = vmatprep.subr.mxu0 0.0
        %323 = vmatpush1.msra.mxu0 %v286
        %324 = vmatprep.subr.mxu0 0.0
        %325 = vmatpush1.msra.mxu0 %v287
        %326 = vmatprep.subr.mxu0 0.0
        %327 = vmatpush1.msra.mxu0 %v288
        %328 = vmatprep.subr.mxu0 0.0
        %329 = vmatpush1.msra.mxu0 %v289
        %330 = vmatprep.subr.mxu0 0.0
        %331 = vmatpush1.msra.mxu0 %v290
        %332 = vmatprep.subr.mxu0 0.0
        %333 = vmatpush1.msra.mxu0 %v291
        %334 = vmatprep.subr.mxu0 0.0
        %335 = vmatpush1.msra.mxu0 %v292
        %336 = vmatprep.subr.mxu0 0.0
        %337 = vmatpush1.msra.mxu0 %v293
        %338 = vmatprep.subr.mxu0 0.0
        %339 = vmatpush1.msra.mxu0 %v294
        %340 = vmatprep.subr.mxu0 0.0
        %341 = vmatpush1.msra.mxu0 %v295
        %342 = vmatprep.subr.mxu0 0.0
        %343 = vmatpush1.msra.mxu0 %v296
        %344 = vmatprep.subr.mxu0 0.0
        %345 = vmatpush1.msra.mxu0 %v297
        %346 = vmatprep.subr.mxu0 0.0
        %347 = vmatpush1.msra.mxu0 %v298
        %348 = vmatprep.subr.mxu0 0.0
        %349 = vmatpush1.msra.mxu0 %v299
        %350 = vmatprep.subr.mxu0 0.0
        %351 = vmatpush1.msra.mxu0 %v300
        %352 = vmatprep.subr.mxu0 0.0
        %353 = vmatpush1.msra.mxu0 %v301
        %354 = vmatprep.subr.mxu0 0.0
        %355 = vmatpush1.msra.mxu0 %v302
        %356 = vmatprep.subr.mxu0 0.0
        %357 = vmatpush1.msra.mxu0 %v303
        %358 = vmatprep.subr.mxu0 0.0
        %359 = vmatpush1.msra.mxu0 %v304
        %360 = vmatprep.subr.mxu0 0.0
        %361 = vmatpush1.msra.mxu0 %v305
        %362 = vmatprep.subr.mxu0 0.0
        %363 = vmatpush1.msra.mxu0 %v306
        %364 = vmatprep.subr.mxu0 0.0
        %365 = vmatpush1.msra.mxu0 %v307
        %366 = vmatprep.subr.mxu0 0.0
        %367 = vmatpush1.msra.mxu0 %v308
        %368 = vmatprep.subr.mxu0 0.0
        %369 = vmatpush1.msra.mxu0 %v309
        %370 = vmatprep.subr.mxu0 0.0
        %371 = vmatpush1.msra.mxu0 %v310
        %372 = vmatprep.subr.mxu0 0.0
        %373 = vmatpush1.msra.mxu0 %v311
        %374 = vmatprep.subr.mxu0 0.0
        %375 = vmatpush1.msra.mxu0 %v312
        %376 = vmatprep.subr.mxu0 0.0
        %377 = vmatpush1.msra.mxu0 %v313
        %378 = vmatprep.subr.mxu0 0.0
        %379 = vmatpush1.msra.mxu0 %v314
        %380 = vmatprep.subr.mxu0 0.0
        %381 = vmatpush1.msra.mxu0 %v315
        %382 = vmatprep.subr.mxu0 0.0
        %383 = vmatpush1.msra.mxu0 %v316
        %384 = vmatprep.mubr.f32.mxu0 %v318
        %385 = vmatmul.mubr.f32.gmra.mrb[0].mxu0 %v267
        %v386 = vpop.f32.mrb[0].mxu0
        %v387 = vadd.f32 0.0, %v386
        %v388 = vpop.f32.mrb[0].mxu0
        %389 = vdwg.mxu0
        %v390 = vld [vmem:[%s3] sm:$0xf]
        %vm391 = vcmask 31744
        %v393 = vsel %vm391, %v390, 0
        %vm395 = vcmask 1043456
        %v397 = vsel %vm395, %v387, 0
        %399 = vmatprep.subr.mxu0 0.0
        %400 = vmatpush1.msra.mxu0 %v397
        %401 = vmatprep.subr.mxu0 0.0
        %402 = vmatpush1.msra.mxu0 0.0
        %403 = vmatprep.subr.mxu0 0.0
        %404 = vmatpush1.msra.mxu0 0.0
        %405 = vmatprep.subr.mxu0 0.0
        %406 = vmatpush1.msra.mxu0 0.0
        %407 = vmatprep.subr.mxu0 0.0
        %408 = vmatpush1.msra.mxu0 0.0
        %409 = vmatprep.subr.mxu0 0.0
        %410 = vmatpush1.msra.mxu0 0.0
        %411 = vmatprep.subr.mxu0 0.0
        %412 = vmatpush1.msra.mxu0 0.0
        %413 = vmatprep.subr.mxu0 0.0
        %414 = vmatpush1.msra.mxu0 0.0
        %415 = vmatprep.subr.mxu0 0.0
        %416 = vmatpush1.msra.mxu0 0.0
        %417 = vmatprep.subr.mxu0 0.0
        %418 = vmatpush1.msra.mxu0 0.0
        %419 = vmatprep.subr.mxu0 0.0
        %420 = vmatpush1.msra.mxu0 0.0
        %421 = vmatprep.subr.mxu0 0.0
        %422 = vmatpush1.msra.mxu0 0.0
        %423 = vmatprep.subr.mxu0 0.0
        %424 = vmatpush1.msra.mxu0 0.0
        %425 = vmatprep.subr.mxu0 0.0
        %426 = vmatpush1.msra.mxu0 0.0
        %427 = vmatprep.subr.mxu0 0.0
        %428 = vmatpush1.msra.mxu0 0.0
        %429 = vmatprep.subr.mxu0 0.0
        %430 = vmatpush1.msra.mxu0 0.0
        %431 = vmatprep.subr.mxu0 0.0
        %432 = vmatpush1.msra.mxu0 0.0
        %433 = vmatprep.subr.mxu0 0.0
        %434 = vmatpush1.msra.mxu0 0.0
        %435 = vmatprep.subr.mxu0 0.0
        %436 = vmatpush1.msra.mxu0 0.0
        %437 = vmatprep.subr.mxu0 0.0
        %438 = vmatpush1.msra.mxu0 0.0
        %439 = vmatprep.subr.mxu0 0.0
        %440 = vmatpush1.msra.mxu0 0.0
        %441 = vmatprep.subr.mxu0 0.0
        %442 = vmatpush1.msra.mxu0 0.0
        %443 = vmatprep.subr.mxu0 0.0
        %444 = vmatpush1.msra.mxu0 0.0
        %445 = vmatprep.subr.mxu0 0.0
        %446 = vmatpush1.msra.mxu0 0.0
        %447 = vmatprep.subr.mxu0 0.0
        %448 = vmatpush1.msra.mxu0 0.0
        %449 = vmatprep.subr.mxu0 0.0
        %450 = vmatpush1.msra.mxu0 0.0
        %451 = vmatprep.subr.mxu0 0.0
        %452 = vmatpush1.msra.mxu0 0.0
        %453 = vmatprep.subr.mxu0 0.0
        %454 = vmatpush1.msra.mxu0 0.0
        %455 = vmatprep.subr.mxu0 0.0
        %456 = vmatpush1.msra.mxu0 0.0
        %457 = vmatprep.subr.mxu0 0.0
        %458 = vmatpush1.msra.mxu0 0.0
        %459 = vmatprep.subr.mxu0 0.0
        %460 = vmatpush1.msra.mxu0 0.0
        %461 = vmatprep.subr.mxu0 0.0
        %462 = vmatpush1.msra.mxu0 0.0
        %463 = vmatprep.mubr.f32.mxu0 0.0
        %464 = vmatmul.mubr.f32.gmra.mrb[0].mxu0 %v393
        %v465 = vpop.f32.mrb[0].mxu0
        %v466 = vadd.f32 0.0, %v465
        %v467 = vpop.f32.mrb[0].mxu0
        %468 = vdwg.mxu0
        %v469 = vld [vmem:[%s4] sm:$0xff]
        %v470 = vld [vmem:[%s4 + $0x8] sm:$0xff]
        %v471 = vld [vmem:[%s4 + $0x10] sm:$0xff]
        %v472 = vld [vmem:[%s4 + $0x18] sm:$0xff]
        %v473 = vld [vmem:[%s4 + $0x20] sm:$0xff]
        %v474 = vld [vmem:[%s4 + $0x28] sm:$0xff]
        %v475 = vld [vmem:[%s4 + $0x30] sm:$0xff]
        %v476 = vld [vmem:[%s4 + $0x38] sm:$0xff]
        %v477 = vld [vmem:[%s4 + $0x40] sm:$0xff]
        %v478 = vld [vmem:[%s4 + $0x48] sm:$0xff]
        %v479 = vld [vmem:[%s4 + $0x50] sm:$0xff]
        %v480 = vld [vmem:[%s4 + $0x58] sm:$0xff]
        %v481 = vld [vmem:[%s4 + $0x60] sm:$0xff]
        %v482 = vld [vmem:[%s4 + $0x68] sm:$0xff]
        %v483 = vld [vmem:[%s4 + $0x70] sm:$0xff]
        %v484 = vld [vmem:[%s4 + $0x78] sm:$0xff]
        %v486 = vsel %vm391, %v469, 0
        %v489 = vsel %vm391, %v470, 0
        %v492 = vsel %vm391, %v471, 0
        %v495 = vsel %vm391, %v472, 0
        %v498 = vsel %vm391, %v473, 0
        %v501 = vsel %vm391, %v474, 0
        %v504 = vsel %vm391, %v475, 0
        %v507 = vsel %vm391, %v476, 0
        %v510 = vsel %vm391, %v477, 0
        %v513 = vsel %vm391, %v478, 0
        %v516 = vsel %vm391, %v479, 0
        %v519 = vsel %vm391, %v480, 0
        %v522 = vsel %vm391, %v481, 0
        %v525 = vsel %vm391, %v482, 0
        %v528 = vsel %vm391, %v483, 0
        %v531 = vsel %vm391, %v484, 0
        %v534 = vsel %vm395, %v466, 0
        %536 = vmatprep.subr.mxu0 0.0
        %537 = vmatpush1.msra.mxu0 %v534
        %538 = vmatprep.subr.mxu0 0.0
        %539 = vmatpush1.msra.mxu0 0.0
        %540 = vmatprep.subr.mxu0 0.0
        %541 = vmatpush1.msra.mxu0 0.0
        %542 = vmatprep.subr.mxu0 0.0
        %543 = vmatpush1.msra.mxu0 0.0
        %544 = vmatprep.subr.mxu0 0.0
        %545 = vmatpush1.msra.mxu0 0.0
        %546 = vmatprep.subr.mxu0 0.0
        %547 = vmatpush1.msra.mxu0 0.0
        %548 = vmatprep.subr.mxu0 0.0
        %549 = vmatpush1.msra.mxu0 0.0
        %550 = vmatprep.subr.mxu0 0.0
        %551 = vmatpush1.msra.mxu0 0.0
        %552 = vmatprep.subr.mxu0 0.0
        %553 = vmatpush1.msra.mxu0 0.0
        %554 = vmatprep.subr.mxu0 0.0
        %555 = vmatpush1.msra.mxu0 0.0
        %556 = vmatprep.subr.mxu0 0.0
        %557 = vmatpush1.msra.mxu0 0.0
        %558 = vmatprep.subr.mxu0 0.0
        %559 = vmatpush1.msra.mxu0 0.0
        %560 = vmatprep.subr.mxu0 0.0
        %561 = vmatpush1.msra.mxu0 0.0
        %562 = vmatprep.subr.mxu0 0.0
        %563 = vmatpush1.msra.mxu0 0.0
        %564 = vmatprep.subr.mxu0 0.0
        %565 = vmatpush1.msra.mxu0 0.0
        %566 = vmatprep.subr.mxu0 0.0
        %567 = vmatpush1.msra.mxu0 0.0
        %568 = vmatprep.subr.mxu0 0.0
        %569 = vmatpush1.msra.mxu0 0.0
        %570 = vmatprep.subr.mxu0 0.0
        %571 = vmatpush1.msra.mxu0 0.0
        %572 = vmatprep.subr.mxu0 0.0
        %573 = vmatpush1.msra.mxu0 0.0
        %574 = vmatprep.subr.mxu0 0.0
        %575 = vmatpush1.msra.mxu0 0.0
        %576 = vmatprep.subr.mxu0 0.0
        %577 = vmatpush1.msra.mxu0 0.0
        %578 = vmatprep.subr.mxu0 0.0
        %579 = vmatpush1.msra.mxu0 0.0
        %580 = vmatprep.subr.mxu0 0.0
        %581 = vmatpush1.msra.mxu0 0.0
        %582 = vmatprep.subr.mxu0 0.0
        %583 = vmatpush1.msra.mxu0 0.0
        %584 = vmatprep.subr.mxu0 0.0
        %585 = vmatpush1.msra.mxu0 0.0
        %586 = vmatprep.subr.mxu0 0.0
        %587 = vmatpush1.msra.mxu0 0.0
        %588 = vmatprep.subr.mxu0 0.0
        %589 = vmatpush1.msra.mxu0 0.0
        %590 = vmatprep.subr.mxu0 0.0
        %591 = vmatpush1.msra.mxu0 0.0
        %592 = vmatprep.subr.mxu0 0.0
        %593 = vmatpush1.msra.mxu0 0.0
        %594 = vmatprep.subr.mxu0 0.0
        %595 = vmatpush1.msra.mxu0 0.0
        %596 = vmatprep.subr.mxu0 0.0
        %597 = vmatpush1.msra.mxu0 0.0
        %598 = vmatprep.subr.mxu0 0.0
        %599 = vmatpush1.msra.mxu0 0.0
        %600 = vmatprep.mubr.f32.mxu0 0.0
        %601 = vmatmul.mubr.f32.gmra.mrb[0].mxu0 %v486
        %v602 = vpop.f32.mrb[0].mxu0
        %v603 = vadd.f32 0.0, %v602
        %v604 = vpop.f32.mrb[0].mxu0
        %605 = vmatprep.mubr.f32.mxu0 0.0
        %606 = vmatmul.mubr.f32.gmra.mrb[0].mxu0 %v489
        %v607 = vpop.f32.mrb[0].mxu0
        %v608 = vadd.f32 0.0, %v607
        %v609 = vpop.f32.mrb[0].mxu0
        %610 = vmatprep.mubr.f32.mxu0 0.0
        %611 = vmatmul.mubr.f32.gmra.mrb[0].mxu0 %v492
        %v612 = vpop.f32.mrb[0].mxu0
        %v613 = vadd.f32 0.0, %v612
        %v614 = vpop.f32.mrb[0].mxu0
        %615 = vmatprep.mubr.f32.mxu0 0.0
        %616 = vmatmul.mubr.f32.gmra.mrb[0].mxu0 %v495
        %v617 = vpop.f32.mrb[0].mxu0
        %v618 = vadd.f32 0.0, %v617
        %v619 = vpop.f32.mrb[0].mxu0
        %620 = vmatprep.mubr.f32.mxu0 0.0
        %621 = vmatmul.mubr.f32.gmra.mrb[0].mxu0 %v498
        %v622 = vpop.f32.mrb[0].mxu0
        %v623 = vadd.f32 0.0, %v622
        %v624 = vpop.f32.mrb[0].mxu0
        %625 = vmatprep.mubr.f32.mxu0 0.0
        %626 = vmatmul.mubr.f32.gmra.mrb[0].mxu0 %v501
        %v627 = vpop.f32.mrb[0].mxu0
        %v628 = vadd.f32 0.0, %v627
        %v629 = vpop.f32.mrb[0].mxu0
        %630 = vmatprep.mubr.f32.mxu0 0.0
        %631 = vmatmul.mubr.f32.gmra.mrb[0].mxu0 %v504
        %v632 = vpop.f32.mrb[0].mxu0
        %v633 = vadd.f32 0.0, %v632
        %v634 = vpop.f32.mrb[0].mxu0
        %635 = vmatprep.mubr.f32.mxu0 0.0
        %636 = vmatmul.mubr.f32.gmra.mrb[0].mxu0 %v507
        %v637 = vpop.f32.mrb[0].mxu0
        %v638 = vadd.f32 0.0, %v637
        %v639 = vpop.f32.mrb[0].mxu0
        %640 = vmatprep.mubr.f32.mxu0 0.0
        %641 = vmatmul.mubr.f32.gmra.mrb[0].mxu0 %v510
        %v642 = vpop.f32.mrb[0].mxu0
        %v643 = vadd.f32 0.0, %v642
        %v644 = vpop.f32.mrb[0].mxu0
        %645 = vmatprep.mubr.f32.mxu0 0.0
        %646 = vmatmul.mubr.f32.gmra.mrb[0].mxu0 %v513
        %v647 = vpop.f32.mrb[0].mxu0
        %v648 = vadd.f32 0.0, %v647
        %v649 = vpop.f32.mrb[0].mxu0
        %650 = vmatprep.mubr.f32.mxu0 0.0
        %651 = vmatmul.mubr.f32.gmra.mrb[0].mxu0 %v516
        %v652 = vpop.f32.mrb[0].mxu0
        %v653 = vadd.f32 0.0, %v652
        %v654 = vpop.f32.mrb[0].mxu0
        %655 = vmatprep.mubr.f32.mxu0 0.0
        %656 = vmatmul.mubr.f32.gmra.mrb[0].mxu0 %v519
        %v657 = vpop.f32.mrb[0].mxu0
        %v658 = vadd.f32 0.0, %v657
        %v659 = vpop.f32.mrb[0].mxu0
        %660 = vmatprep.mubr.f32.mxu0 0.0
        %661 = vmatmul.mubr.f32.gmra.mrb[0].mxu0 %v522
        %v662 = vpop.f32.mrb[0].mxu0
        %v663 = vadd.f32 0.0, %v662
        %v664 = vpop.f32.mrb[0].mxu0
        %665 = vmatprep.mubr.f32.mxu0 0.0
        %666 = vmatmul.mubr.f32.gmra.mrb[0].mxu0 %v525
        %v667 = vpop.f32.mrb[0].mxu0
        %v668 = vadd.f32 0.0, %v667
        %v669 = vpop.f32.mrb[0].mxu0
        %670 = vmatprep.mubr.f32.mxu0 0.0
        %671 = vmatmul.mubr.f32.gmra.mrb[0].mxu0 %v528
        %v672 = vpop.f32.mrb[0].mxu0
        %v673 = vadd.f32 0.0, %v672
        %v674 = vpop.f32.mrb[0].mxu0
        %675 = vmatprep.mubr.f32.mxu0 0.0
        %676 = vmatmul.mubr.f32.gmra.mrb[0].mxu0 %v531
        %v677 = vpop.f32.mrb[0].mxu0
        %v678 = vadd.f32 0.0, %v677
        %v679 = vpop.f32.mrb[0].mxu0
        %680 = vdwg.mxu0
        %v681 = vld [vmem:[#allocation2] sm:$0xff]
        %v682 = vld [vmem:[#allocation2 + $0x8] sm:$0xff]
        %v683 = vld [vmem:[#allocation2 + $0x10] sm:$0xff]
        %v684 = vld [vmem:[#allocation2 + $0x18] sm:$0xff]
        %v685 = vld [vmem:[#allocation2 + $0x20] sm:$0xff]
        %v686 = vld [vmem:[#allocation2 + $0x28] sm:$0xff]
        %v687 = vld [vmem:[#allocation2 + $0x30] sm:$0xff]
        %v688 = vld [vmem:[#allocation2 + $0x38] sm:$0xff]
        %v689 = vld [vmem:[#allocation2 + $0x40] sm:$0xf]
        %v690 = vld [vmem:[#allocation2 + $0x48] sm:$0xf]
        %vm691 = vcmask 293888
        %v693 = vsel %vm691, %v603, 0
        %v696 = vsel %vm691, %v608, 0
        %v699 = vsel %vm691, %v613, 0
        %v702 = vsel %vm691, %v618, 0
        %v705 = vsel %vm691, %v623, 0
        %v708 = vsel %vm691, %v628, 0
        %v711 = vsel %vm691, %v633, 0
        %v714 = vsel %vm691, %v638, 0
        %v717 = vsel %vm691, %v643, 0
        %v720 = vsel %vm691, %v648, 0
        %v723 = vsel %vm691, %v653, 0
        %v726 = vsel %vm691, %v658, 0
        %v729 = vsel %vm691, %v663, 0
        %v732 = vsel %vm691, %v668, 0
        %v735 = vsel %vm691, %v673, 0
        %v738 = vsel %vm691, %v678, 0
        %v741 = vsel %vm395, %v689, 0
        %v744 = vsel %vm395, %v690, 0
        %746 = vmatprep.subr.mxu0 %v682
        %747 = vmatpush1.msra.mxu0 %v681
        %748 = vmatprep.subr.mxu0 %v684
        %749 = vmatpush1.msra.mxu0 %v683
        %750 = vmatprep.subr.mxu0 %v686
        %751 = vmatpush1.msra.mxu0 %v685
        %752 = vmatprep.subr.mxu0 %v688
        %753 = vmatpush1.msra.mxu0 %v687
        %754 = vmatprep.subr.mxu0 %v744
        %755 = vmatpush1.msra.mxu0 %v741
        %756 = vmatprep.subr.mxu0 0.0
        %757 = vmatpush1.msra.mxu0 0.0
        %758 = vmatprep.subr.mxu0 0.0
        %759 = vmatpush1.msra.mxu0 0.0
        %760 = vmatprep.subr.mxu0 0.0
        %761 = vmatpush1.msra.mxu0 0.0
        %762 = vmatprep.subr.mxu0 0.0
        %763 = vmatpush1.msra.mxu0 0.0
        %764 = vmatprep.subr.mxu0 0.0
        %765 = vmatpush1.msra.mxu0 0.0
        %766 = vmatprep.subr.mxu0 0.0
        %767 = vmatpush1.msra.mxu0 0.0
        %768 = vmatprep.subr.mxu0 0.0
        %769 = vmatpush1.msra.mxu0 0.0
        %770 = vmatprep.subr.mxu0 0.0
        %771 = vmatpush1.msra.mxu0 0.0
        %772 = vmatprep.subr.mxu0 0.0
        %773 = vmatpush1.msra.mxu0 0.0
        %774 = vmatprep.subr.mxu0 0.0
        %775 = vmatpush1.msra.mxu0 0.0
        %776 = vmatprep.subr.mxu0 0.0
        %777 = vmatpush1.msra.mxu0 0.0
        %778 = vmatprep.subr.mxu0 0.0
        %779 = vmatpush1.msra.mxu0 0.0
        %780 = vmatprep.subr.mxu0 0.0
        %781 = vmatpush1.msra.mxu0 0.0
        %782 = vmatprep.subr.mxu0 0.0
        %783 = vmatpush1.msra.mxu0 0.0
        %784 = vmatprep.subr.mxu0 0.0
        %785 = vmatpush1.msra.mxu0 0.0
        %786 = vmatprep.subr.mxu0 0.0
        %787 = vmatpush1.msra.mxu0 0.0
        %788 = vmatprep.subr.mxu0 0.0
        %789 = vmatpush1.msra.mxu0 0.0
        %790 = vmatprep.subr.mxu0 0.0
        %791 = vmatpush1.msra.mxu0 0.0
        %792 = vmatprep.subr.mxu0 0.0
        %793 = vmatpush1.msra.mxu0 0.0
        %794 = vmatprep.subr.mxu0 0.0
        %795 = vmatpush1.msra.mxu0 0.0
        %796 = vmatprep.subr.mxu0 0.0
        %797 = vmatpush1.msra.mxu0 0.0
        %798 = vmatprep.subr.mxu0 0.0
        %799 = vmatpush1.msra.mxu0 0.0
        %800 = vmatprep.subr.mxu0 0.0
        %801 = vmatpush1.msra.mxu0 0.0
        %802 = vmatprep.subr.mxu0 0.0
        %803 = vmatpush1.msra.mxu0 0.0
        %804 = vmatprep.subr.mxu0 0.0
        %805 = vmatpush1.msra.mxu0 0.0
        %806 = vmatprep.subr.mxu0 0.0
        %807 = vmatpush1.msra.mxu0 0.0
        %808 = vmatprep.subr.mxu0 0.0
        %809 = vmatpush1.msra.mxu0 0.0
        %810 = vmatprep.mubr.f32.mxu0 0.0
        %811 = vmatmul.mubr.f32.gmra.mrb[0].mxu0 %v693
        %v812 = vpop.f32.mrb[0].mxu0
        %v813 = vadd.f32 0.0, %v812
        %v814 = vpop.f32.mrb[0].mxu0
        %v815 = vadd.f32 0.0, %v814
        %816 = vmatprep.mubr.f32.mxu0 0.0
        %817 = vmatmul.mubr.f32.gmra.mrb[0].mxu0 %v696
        %v818 = vpop.f32.mrb[0].mxu0
        %v819 = vadd.f32 0.0, %v818
        %v820 = vpop.f32.mrb[0].mxu0
        %v821 = vadd.f32 0.0, %v820
        %822 = vmatprep.mubr.f32.mxu0 0.0
        %823 = vmatmul.mubr.f32.gmra.mrb[0].mxu0 %v699
        %v824 = vpop.f32.mrb[0].mxu0
        %v825 = vadd.f32 0.0, %v824
        %v826 = vpop.f32.mrb[0].mxu0
        %v827 = vadd.f32 0.0, %v826
        %828 = vmatprep.mubr.f32.mxu0 0.0
        %829 = vmatmul.mubr.f32.gmra.mrb[0].mxu0 %v702
        %v830 = vpop.f32.mrb[0].mxu0
        %v831 = vadd.f32 0.0, %v830
        %v832 = vpop.f32.mrb[0].mxu0
        %v833 = vadd.f32 0.0, %v832
        %834 = vmatprep.mubr.f32.mxu0 0.0
        %835 = vmatmul.mubr.f32.gmra.mrb[0].mxu0 %v705
        %v836 = vpop.f32.mrb[0].mxu0
        %v837 = vadd.f32 0.0, %v836
        %v838 = vpop.f32.mrb[0].mxu0
        %v839 = vadd.f32 0.0, %v838
        %840 = vmatprep.mubr.f32.mxu0 0.0
        %841 = vmatmul.mubr.f32.gmra.mrb[0].mxu0 %v708
        %v842 = vpop.f32.mrb[0].mxu0
        %v843 = vadd.f32 0.0, %v842
        %v844 = vpop.f32.mrb[0].mxu0
        %v845 = vadd.f32 0.0, %v844
        %846 = vmatprep.mubr.f32.mxu0 0.0
        %847 = vmatmul.mubr.f32.gmra.mrb[0].mxu0 %v711
        %v848 = vpop.f32.mrb[0].mxu0
        %v849 = vadd.f32 0.0, %v848
        %v850 = vpop.f32.mrb[0].mxu0
        %v851 = vadd.f32 0.0, %v850
        %852 = vmatprep.mubr.f32.mxu0 0.0
        %853 = vmatmul.mubr.f32.gmra.mrb[0].mxu0 %v714
        %v854 = vpop.f32.mrb[0].mxu0
        %v855 = vadd.f32 0.0, %v854
        %v856 = vpop.f32.mrb[0].mxu0
        %v857 = vadd.f32 0.0, %v856
        %858 = vmatprep.mubr.f32.mxu0 0.0
        %859 = vmatmul.mubr.f32.gmra.mrb[0].mxu0 %v717
        %v860 = vpop.f32.mrb[0].mxu0
        %v861 = vadd.f32 0.0, %v860
        %v862 = vpop.f32.mrb[0].mxu0
        %v863 = vadd.f32 0.0, %v862
        %864 = vmatprep.mubr.f32.mxu0 0.0
        %865 = vmatmul.mubr.f32.gmra.mrb[0].mxu0 %v720
        %v866 = vpop.f32.mrb[0].mxu0
        %v867 = vadd.f32 0.0, %v866
        %v868 = vpop.f32.mrb[0].mxu0
        %v869 = vadd.f32 0.0, %v868
        %870 = vmatprep.mubr.f32.mxu0 0.0
        %871 = vmatmul.mubr.f32.gmra.mrb[0].mxu0 %v723
        %v872 = vpop.f32.mrb[0].mxu0
        %v873 = vadd.f32 0.0, %v872
        %v874 = vpop.f32.mrb[0].mxu0
        %v875 = vadd.f32 0.0, %v874
        %876 = vmatprep.mubr.f32.mxu0 0.0
        %877 = vmatmul.mubr.f32.gmra.mrb[0].mxu0 %v726
        %v878 = vpop.f32.mrb[0].mxu0
        %v879 = vadd.f32 0.0, %v878
        %v880 = vpop.f32.mrb[0].mxu0
        %v881 = vadd.f32 0.0, %v880
        %882 = vmatprep.mubr.f32.mxu0 0.0
        %883 = vmatmul.mubr.f32.gmra.mrb[0].mxu0 %v729
        %v884 = vpop.f32.mrb[0].mxu0
        %v885 = vadd.f32 0.0, %v884
        %v886 = vpop.f32.mrb[0].mxu0
        %v887 = vadd.f32 0.0, %v886
        %888 = vmatprep.mubr.f32.mxu0 0.0
        %889 = vmatmul.mubr.f32.gmra.mrb[0].mxu0 %v732
        %v890 = vpop.f32.mrb[0].mxu0
        %v891 = vadd.f32 0.0, %v890
        %v892 = vpop.f32.mrb[0].mxu0
        %v893 = vadd.f32 0.0, %v892
        %894 = vmatprep.mubr.f32.mxu0 0.0
        %895 = vmatmul.mubr.f32.gmra.mrb[0].mxu0 %v735
        %v896 = vpop.f32.mrb[0].mxu0
        %v897 = vadd.f32 0.0, %v896
        %v898 = vpop.f32.mrb[0].mxu0
        %v899 = vadd.f32 0.0, %v898
        %900 = vmatprep.mubr.f32.mxu0 0.0
        %901 = vmatmul.mubr.f32.gmra.mrb[0].mxu0 %v738
        %v902 = vpop.f32.mrb[0].mxu0
        %v903 = vadd.f32 0.0, %v902
        %v904 = vpop.f32.mrb[0].mxu0
        %v905 = vadd.f32 0.0, %v904
        %906 = vdwg.mxu0
        %v908 = vsel %vm391, %v269, 0
        %v911 = vsel %vm391, %v270, 0
        %v914 = vsel %vm391, %v271, 0
        %v917 = vsel %vm391, %v272, 0
        %v920 = vsel %vm391, %v273, 0
        %v923 = vsel %vm391, %v274, 0
        %v926 = vsel %vm391, %v275, 0
        %v929 = vsel %vm391, %v276, 0
        %v932 = vsel %vm391, %v277, 0
        %v935 = vsel %vm391, %v278, 0
        %v938 = vsel %vm391, %v279, 0
        %v941 = vsel %vm391, %v280, 0
        %v944 = vsel %vm391, %v281, 0
        %v947 = vsel %vm391, %v282, 0
        %v950 = vsel %vm391, %v283, 0
        %v953 = vsel %vm391, %v284, 0
        %v955 = vsel %vm395, %v267, 0
        %v957 = vsel %vm395, %v318, 0
        %959 = vmatprep.subr.mxu0 %v957
        %960 = vmatpush1.msra.mxu0 %v955
        %961 = vmatprep.subr.mxu0 0.0
        %962 = vmatpush1.msra.mxu0 0.0
        %963 = vmatprep.subr.mxu0 0.0
        %964 = vmatpush1.msra.mxu0 0.0
        %965 = vmatprep.subr.mxu0 0.0
        %966 = vmatpush1.msra.mxu0 0.0
        %967 = vmatprep.subr.mxu0 0.0
        %968 = vmatpush1.msra.mxu0 0.0
        %969 = vmatprep.subr.mxu0 0.0
        %970 = vmatpush1.msra.mxu0 0.0
        %971 = vmatprep.subr.mxu0 0.0
        %972 = vmatpush1.msra.mxu0 0.0
        %973 = vmatprep.subr.mxu0 0.0
        %974 = vmatpush1.msra.mxu0 0.0
        %975 = vmatprep.subr.mxu0 0.0
        %976 = vmatpush1.msra.mxu0 0.0
        %977 = vmatprep.subr.mxu0 0.0
        %978 = vmatpush1.msra.mxu0 0.0
        %979 = vmatprep.subr.mxu0 0.0
        %980 = vmatpush1.msra.mxu0 0.0
        %981 = vmatprep.subr.mxu0 0.0
        %982 = vmatpush1.msra.mxu0 0.0
        %983 = vmatprep.subr.mxu0 0.0
        %984 = vmatpush1.msra.mxu0 0.0
        %985 = vmatprep.subr.mxu0 0.0
        %986 = vmatpush1.msra.mxu0 0.0
        %987 = vmatprep.subr.mxu0 0.0
        %988 = vmatpush1.msra.mxu0 0.0
        %989 = vmatprep.subr.mxu0 0.0
        %990 = vmatpush1.msra.mxu0 0.0
        %991 = vmatprep.subr.mxu0 0.0
        %992 = vmatpush1.msra.mxu0 0.0
        %993 = vmatprep.subr.mxu0 0.0
        %994 = vmatpush1.msra.mxu0 0.0
        %995 = vmatprep.subr.mxu0 0.0
        %996 = vmatpush1.msra.mxu0 0.0
        %997 = vmatprep.subr.mxu0 0.0
        %998 = vmatpush1.msra.mxu0 0.0
        %999 = vmatprep.subr.mxu0 0.0
        %1000 = vmatpush1.msra.mxu0 0.0
        %1001 = vmatprep.subr.mxu0 0.0
        %1002 = vmatpush1.msra.mxu0 0.0
        %1003 = vmatprep.subr.mxu0 0.0
        %1004 = vmatpush1.msra.mxu0 0.0
        %1005 = vmatprep.subr.mxu0 0.0
        %1006 = vmatpush1.msra.mxu0 0.0
        %1007 = vmatprep.subr.mxu0 0.0
        %1008 = vmatpush1.msra.mxu0 0.0
        %1009 = vmatprep.subr.mxu0 0.0
        %1010 = vmatpush1.msra.mxu0 0.0
        %1011 = vmatprep.subr.mxu0 0.0
        %1012 = vmatpush1.msra.mxu0 0.0
        %1013 = vmatprep.subr.mxu0 0.0
        %1014 = vmatpush1.msra.mxu0 0.0
        %1015 = vmatprep.subr.mxu0 0.0
        %1016 = vmatpush1.msra.mxu0 0.0
        %1017 = vmatprep.subr.mxu0 0.0
        %1018 = vmatpush1.msra.mxu0 0.0
        %1019 = vmatprep.subr.mxu0 0.0
        %1020 = vmatpush1.msra.mxu0 0.0
        %1021 = vmatprep.subr.mxu0 0.0
        %1022 = vmatpush1.msra.mxu0 0.0
        %1023 = vmatprep.mubr.f32.mxu0 0.0
        %1024 = vmatmul.mubr.f32.gmra.mrb[0].mxu0 %v908
        %v1025 = vpop.f32.mrb[0].mxu0
        %v1026 = vadd.f32 %v813, %v1025
        %v1027 = vpop.f32.mrb[0].mxu0
        %v1028 = vadd.f32 %v815, %v1027
        %1029 = vmatprep.mubr.f32.mxu0 0.0
        %1030 = vmatmul.mubr.f32.gmra.mrb[0].mxu0 %v911
        %v1031 = vpop.f32.mrb[0].mxu0
        %v1032 = vadd.f32 %v819, %v1031
        %v1033 = vpop.f32.mrb[0].mxu0
        %v1034 = vadd.f32 %v821, %v1033
        %1035 = vmatprep.mubr.f32.mxu0 0.0
        %1036 = vmatmul.mubr.f32.gmra.mrb[0].mxu0 %v914
        %v1037 = vpop.f32.mrb[0].mxu0
        %v1038 = vadd.f32 %v825, %v1037
        %v1039 = vpop.f32.mrb[0].mxu0
        %v1040 = vadd.f32 %v827, %v1039
        %1041 = vmatprep.mubr.f32.mxu0 0.0
        %1042 = vmatmul.mubr.f32.gmra.mrb[0].mxu0 %v917
        %v1043 = vpop.f32.mrb[0].mxu0
        %v1044 = vadd.f32 %v831, %v1043
        %v1045 = vpop.f32.mrb[0].mxu0
        %v1046 = vadd.f32 %v833, %v1045
        %1047 = vmatprep.mubr.f32.mxu0 0.0
        %1048 = vmatmul.mubr.f32.gmra.mrb[0].mxu0 %v920
        %v1049 = vpop.f32.mrb[0].mxu0
        %v1050 = vadd.f32 %v837, %v1049
        %v1051 = vpop.f32.mrb[0].mxu0
        %v1052 = vadd.f32 %v839, %v1051
        %1053 = vmatprep.mubr.f32.mxu0 0.0
        %1054 = vmatmul.mubr.f32.gmra.mrb[0].mxu0 %v923
        %v1055 = vpop.f32.mrb[0].mxu0
        %v1056 = vadd.f32 %v843, %v1055
        %v1057 = vpop.f32.mrb[0].mxu0
        %v1058 = vadd.f32 %v845, %v1057
        %1059 = vmatprep.mubr.f32.mxu0 0.0
        %1060 = vmatmul.mubr.f32.gmra.mrb[0].mxu0 %v926
        %v1061 = vpop.f32.mrb[0].mxu0
        %v1062 = vadd.f32 %v849, %v1061
        %v1063 = vpop.f32.mrb[0].mxu0
        %v1064 = vadd.f32 %v851, %v1063
        %1065 = vmatprep.mubr.f32.mxu0 0.0
        %1066 = vmatmul.mubr.f32.gmra.mrb[0].mxu0 %v929
        %v1067 = vpop.f32.mrb[0].mxu0
        %v1068 = vadd.f32 %v855, %v1067
        %v1069 = vpop.f32.mrb[0].mxu0
        %v1070 = vadd.f32 %v857, %v1069
        %1071 = vmatprep.mubr.f32.mxu0 0.0
        %1072 = vmatmul.mubr.f32.gmra.mrb[0].mxu0 %v932
        %v1073 = vpop.f32.mrb[0].mxu0
        %v1074 = vadd.f32 %v861, %v1073
        %v1075 = vpop.f32.mrb[0].mxu0
        %v1076 = vadd.f32 %v863, %v1075
        %1077 = vmatprep.mubr.f32.mxu0 0.0
        %1078 = vmatmul.mubr.f32.gmra.mrb[0].mxu0 %v935
        %v1079 = vpop.f32.mrb[0].mxu0
        %v1080 = vadd.f32 %v867, %v1079
        %v1081 = vpop.f32.mrb[0].mxu0
        %v1082 = vadd.f32 %v869, %v1081
        %1083 = vmatprep.mubr.f32.mxu0 0.0
        %1084 = vmatmul.mubr.f32.gmra.mrb[0].mxu0 %v938
        %v1085 = vpop.f32.mrb[0].mxu0
        %v1086 = vadd.f32 %v873, %v1085
        %v1087 = vpop.f32.mrb[0].mxu0
        %v1088 = vadd.f32 %v875, %v1087
        %1089 = vmatprep.mubr.f32.mxu0 0.0
        %1090 = vmatmul.mubr.f32.gmra.mrb[0].mxu0 %v941
        %v1091 = vpop.f32.mrb[0].mxu0
        %v1092 = vadd.f32 %v879, %v1091
        %v1093 = vpop.f32.mrb[0].mxu0
        %v1094 = vadd.f32 %v881, %v1093
        %1095 = vmatprep.mubr.f32.mxu0 0.0
        %1096 = vmatmul.mubr.f32.gmra.mrb[0].mxu0 %v944
        %v1097 = vpop.f32.mrb[0].mxu0
        %v1098 = vadd.f32 %v885, %v1097
        %v1099 = vpop.f32.mrb[0].mxu0
        %v1100 = vadd.f32 %v887, %v1099
        %1101 = vmatprep.mubr.f32.mxu0 0.0
        %1102 = vmatmul.mubr.f32.gmra.mrb[0].mxu0 %v947
        %v1103 = vpop.f32.mrb[0].mxu0
        %v1104 = vadd.f32 %v891, %v1103
        %v1105 = vpop.f32.mrb[0].mxu0
        %v1106 = vadd.f32 %v893, %v1105
        %1107 = vmatprep.mubr.f32.mxu0 0.0
        %1108 = vmatmul.mubr.f32.gmra.mrb[0].mxu0 %v950
        %v1109 = vpop.f32.mrb[0].mxu0
        %v1110 = vadd.f32 %v897, %v1109
        %v1111 = vpop.f32.mrb[0].mxu0
        %v1112 = vadd.f32 %v899, %v1111
        %1113 = vmatprep.mubr.f32.mxu0 0.0
        %1114 = vmatmul.mubr.f32.gmra.mrb[0].mxu0 %v953
        %v1115 = vpop.f32.mrb[0].mxu0
        %v1116 = vadd.f32 %v903, %v1115
        %v1117 = vpop.f32.mrb[0].mxu0
        %v1118 = vadd.f32 %v905, %v1117
        %1119 = vdwg.mxu0
        %s1120 = scalar_lea.vmem %s1, 256
        %v1121 = vld [vmem:[%s1120] sm:$0xff]
        %v1122 = vld [vmem:[%s1120 + $0x8] sm:$0xff]
        %v1123 = vld [vmem:[%s1120 + $0x10] sm:$0xff]
        %v1124 = vld [vmem:[%s1120 + $0x18] sm:$0xff]
        %v1125 = vld [vmem:[%s1120 + $0x20] sm:$0xff]
        %v1126 = vld [vmem:[%s1120 + $0x28] sm:$0xff]
        %v1127 = vld [vmem:[%s1120 + $0x30] sm:$0xff]
        %v1128 = vld [vmem:[%s1120 + $0x38] sm:$0xff]
        %v1129 = vld [vmem:[%s1120 + $0x40] sm:$0xff]
        %v1130 = vld [vmem:[%s1120 + $0x48] sm:$0xff]
        %v1131 = vld [vmem:[%s1120 + $0x50] sm:$0xff]
        %v1132 = vld [vmem:[%s1120 + $0x58] sm:$0xff]
        %v1133 = vld [vmem:[%s1120 + $0x60] sm:$0xff]
        %v1134 = vld [vmem:[%s1120 + $0x68] sm:$0xff]
        %v1135 = vld [vmem:[%s1120 + $0x70] sm:$0xff]
        %v1136 = vld [vmem:[%s1120 + $0x78] sm:$0xff]
        %v1137 = vld [vmem:[%s1120 + $0x80] sm:$0xff]
        %v1138 = vld [vmem:[%s1120 + $0x88] sm:$0xff]
        %v1139 = vld [vmem:[%s1120 + $0x90] sm:$0xff]
        %v1140 = vld [vmem:[%s1120 + $0x98] sm:$0xff]
        %v1141 = vld [vmem:[%s1120 + $0xa0] sm:$0xff]
        %v1142 = vld [vmem:[%s1120 + $0xa8] sm:$0xff]
        %v1143 = vld [vmem:[%s1120 + $0xb0] sm:$0xff]
        %v1144 = vld [vmem:[%s1120 + $0xb8] sm:$0xff]
        %v1145 = vld [vmem:[%s1120 + $0xc0] sm:$0xff]
        %v1146 = vld [vmem:[%s1120 + $0xc8] sm:$0xff]
        %v1147 = vld [vmem:[%s1120 + $0xd0] sm:$0xff]
        %v1148 = vld [vmem:[%s1120 + $0xd8] sm:$0xff]
        %v1149 = vld [vmem:[%s1120 + $0xe0] sm:$0xff]
        %v1150 = vld [vmem:[%s1120 + $0xe8] sm:$0xff]
        %v1151 = vld [vmem:[%s1120 + $0xf0] sm:$0xff]
        %v1152 = vld [vmem:[%s1120 + $0xf8] sm:$0xff]
        %1153 = vmatprep.subr.mxu0 0.0
        %1154 = vmatpush1.msra.mxu0 %v1121
        %1155 = vmatprep.subr.mxu0 0.0
        %1156 = vmatpush1.msra.mxu0 %v1122
        %1157 = vmatprep.subr.mxu0 0.0
        %1158 = vmatpush1.msra.mxu0 %v1123
        %1159 = vmatprep.subr.mxu0 0.0
        %1160 = vmatpush1.msra.mxu0 %v1124
        %1161 = vmatprep.subr.mxu0 0.0
        %1162 = vmatpush1.msra.mxu0 %v1125
        %1163 = vmatprep.subr.mxu0 0.0
        %1164 = vmatpush1.msra.mxu0 %v1126
        %1165 = vmatprep.subr.mxu0 0.0
        %1166 = vmatpush1.msra.mxu0 %v1127
        %1167 = vmatprep.subr.mxu0 0.0
        %1168 = vmatpush1.msra.mxu0 %v1128
        %1169 = vmatprep.subr.mxu0 0.0
        %1170 = vmatpush1.msra.mxu0 %v1129
        %1171 = vmatprep.subr.mxu0 0.0
        %1172 = vmatpush1.msra.mxu0 %v1130
        %1173 = vmatprep.subr.mxu0 0.0
        %1174 = vmatpush1.msra.mxu0 %v1131
        %1175 = vmatprep.subr.mxu0 0.0
        %1176 = vmatpush1.msra.mxu0 %v1132
        %1177 = vmatprep.subr.mxu0 0.0
        %1178 = vmatpush1.msra.mxu0 %v1133
        %1179 = vmatprep.subr.mxu0 0.0
        %1180 = vmatpush1.msra.mxu0 %v1134
        %1181 = vmatprep.subr.mxu0 0.0
        %1182 = vmatpush1.msra.mxu0 %v1135
        %1183 = vmatprep.subr.mxu0 0.0
        %1184 = vmatpush1.msra.mxu0 %v1136
        %1185 = vmatprep.subr.mxu0 0.0
        %1186 = vmatpush1.msra.mxu0 %v1137
        %1187 = vmatprep.subr.mxu0 0.0
        %1188 = vmatpush1.msra.mxu0 %v1138
        %1189 = vmatprep.subr.mxu0 0.0
        %1190 = vmatpush1.msra.mxu0 %v1139
        %1191 = vmatprep.subr.mxu0 0.0
        %1192 = vmatpush1.msra.mxu0 %v1140
        %1193 = vmatprep.subr.mxu0 0.0
        %1194 = vmatpush1.msra.mxu0 %v1141
        %1195 = vmatprep.subr.mxu0 0.0
        %1196 = vmatpush1.msra.mxu0 %v1142
        %1197 = vmatprep.subr.mxu0 0.0
        %1198 = vmatpush1.msra.mxu0 %v1143
        %1199 = vmatprep.subr.mxu0 0.0
        %1200 = vmatpush1.msra.mxu0 %v1144
        %1201 = vmatprep.subr.mxu0 0.0
        %1202 = vmatpush1.msra.mxu0 %v1145
        %1203 = vmatprep.subr.mxu0 0.0
        %1204 = vmatpush1.msra.mxu0 %v1146
        %1205 = vmatprep.subr.mxu0 0.0
        %1206 = vmatpush1.msra.mxu0 %v1147
        %1207 = vmatprep.subr.mxu0 0.0
        %1208 = vmatpush1.msra.mxu0 %v1148
        %1209 = vmatprep.subr.mxu0 0.0
        %1210 = vmatpush1.msra.mxu0 %v1149
        %1211 = vmatprep.subr.mxu0 0.0
        %1212 = vmatpush1.msra.mxu0 %v1150
        %1213 = vmatprep.subr.mxu0 0.0
        %1214 = vmatpush1.msra.mxu0 %v1151
        %1215 = vmatprep.subr.mxu0 0.0
        %1216 = vmatpush1.msra.mxu0 %v1152
        %1217 = vmatprep.mubr.f32.mxu0 %v318
        %1218 = vmatmul.mubr.f32.gmra.mrb[0].mxu0 %v267
        %v1219 = vpop.f32.mrb[0].mxu0
        %v1220 = vadd.f32 0.0, %v1219
        %v1221 = vpop.f32.mrb[0].mxu0
        %1222 = vdwg.mxu0
        %s1223 = scalar_lea.vmem %s3, 4
        %v1224 = vld [vmem:[%s1223] sm:$0xf]
        %v1226 = vsel %vm391, %v1224, 0
        %v1229 = vsel %vm395, %v1220, 0
        %1231 = vmatprep.subr.mxu0 0.0
        %1232 = vmatpush1.msra.mxu0 %v1229
        %1233 = vmatprep.subr.mxu0 0.0
        %1234 = vmatpush1.msra.mxu0 0.0
        %1235 = vmatprep.subr.mxu0 0.0
        %1236 = vmatpush1.msra.mxu0 0.0
        %1237 = vmatprep.subr.mxu0 0.0
        %1238 = vmatpush1.msra.mxu0 0.0
        %1239 = vmatprep.subr.mxu0 0.0
        %1240 = vmatpush1.msra.mxu0 0.0
        %1241 = vmatprep.subr.mxu0 0.0
        %1242 = vmatpush1.msra.mxu0 0.0
        %1243 = vmatprep.subr.mxu0 0.0
        %1244 = vmatpush1.msra.mxu0 0.0
        %1245 = vmatprep.subr.mxu0 0.0
        %1246 = vmatpush1.msra.mxu0 0.0
        %1247 = vmatprep.subr.mxu0 0.0
        %1248 = vmatpush1.msra.mxu0 0.0
        %1249 = vmatprep.subr.mxu0 0.0
        %1250 = vmatpush1.msra.mxu0 0.0
        %1251 = vmatprep.subr.mxu0 0.0
        %1252 = vmatpush1.msra.mxu0 0.0
        %1253 = vmatprep.subr.mxu0 0.0
        %1254 = vmatpush1.msra.mxu0 0.0
        %1255 = vmatprep.subr.mxu0 0.0
        %1256 = vmatpush1.msra.mxu0 0.0
        %1257 = vmatprep.subr.mxu0 0.0
        %1258 = vmatpush1.msra.mxu0 0.0
        %1259 = vmatprep.subr.mxu0 0.0
        %1260 = vmatpush1.msra.mxu0 0.0
        %1261 = vmatprep.subr.mxu0 0.0
        %1262 = vmatpush1.msra.mxu0 0.0
        %1263 = vmatprep.subr.mxu0 0.0
        %1264 = vmatpush1.msra.mxu0 0.0
        %1265 = vmatprep.subr.mxu0 0.0
        %1266 = vmatpush1.msra.mxu0 0.0
        %1267 = vmatprep.subr.mxu0 0.0
        %1268 = vmatpush1.msra.mxu0 0.0
        %1269 = vmatprep.subr.mxu0 0.0
        %1270 = vmatpush1.msra.mxu0 0.0
        %1271 = vmatprep.subr.mxu0 0.0
        %1272 = vmatpush1.msra.mxu0 0.0
        %1273 = vmatprep.subr.mxu0 0.0
        %1274 = vmatpush1.msra.mxu0 0.0
        %1275 = vmatprep.subr.mxu0 0.0
        %1276 = vmatpush1.msra.mxu0 0.0
        %1277 = vmatprep.subr.mxu0 0.0
        %1278 = vmatpush1.msra.mxu0 0.0
        %1279 = vmatprep.subr.mxu0 0.0
        %1280 = vmatpush1.msra.mxu0 0.0
        %1281 = vmatprep.subr.mxu0 0.0
        %1282 = vmatpush1.msra.mxu0 0.0
        %1283 = vmatprep.subr.mxu0 0.0
        %1284 = vmatpush1.msra.mxu0 0.0
        %1285 = vmatprep.subr.mxu0 0.0
        %1286 = vmatpush1.msra.mxu0 0.0
        %1287 = vmatprep.subr.mxu0 0.0
        %1288 = vmatpush1.msra.mxu0 0.0
        %1289 = vmatprep.subr.mxu0 0.0
        %1290 = vmatpush1.msra.mxu0 0.0
        %1291 = vmatprep.subr.mxu0 0.0
        %1292 = vmatpush1.msra.mxu0 0.0
        %1293 = vmatprep.subr.mxu0 0.0
        %1294 = vmatpush1.msra.mxu0 0.0
        %1295 = vmatprep.mubr.f32.mxu0 0.0
        %1296 = vmatmul.mubr.f32.gmra.mrb[0].mxu0 %v1226
        %v1297 = vpop.f32.mrb[0].mxu0
        %v1298 = vadd.f32 0.0, %v1297
        %v1299 = vpop.f32.mrb[0].mxu0
        %1300 = vdwg.mxu0
        %s1301 = scalar_lea.vmem %s4, 128
        %v1302 = vld [vmem:[%s1301] sm:$0xff]
        %v1303 = vld [vmem:[%s1301 + $0x8] sm:$0xff]
        %v1304 = vld [vmem:[%s1301 + $0x10] sm:$0xff]
        %v1305 = vld [vmem:[%s1301 + $0x18] sm:$0xff]
        %v1306 = vld [vmem:[%s1301 + $0x20] sm:$0xff]
        %v1307 = vld [vmem:[%s1301 + $0x28] sm:$0xff]
        %v1308 = vld [vmem:[%s1301 + $0x30] sm:$0xff]
        %v1309 = vld [vmem:[%s1301 + $0x38] sm:$0xff]
        %v1310 = vld [vmem:[%s1301 + $0x40] sm:$0xff]
        %v1311 = vld [vmem:[%s1301 + $0x48] sm:$0xff]
        %v1312 = vld [vmem:[%s1301 + $0x50] sm:$0xff]
        %v1313 = vld [vmem:[%s1301 + $0x58] sm:$0xff]
        %v1314 = vld [vmem:[%s1301 + $0x60] sm:$0xff]
        %v1315 = vld [vmem:[%s1301 + $0x68] sm:$0xff]
        %v1316 = vld [vmem:[%s1301 + $0x70] sm:$0xff]
        %v1317 = vld [vmem:[%s1301 + $0x78] sm:$0xff]
        %v1319 = vsel %vm391, %v1302, 0
        %v1322 = vsel %vm391, %v1303, 0
        %v1325 = vsel %vm391, %v1304, 0
        %v1328 = vsel %vm391, %v1305, 0
        %v1331 = vsel %vm391, %v1306, 0
        %v1334 = vsel %vm391, %v1307, 0
        %v1337 = vsel %vm391, %v1308, 0
        %v1340 = vsel %vm391, %v1309, 0
        %v1343 = vsel %vm391, %v1310, 0
        %v1346 = vsel %vm391, %v1311, 0
        %v1349 = vsel %vm391, %v1312, 0
        %v1352 = vsel %vm391, %v1313, 0
        %v1355 = vsel %vm391, %v1314, 0
        %v1358 = vsel %vm391, %v1315, 0
        %v1361 = vsel %vm391, %v1316, 0
        %v1364 = vsel %vm391, %v1317, 0
        %v1367 = vsel %vm395, %v1298, 0
        %1369 = vmatprep.subr.mxu0 0.0
        %1370 = vmatpush1.msra.mxu0 %v1367
        %1371 = vmatprep.subr.mxu0 0.0
        %1372 = vmatpush1.msra.mxu0 0.0
        %1373 = vmatprep.subr.mxu0 0.0
        %1374 = vmatpush1.msra.mxu0 0.0
        %1375 = vmatprep.subr.mxu0 0.0
        %1376 = vmatpush1.msra.mxu0 0.0
        %1377 = vmatprep.subr.mxu0 0.0
        %1378 = vmatpush1.msra.mxu0 0.0
        %1379 = vmatprep.subr.mxu0 0.0
        %1380 = vmatpush1.msra.mxu0 0.0
        %1381 = vmatprep.subr.mxu0 0.0
        %1382 = vmatpush1.msra.mxu0 0.0
        %1383 = vmatprep.subr.mxu0 0.0
        %1384 = vmatpush1.msra.mxu0 0.0
        %1385 = vmatprep.subr.mxu0 0.0
        %1386 = vmatpush1.msra.mxu0 0.0
        %1387 = vmatprep.subr.mxu0 0.0
        %1388 = vmatpush1.msra.mxu0 0.0
        %1389 = vmatprep.subr.mxu0 0.0
        %1390 = vmatpush1.msra.mxu0 0.0
        %1391 = vmatprep.subr.mxu0 0.0
        %1392 = vmatpush1.msra.mxu0 0.0
        %1393 = vmatprep.subr.mxu0 0.0
        %1394 = vmatpush1.msra.mxu0 0.0
        %1395 = vmatprep.subr.mxu0 0.0
        %1396 = vmatpush1.msra.mxu0 0.0
        %1397 = vmatprep.subr.mxu0 0.0
        %1398 = vmatpush1.msra.mxu0 0.0
        %1399 = vmatprep.subr.mxu0 0.0
        %1400 = vmatpush1.msra.mxu0 0.0
        %1401 = vmatprep.subr.mxu0 0.0
        %1402 = vmatpush1.msra.mxu0 0.0
        %1403 = vmatprep.subr.mxu0 0.0
        %1404 = vmatpush1.msra.mxu0 0.0
        %1405 = vmatprep.subr.mxu0 0.0
        %1406 = vmatpush1.msra.mxu0 0.0
        %1407 = vmatprep.subr.mxu0 0.0
        %1408 = vmatpush1.msra.mxu0 0.0
        %1409 = vmatprep.subr.mxu0 0.0
        %1410 = vmatpush1.msra.mxu0 0.0
        %1411 = vmatprep.subr.mxu0 0.0
        %1412 = vmatpush1.msra.mxu0 0.0
        %1413 = vmatprep.subr.mxu0 0.0
        %1414 = vmatpush1.msra.mxu0 0.0
        %1415 = vmatprep.subr.mxu0 0.0
        %1416 = vmatpush1.msra.mxu0 0.0
        %1417 = vmatprep.subr.mxu0 0.0
        %1418 = vmatpush1.msra.mxu0 0.0
        %1419 = vmatprep.subr.mxu0 0.0
        %1420 = vmatpush1.msra.mxu0 0.0
        %1421 = vmatprep.subr.mxu0 0.0
        %1422 = vmatpush1.msra.mxu0 0.0
        %1423 = vmatprep.subr.mxu0 0.0
        %1424 = vmatpush1.msra.mxu0 0.0
        %1425 = vmatprep.subr.mxu0 0.0
        %1426 = vmatpush1.msra.mxu0 0.0
        %1427 = vmatprep.subr.mxu0 0.0
        %1428 = vmatpush1.msra.mxu0 0.0
        %1429 = vmatprep.subr.mxu0 0.0
        %1430 = vmatpush1.msra.mxu0 0.0
        %1431 = vmatprep.subr.mxu0 0.0
        %1432 = vmatpush1.msra.mxu0 0.0
        %1433 = vmatprep.mubr.f32.mxu0 0.0
        %1434 = vmatmul.mubr.f32.gmra.mrb[0].mxu0 %v1319
        %v1435 = vpop.f32.mrb[0].mxu0
        %v1436 = vadd.f32 0.0, %v1435
        %v1437 = vpop.f32.mrb[0].mxu0
        %1438 = vmatprep.mubr.f32.mxu0 0.0
        %1439 = vmatmul.mubr.f32.gmra.mrb[0].mxu0 %v1322
        %v1440 = vpop.f32.mrb[0].mxu0
        %v1441 = vadd.f32 0.0, %v1440
        %v1442 = vpop.f32.mrb[0].mxu0
        %1443 = vmatprep.mubr.f32.mxu0 0.0
        %1444 = vmatmul.mubr.f32.gmra.mrb[0].mxu0 %v1325
        %v1445 = vpop.f32.mrb[0].mxu0
        %v1446 = vadd.f32 0.0, %v1445
        %v1447 = vpop.f32.mrb[0].mxu0
        %1448 = vmatprep.mubr.f32.mxu0 0.0
        %1449 = vmatmul.mubr.f32.gmra.mrb[0].mxu0 %v1328
        %v1450 = vpop.f32.mrb[0].mxu0
        %v1451 = vadd.f32 0.0, %v1450
        %v1452 = vpop.f32.mrb[0].mxu0
        %1453 = vmatprep.mubr.f32.mxu0 0.0
        %1454 = vmatmul.mubr.f32.gmra.mrb[0].mxu0 %v1331
        %v1455 = vpop.f32.mrb[0].mxu0
        %v1456 = vadd.f32 0.0, %v1455
        %v1457 = vpop.f32.mrb[0].mxu0
        %1458 = vmatprep.mubr.f32.mxu0 0.0
        %1459 = vmatmul.mubr.f32.gmra.mrb[0].mxu0 %v1334
        %v1460 = vpop.f32.mrb[0].mxu0
        %v1461 = vadd.f32 0.0, %v1460
        %v1462 = vpop.f32.mrb[0].mxu0
        %1463 = vmatprep.mubr.f32.mxu0 0.0
        %1464 = vmatmul.mubr.f32.gmra.mrb[0].mxu0 %v1337
        %v1465 = vpop.f32.mrb[0].mxu0
        %v1466 = vadd.f32 0.0, %v1465
        %v1467 = vpop.f32.mrb[0].mxu0
        %1468 = vmatprep.mubr.f32.mxu0 0.0
        %1469 = vmatmul.mubr.f32.gmra.mrb[0].mxu0 %v1340
        %v1470 = vpop.f32.mrb[0].mxu0
        %v1471 = vadd.f32 0.0, %v1470
        %v1472 = vpop.f32.mrb[0].mxu0
        %1473 = vmatprep.mubr.f32.mxu0 0.0
        %1474 = vmatmul.mubr.f32.gmra.mrb[0].mxu0 %v1343
        %v1475 = vpop.f32.mrb[0].mxu0
        %v1476 = vadd.f32 0.0, %v1475
        %v1477 = vpop.f32.mrb[0].mxu0
        %1478 = vmatprep.mubr.f32.mxu0 0.0
        %1479 = vmatmul.mubr.f32.gmra.mrb[0].mxu0 %v1346
        %v1480 = vpop.f32.mrb[0].mxu0
        %v1481 = vadd.f32 0.0, %v1480
        %v1482 = vpop.f32.mrb[0].mxu0
        %1483 = vmatprep.mubr.f32.mxu0 0.0
        %1484 = vmatmul.mubr.f32.gmra.mrb[0].mxu0 %v1349
        %v1485 = vpop.f32.mrb[0].mxu0
        %v1486 = vadd.f32 0.0, %v1485
        %v1487 = vpop.f32.mrb[0].mxu0
        %1488 = vmatprep.mubr.f32.mxu0 0.0
        %1489 = vmatmul.mubr.f32.gmra.mrb[0].mxu0 %v1352
        %v1490 = vpop.f32.mrb[0].mxu0
        %v1491 = vadd.f32 0.0, %v1490
        %v1492 = vpop.f32.mrb[0].mxu0
        %1493 = vmatprep.mubr.f32.mxu0 0.0
        %1494 = vmatmul.mubr.f32.gmra.mrb[0].mxu0 %v1355
        %v1495 = vpop.f32.mrb[0].mxu0
        %v1496 = vadd.f32 0.0, %v1495
        %v1497 = vpop.f32.mrb[0].mxu0
        %1498 = vmatprep.mubr.f32.mxu0 0.0
        %1499 = vmatmul.mubr.f32.gmra.mrb[0].mxu0 %v1358
        %v1500 = vpop.f32.mrb[0].mxu0
        %v1501 = vadd.f32 0.0, %v1500
        %v1502 = vpop.f32.mrb[0].mxu0
        %1503 = vmatprep.mubr.f32.mxu0 0.0
        %1504 = vmatmul.mubr.f32.gmra.mrb[0].mxu0 %v1361
        %v1505 = vpop.f32.mrb[0].mxu0
        %v1506 = vadd.f32 0.0, %v1505
        %v1507 = vpop.f32.mrb[0].mxu0
        %1508 = vmatprep.mubr.f32.mxu0 0.0
        %1509 = vmatmul.mubr.f32.gmra.mrb[0].mxu0 %v1364
        %v1510 = vpop.f32.mrb[0].mxu0
        %v1511 = vadd.f32 0.0, %v1510
        %v1512 = vpop.f32.mrb[0].mxu0
        %1513 = vdwg.mxu0
        %s1514 = scalar_lea.vmem [#allocation2], 80
        %v1515 = vld [vmem:[%s1514] sm:$0xff]
        %v1516 = vld [vmem:[%s1514 + $0x8] sm:$0xff]
        %v1517 = vld [vmem:[%s1514 + $0x10] sm:$0xff]
        %v1518 = vld [vmem:[%s1514 + $0x18] sm:$0xff]
        %v1519 = vld [vmem:[%s1514 + $0x20] sm:$0xff]
        %v1520 = vld [vmem:[%s1514 + $0x28] sm:$0xff]
        %v1521 = vld [vmem:[%s1514 + $0x30] sm:$0xff]
        %v1522 = vld [vmem:[%s1514 + $0x38] sm:$0xff]
        %v1523 = vld [vmem:[%s1514 + $0x40] sm:$0xf]
        %v1524 = vld [vmem:[%s1514 + $0x48] sm:$0xf]
        %v1526 = vsel %vm691, %v1436, 0
        %v1529 = vsel %vm691, %v1441, 0
        %v1532 = vsel %vm691, %v1446, 0
        %v1535 = vsel %vm691, %v1451, 0
        %v1538 = vsel %vm691, %v1456, 0
        %v1541 = vsel %vm691, %v1461, 0
        %v1544 = vsel %vm691, %v1466, 0
        %v1547 = vsel %vm691, %v1471, 0
        %v1550 = vsel %vm691, %v1476, 0
        %v1553 = vsel %vm691, %v1481, 0
        %v1556 = vsel %vm691, %v1486, 0
        %v1559 = vsel %vm691, %v1491, 0
        %v1562 = vsel %vm691, %v1496, 0
        %v1565 = vsel %vm691, %v1501, 0
        %v1568 = vsel %vm691, %v1506, 0
        %v1571 = vsel %vm691, %v1511, 0
        %v1574 = vsel %vm395, %v1523, 0
        %v1577 = vsel %vm395, %v1524, 0
        %1579 = vmatprep.subr.mxu0 %v1516
        %1580 = vmatpush1.msra.mxu0 %v1515
        %1581 = vmatprep.subr.mxu0 %v1518
        %1582 = vmatpush1.msra.mxu0 %v1517
        %1583 = vmatprep.subr.mxu0 %v1520
        %1584 = vmatpush1.msra.mxu0 %v1519
        %1585 = vmatprep.subr.mxu0 %v1522
        %1586 = vmatpush1.msra.mxu0 %v1521
        %1587 = vmatprep.subr.mxu0 %v1577
        %1588 = vmatpush1.msra.mxu0 %v1574
        %1589 = vmatprep.subr.mxu0 0.0
        %1590 = vmatpush1.msra.mxu0 0.0
        %1591 = vmatprep.subr.mxu0 0.0
        %1592 = vmatpush1.msra.mxu0 0.0
        %1593 = vmatprep.subr.mxu0 0.0
        %1594 = vmatpush1.msra.mxu0 0.0
        %1595 = vmatprep.subr.mxu0 0.0
        %1596 = vmatpush1.msra.mxu0 0.0
        %1597 = vmatprep.subr.mxu0 0.0
        %1598 = vmatpush1.msra.mxu0 0.0
        %1599 = vmatprep.subr.mxu0 0.0
        %1600 = vmatpush1.msra.mxu0 0.0
        %1601 = vmatprep.subr.mxu0 0.0
        %1602 = vmatpush1.msra.mxu0 0.0
        %1603 = vmatprep.subr.mxu0 0.0
        %1604 = vmatpush1.msra.mxu0 0.0
        %1605 = vmatprep.subr.mxu0 0.0
        %1606 = vmatpush1.msra.mxu0 0.0
        %1607 = vmatprep.subr.mxu0 0.0
        %1608 = vmatpush1.msra.mxu0 0.0
        %1609 = vmatprep.subr.mxu0 0.0
        %1610 = vmatpush1.msra.mxu0 0.0
        %1611 = vmatprep.subr.mxu0 0.0
        %1612 = vmatpush1.msra.mxu0 0.0
        %1613 = vmatprep.subr.mxu0 0.0
        %1614 = vmatpush1.msra.mxu0 0.0
        %1615 = vmatprep.subr.mxu0 0.0
        %1616 = vmatpush1.msra.mxu0 0.0
        %1617 = vmatprep.subr.mxu0 0.0
        %1618 = vmatpush1.msra.mxu0 0.0
        %1619 = vmatprep.subr.mxu0 0.0
        %1620 = vmatpush1.msra.mxu0 0.0
        %1621 = vmatprep.subr.mxu0 0.0
        %1622 = vmatpush1.msra.mxu0 0.0
        %1623 = vmatprep.subr.mxu0 0.0
        %1624 = vmatpush1.msra.mxu0 0.0
        %1625 = vmatprep.subr.mxu0 0.0
        %1626 = vmatpush1.msra.mxu0 0.0
        %1627 = vmatprep.subr.mxu0 0.0
        %1628 = vmatpush1.msra.mxu0 0.0
        %1629 = vmatprep.subr.mxu0 0.0
        %1630 = vmatpush1.msra.mxu0 0.0
        %1631 = vmatprep.subr.mxu0 0.0
        %1632 = vmatpush1.msra.mxu0 0.0
        %1633 = vmatprep.subr.mxu0 0.0
        %1634 = vmatpush1.msra.mxu0 0.0
        %1635 = vmatprep.subr.mxu0 0.0
        %1636 = vmatpush1.msra.mxu0 0.0
        %1637 = vmatprep.subr.mxu0 0.0
        %1638 = vmatpush1.msra.mxu0 0.0
        %1639 = vmatprep.subr.mxu0 0.0
        %1640 = vmatpush1.msra.mxu0 0.0
        %1641 = vmatprep.subr.mxu0 0.0
        %1642 = vmatpush1.msra.mxu0 0.0
        %1643 = vmatprep.mubr.f32.mxu0 0.0
        %1644 = vmatmul.mubr.f32.gmra.mrb[0].mxu0 %v1526
        %v1645 = vpop.f32.mrb[0].mxu0
        %v1646 = vadd.f32 0.0, %v1645
        %v1647 = vpop.f32.mrb[0].mxu0
        %v1648 = vadd.f32 0.0, %v1647
        %1649 = vmatprep.mubr.f32.mxu0 0.0
        %1650 = vmatmul.mubr.f32.gmra.mrb[0].mxu0 %v1529
        %v1651 = vpop.f32.mrb[0].mxu0
        %v1652 = vadd.f32 0.0, %v1651
        %v1653 = vpop.f32.mrb[0].mxu0
        %v1654 = vadd.f32 0.0, %v1653
        %1655 = vmatprep.mubr.f32.mxu0 0.0
        %1656 = vmatmul.mubr.f32.gmra.mrb[0].mxu0 %v1532
        %v1657 = vpop.f32.mrb[0].mxu0
        %v1658 = vadd.f32 0.0, %v1657
        %v1659 = vpop.f32.mrb[0].mxu0
        %v1660 = vadd.f32 0.0, %v1659
        %1661 = vmatprep.mubr.f32.mxu0 0.0
        %1662 = vmatmul.mubr.f32.gmra.mrb[0].mxu0 %v1535
        %v1663 = vpop.f32.mrb[0].mxu0
        %v1664 = vadd.f32 0.0, %v1663
        %v1665 = vpop.f32.mrb[0].mxu0
        %v1666 = vadd.f32 0.0, %v1665
        %1667 = vmatprep.mubr.f32.mxu0 0.0
        %1668 = vmatmul.mubr.f32.gmra.mrb[0].mxu0 %v1538
        %v1669 = vpop.f32.mrb[0].mxu0
        %v1670 = vadd.f32 0.0, %v1669
        %v1671 = vpop.f32.mrb[0].mxu0
        %v1672 = vadd.f32 0.0, %v1671
        %1673 = vmatprep.mubr.f32.mxu0 0.0
        %1674 = vmatmul.mubr.f32.gmra.mrb[0].mxu0 %v1541
        %v1675 = vpop.f32.mrb[0].mxu0
        %v1676 = vadd.f32 0.0, %v1675
        %v1677 = vpop.f32.mrb[0].mxu0
        %v1678 = vadd.f32 0.0, %v1677
        %1679 = vmatprep.mubr.f32.mxu0 0.0
        %1680 = vmatmul.mubr.f32.gmra.mrb[0].mxu0 %v1544
        %v1681 = vpop.f32.mrb[0].mxu0
        %v1682 = vadd.f32 0.0, %v1681
        %v1683 = vpop.f32.mrb[0].mxu0
        %v1684 = vadd.f32 0.0, %v1683
        %1685 = vmatprep.mubr.f32.mxu0 0.0
        %1686 = vmatmul.mubr.f32.gmra.mrb[0].mxu0 %v1547
        %v1687 = vpop.f32.mrb[0].mxu0
        %v1688 = vadd.f32 0.0, %v1687
        %v1689 = vpop.f32.mrb[0].mxu0
        %v1690 = vadd.f32 0.0, %v1689
        %1691 = vmatprep.mubr.f32.mxu0 0.0
        %1692 = vmatmul.mubr.f32.gmra.mrb[0].mxu0 %v1550
        %v1693 = vpop.f32.mrb[0].mxu0
        %v1694 = vadd.f32 0.0, %v1693
        %v1695 = vpop.f32.mrb[0].mxu0
        %v1696 = vadd.f32 0.0, %v1695
        %1697 = vmatprep.mubr.f32.mxu0 0.0
        %1698 = vmatmul.mubr.f32.gmra.mrb[0].mxu0 %v1553
        %v1699 = vpop.f32.mrb[0].mxu0
        %v1700 = vadd.f32 0.0, %v1699
        %v1701 = vpop.f32.mrb[0].mxu0
        %v1702 = vadd.f32 0.0, %v1701
        %1703 = vmatprep.mubr.f32.mxu0 0.0
        %1704 = vmatmul.mubr.f32.gmra.mrb[0].mxu0 %v1556
        %v1705 = vpop.f32.mrb[0].mxu0
        %v1706 = vadd.f32 0.0, %v1705
        %v1707 = vpop.f32.mrb[0].mxu0
        %v1708 = vadd.f32 0.0, %v1707
        %1709 = vmatprep.mubr.f32.mxu0 0.0
        %1710 = vmatmul.mubr.f32.gmra.mrb[0].mxu0 %v1559
        %v1711 = vpop.f32.mrb[0].mxu0
        %v1712 = vadd.f32 0.0, %v1711
        %v1713 = vpop.f32.mrb[0].mxu0
        %v1714 = vadd.f32 0.0, %v1713
        %1715 = vmatprep.mubr.f32.mxu0 0.0
        %1716 = vmatmul.mubr.f32.gmra.mrb[0].mxu0 %v1562
        %v1717 = vpop.f32.mrb[0].mxu0
        %v1718 = vadd.f32 0.0, %v1717
        %v1719 = vpop.f32.mrb[0].mxu0
        %v1720 = vadd.f32 0.0, %v1719
        %1721 = vmatprep.mubr.f32.mxu0 0.0
        %1722 = vmatmul.mubr.f32.gmra.mrb[0].mxu0 %v1565
        %v1723 = vpop.f32.mrb[0].mxu0
        %v1724 = vadd.f32 0.0, %v1723
        %v1725 = vpop.f32.mrb[0].mxu0
        %v1726 = vadd.f32 0.0, %v1725
        %1727 = vmatprep.mubr.f32.mxu0 0.0
        %1728 = vmatmul.mubr.f32.gmra.mrb[0].mxu0 %v1568
        %v1729 = vpop.f32.mrb[0].mxu0
        %v1730 = vadd.f32 0.0, %v1729
        %v1731 = vpop.f32.mrb[0].mxu0
        %v1732 = vadd.f32 0.0, %v1731
        %1733 = vmatprep.mubr.f32.mxu0 0.0
        %1734 = vmatmul.mubr.f32.gmra.mrb[0].mxu0 %v1571
        %v1735 = vpop.f32.mrb[0].mxu0
        %v1736 = vadd.f32 0.0, %v1735
        %v1737 = vpop.f32.mrb[0].mxu0
        %v1738 = vadd.f32 0.0, %v1737
        %1739 = vdwg.mxu0
        %v1740 = vadd.f32 %v1026, %v1646
        %v1741 = vadd.f32 %v1028, %v1648
        %v1742 = vadd.f32 %v1032, %v1652
        %v1743 = vadd.f32 %v1034, %v1654
        %v1744 = vadd.f32 %v1038, %v1658
        %v1745 = vadd.f32 %v1040, %v1660
        %v1746 = vadd.f32 %v1044, %v1664
        %v1747 = vadd.f32 %v1046, %v1666
        %v1748 = vadd.f32 %v1050, %v1670
        %v1749 = vadd.f32 %v1052, %v1672
        %v1750 = vadd.f32 %v1056, %v1676
        %v1751 = vadd.f32 %v1058, %v1678
        %v1752 = vadd.f32 %v1062, %v1682
        %v1753 = vadd.f32 %v1064, %v1684
        %v1754 = vadd.f32 %v1068, %v1688
        %v1755 = vadd.f32 %v1070, %v1690
        %v1756 = vadd.f32 %v1074, %v1694
        %v1757 = vadd.f32 %v1076, %v1696
        %v1758 = vadd.f32 %v1080, %v1700
        %v1759 = vadd.f32 %v1082, %v1702
        %v1760 = vadd.f32 %v1086, %v1706
        %v1761 = vadd.f32 %v1088, %v1708
        %v1762 = vadd.f32 %v1092, %v1712
        %v1763 = vadd.f32 %v1094, %v1714
        %v1764 = vadd.f32 %v1098, %v1718
        %v1765 = vadd.f32 %v1100, %v1720
        %v1766 = vadd.f32 %v1104, %v1724
        %v1767 = vadd.f32 %v1106, %v1726
        %v1768 = vadd.f32 %v1110, %v1730
        %v1769 = vadd.f32 %v1112, %v1732
        %v1770 = vadd.f32 %v1116, %v1736
        %v1771 = vadd.f32 %v1118, %v1738
        %s1772 = scalar_lea.vmem %s1, 512
        %v1773 = vld [vmem:[%s1772] sm:$0xff]
        %v1774 = vld [vmem:[%s1772 + $0x8] sm:$0xff]
        %v1775 = vld [vmem:[%s1772 + $0x10] sm:$0xff]
        %v1776 = vld [vmem:[%s1772 + $0x18] sm:$0xff]
        %v1777 = vld [vmem:[%s1772 + $0x20] sm:$0xff]
        %v1778 = vld [vmem:[%s1772 + $0x28] sm:$0xff]
        %v1779 = vld [vmem:[%s1772 + $0x30] sm:$0xff]
        %v1780 = vld [vmem:[%s1772 + $0x38] sm:$0xff]
        %v1781 = vld [vmem:[%s1772 + $0x40] sm:$0xff]
        %v1782 = vld [vmem:[%s1772 + $0x48] sm:$0xff]
        %v1783 = vld [vmem:[%s1772 + $0x50] sm:$0xff]
        %v1784 = vld [vmem:[%s1772 + $0x58] sm:$0xff]
        %v1785 = vld [vmem:[%s1772 + $0x60] sm:$0xff]
        %v1786 = vld [vmem:[%s1772 + $0x68] sm:$0xff]
        %v1787 = vld [vmem:[%s1772 + $0x70] sm:$0xff]
        %v1788 = vld [vmem:[%s1772 + $0x78] sm:$0xff]
        %v1789 = vld [vmem:[%s1772 + $0x80] sm:$0xff]
        %v1790 = vld [vmem:[%s1772 + $0x88] sm:$0xff]
        %v1791 = vld [vmem:[%s1772 + $0x90] sm:$0xff]
        %v1792 = vld [vmem:[%s1772 + $0x98] sm:$0xff]
        %v1793 = vld [vmem:[%s1772 + $0xa0] sm:$0xff]
        %v1794 = vld [vmem:[%s1772 + $0xa8] sm:$0xff]
        %v1795 = vld [vmem:[%s1772 + $0xb0] sm:$0xff]
        %v1796 = vld [vmem:[%s1772 + $0xb8] sm:$0xff]
        %v1797 = vld [vmem:[%s1772 + $0xc0] sm:$0xff]
        %v1798 = vld [vmem:[%s1772 + $0xc8] sm:$0xff]
        %v1799 = vld [vmem:[%s1772 + $0xd0] sm:$0xff]
        %v1800 = vld [vmem:[%s1772 + $0xd8] sm:$0xff]
        %v1801 = vld [vmem:[%s1772 + $0xe0] sm:$0xff]
        %v1802 = vld [vmem:[%s1772 + $0xe8] sm:$0xff]
        %v1803 = vld [vmem:[%s1772 + $0xf0] sm:$0xff]
        %v1804 = vld [vmem:[%s1772 + $0xf8] sm:$0xff]
        %1805 = vmatprep.subr.mxu0 0.0
        %1806 = vmatpush1.msra.mxu0 %v1773
        %1807 = vmatprep.subr.mxu0 0.0
        %1808 = vmatpush1.msra.mxu0 %v1774
        %1809 = vmatprep.subr.mxu0 0.0
        %1810 = vmatpush1.msra.mxu0 %v1775
        %1811 = vmatprep.subr.mxu0 0.0
        %1812 = vmatpush1.msra.mxu0 %v1776
        %1813 = vmatprep.subr.mxu0 0.0
        %1814 = vmatpush1.msra.mxu0 %v1777
        %1815 = vmatprep.subr.mxu0 0.0
        %1816 = vmatpush1.msra.mxu0 %v1778
        %1817 = vmatprep.subr.mxu0 0.0
        %1818 = vmatpush1.msra.mxu0 %v1779
        %1819 = vmatprep.subr.mxu0 0.0
        %1820 = vmatpush1.msra.mxu0 %v1780
        %1821 = vmatprep.subr.mxu0 0.0
        %1822 = vmatpush1.msra.mxu0 %v1781
        %1823 = vmatprep.subr.mxu0 0.0
        %1824 = vmatpush1.msra.mxu0 %v1782
        %1825 = vmatprep.subr.mxu0 0.0
        %1826 = vmatpush1.msra.mxu0 %v1783
        %1827 = vmatprep.subr.mxu0 0.0
        %1828 = vmatpush1.msra.mxu0 %v1784
        %1829 = vmatprep.subr.mxu0 0.0
        %1830 = vmatpush1.msra.mxu0 %v1785
        %1831 = vmatprep.subr.mxu0 0.0
        %1832 = vmatpush1.msra.mxu0 %v1786
        %1833 = vmatprep.subr.mxu0 0.0
        %1834 = vmatpush1.msra.mxu0 %v1787
        %1835 = vmatprep.subr.mxu0 0.0
        %1836 = vmatpush1.msra.mxu0 %v1788
        %1837 = vmatprep.subr.mxu0 0.0
        %1838 = vmatpush1.msra.mxu0 %v1789
        %1839 = vmatprep.subr.mxu0 0.0
        %1840 = vmatpush1.msra.mxu0 %v1790
        %1841 = vmatprep.subr.mxu0 0.0
        %1842 = vmatpush1.msra.mxu0 %v1791
        %1843 = vmatprep.subr.mxu0 0.0
        %1844 = vmatpush1.msra.mxu0 %v1792
        %1845 = vmatprep.subr.mxu0 0.0
        %1846 = vmatpush1.msra.mxu0 %v1793
        %1847 = vmatprep.subr.mxu0 0.0
        %1848 = vmatpush1.msra.mxu0 %v1794
        %1849 = vmatprep.subr.mxu0 0.0
        %1850 = vmatpush1.msra.mxu0 %v1795
        %1851 = vmatprep.subr.mxu0 0.0
        %1852 = vmatpush1.msra.mxu0 %v1796
        %1853 = vmatprep.subr.mxu0 0.0
        %1854 = vmatpush1.msra.mxu0 %v1797
        %1855 = vmatprep.subr.mxu0 0.0
        %1856 = vmatpush1.msra.mxu0 %v1798
        %1857 = vmatprep.subr.mxu0 0.0
        %1858 = vmatpush1.msra.mxu0 %v1799
        %1859 = vmatprep.subr.mxu0 0.0
        %1860 = vmatpush1.msra.mxu0 %v1800
        %1861 = vmatprep.subr.mxu0 0.0
        %1862 = vmatpush1.msra.mxu0 %v1801
        %1863 = vmatprep.subr.mxu0 0.0
        %1864 = vmatpush1.msra.mxu0 %v1802
        %1865 = vmatprep.subr.mxu0 0.0
        %1866 = vmatpush1.msra.mxu0 %v1803
        %1867 = vmatprep.subr.mxu0 0.0
        %1868 = vmatpush1.msra.mxu0 %v1804
        %1869 = vmatprep.mubr.f32.mxu0 %v318
        %1870 = vmatmul.mubr.f32.gmra.mrb[0].mxu0 %v267
        %v1871 = vpop.f32.mrb[0].mxu0
        %v1872 = vadd.f32 0.0, %v1871
        %v1873 = vpop.f32.mrb[0].mxu0
        %1874 = vdwg.mxu0
        %s1875 = scalar_lea.vmem %s3, 8
        %v1876 = vld [vmem:[%s1875] sm:$0xf]
        %v1878 = vsel %vm391, %v1876, 0
        %v1881 = vsel %vm395, %v1872, 0
        %1883 = vmatprep.subr.mxu0 0.0
        %1884 = vmatpush1.msra.mxu0 %v1881
        %1885 = vmatprep.subr.mxu0 0.0
        %1886 = vmatpush1.msra.mxu0 0.0
        %1887 = vmatprep.subr.mxu0 0.0
        %1888 = vmatpush1.msra.mxu0 0.0
        %1889 = vmatprep.subr.mxu0 0.0
        %1890 = vmatpush1.msra.mxu0 0.0
        %1891 = vmatprep.subr.mxu0 0.0
        %1892 = vmatpush1.msra.mxu0 0.0
        %1893 = vmatprep.subr.mxu0 0.0
        %1894 = vmatpush1.msra.mxu0 0.0
        %1895 = vmatprep.subr.mxu0 0.0
        %1896 = vmatpush1.msra.mxu0 0.0
        %1897 = vmatprep.subr.mxu0 0.0
        %1898 = vmatpush1.msra.mxu0 0.0
        %1899 = vmatprep.subr.mxu0 0.0
        %1900 = vmatpush1.msra.mxu0 0.0
        %1901 = vmatprep.subr.mxu0 0.0
        %1902 = vmatpush1.msra.mxu0 0.0
        %1903 = vmatprep.subr.mxu0 0.0
        %1904 = vmatpush1.msra.mxu0 0.0
        %1905 = vmatprep.subr.mxu0 0.0
        %1906 = vmatpush1.msra.mxu0 0.0
        %1907 = vmatprep.subr.mxu0 0.0
        %1908 = vmatpush1.msra.mxu0 0.0
        %1909 = vmatprep.subr.mxu0 0.0
        %1910 = vmatpush1.msra.mxu0 0.0
        %1911 = vmatprep.subr.mxu0 0.0
        %1912 = vmatpush1.msra.mxu0 0.0
        %1913 = vmatprep.subr.mxu0 0.0
        %1914 = vmatpush1.msra.mxu0 0.0
        %1915 = vmatprep.subr.mxu0 0.0
        %1916 = vmatpush1.msra.mxu0 0.0
        %1917 = vmatprep.subr.mxu0 0.0
        %1918 = vmatpush1.msra.mxu0 0.0
        %1919 = vmatprep.subr.mxu0 0.0
        %1920 = vmatpush1.msra.mxu0 0.0
        %1921 = vmatprep.subr.mxu0 0.0
        %1922 = vmatpush1.msra.mxu0 0.0
        %1923 = vmatprep.subr.mxu0 0.0
        %1924 = vmatpush1.msra.mxu0 0.0
        %1925 = vmatprep.subr.mxu0 0.0
        %1926 = vmatpush1.msra.mxu0 0.0
        %1927 = vmatprep.subr.mxu0 0.0
        %1928 = vmatpush1.msra.mxu0 0.0
        %1929 = vmatprep.subr.mxu0 0.0
        %1930 = vmatpush1.msra.mxu0 0.0
        %1931 = vmatprep.subr.mxu0 0.0
        %1932 = vmatpush1.msra.mxu0 0.0
        %1933 = vmatprep.subr.mxu0 0.0
        %1934 = vmatpush1.msra.mxu0 0.0
        %1935 = vmatprep.subr.mxu0 0.0
        %1936 = vmatpush1.msra.mxu0 0.0
        %1937 = vmatprep.subr.mxu0 0.0
        %1938 = vmatpush1.msra.mxu0 0.0
        %1939 = vmatprep.subr.mxu0 0.0
        %1940 = vmatpush1.msra.mxu0 0.0
        %1941 = vmatprep.subr.mxu0 0.0
        %1942 = vmatpush1.msra.mxu0 0.0
        %1943 = vmatprep.subr.mxu0 0.0
        %1944 = vmatpush1.msra.mxu0 0.0
        %1945 = vmatprep.subr.mxu0 0.0
        %1946 = vmatpush1.msra.mxu0 0.0
        %1947 = vmatprep.mubr.f32.mxu0 0.0
        %1948 = vmatmul.mubr.f32.gmra.mrb[0].mxu0 %v1878
        %v1949 = vpop.f32.mrb[0].mxu0
        %v1950 = vadd.f32 0.0, %v1949
        %v1951 = vpop.f32.mrb[0].mxu0
        %1952 = vdwg.mxu0
        %s1953 = scalar_lea.vmem %s4, 256
        %v1954 = vld [vmem:[%s1953] sm:$0xff]
        %v1955 = vld [vmem:[%s1953 + $0x8] sm:$0xff]
        %v1956 = vld [vmem:[%s1953 + $0x10] sm:$0xff]
        %v1957 = vld [vmem:[%s1953 + $0x18] sm:$0xff]
        %v1958 = vld [vmem:[%s1953 + $0x20] sm:$0xff]
        %v1959 = vld [vmem:[%s1953 + $0x28] sm:$0xff]
        %v1960 = vld [vmem:[%s1953 + $0x30] sm:$0xff]
        %v1961 = vld [vmem:[%s1953 + $0x38] sm:$0xff]
        %v1962 = vld [vmem:[%s1953 + $0x40] sm:$0xff]
        %v1963 = vld [vmem:[%s1953 + $0x48] sm:$0xff]
        %v1964 = vld [vmem:[%s1953 + $0x50] sm:$0xff]
        %v1965 = vld [vmem:[%s1953 + $0x58] sm:$0xff]
        %v1966 = vld [vmem:[%s1953 + $0x60] sm:$0xff]
        %v1967 = vld [vmem:[%s1953 + $0x68] sm:$0xff]
        %v1968 = vld [vmem:[%s1953 + $0x70] sm:$0xff]
        %v1969 = vld [vmem:[%s1953 + $0x78] sm:$0xff]
        %v1971 = vsel %vm391, %v1954, 0
        %v1974 = vsel %vm391, %v1955, 0
        %v1977 = vsel %vm391, %v1956, 0
        %v1980 = vsel %vm391, %v1957, 0
        %v1983 = vsel %vm391, %v1958, 0
        %v1986 = vsel %vm391, %v1959, 0
        %v1989 = vsel %vm391, %v1960, 0
        %v1992 = vsel %vm391, %v1961, 0
        %v1995 = vsel %vm391, %v1962, 0
        %v1998 = vsel %vm391, %v1963, 0
        %v2001 = vsel %vm391, %v1964, 0
        %v2004 = vsel %vm391, %v1965, 0
        %v2007 = vsel %vm391, %v1966, 0
        %v2010 = vsel %vm391, %v1967, 0
        %v2013 = vsel %vm391, %v1968, 0
        %v2016 = vsel %vm391, %v1969, 0
        %v2019 = vsel %vm395, %v1950, 0
        %2021 = vmatprep.subr.mxu0 0.0
        %2022 = vmatpush1.msra.mxu0 %v2019
        %2023 = vmatprep.subr.mxu0 0.0
        %2024 = vmatpush1.msra.mxu0 0.0
        %2025 = vmatprep.subr.mxu0 0.0
        %2026 = vmatpush1.msra.mxu0 0.0
        %2027 = vmatprep.subr.mxu0 0.0
        %2028 = vmatpush1.msra.mxu0 0.0
        %2029 = vmatprep.subr.mxu0 0.0
        %2030 = vmatpush1.msra.mxu0 0.0
        %2031 = vmatprep.subr.mxu0 0.0
        %2032 = vmatpush1.msra.mxu0 0.0
        %2033 = vmatprep.subr.mxu0 0.0
        %2034 = vmatpush1.msra.mxu0 0.0
        %2035 = vmatprep.subr.mxu0 0.0
        %2036 = vmatpush1.msra.mxu0 0.0
        %2037 = vmatprep.subr.mxu0 0.0
        %2038 = vmatpush1.msra.mxu0 0.0
        %2039 = vmatprep.subr.mxu0 0.0
        %2040 = vmatpush1.msra.mxu0 0.0
        %2041 = vmatprep.subr.mxu0 0.0
        %2042 = vmatpush1.msra.mxu0 0.0
        %2043 = vmatprep.subr.mxu0 0.0
        %2044 = vmatpush1.msra.mxu0 0.0
        %2045 = vmatprep.subr.mxu0 0.0
        %2046 = vmatpush1.msra.mxu0 0.0
        %2047 = vmatprep.subr.mxu0 0.0
        %2048 = vmatpush1.msra.mxu0 0.0
        %2049 = vmatprep.subr.mxu0 0.0
        %2050 = vmatpush1.msra.mxu0 0.0
        %2051 = vmatprep.subr.mxu0 0.0
        %2052 = vmatpush1.msra.mxu0 0.0
        %2053 = vmatprep.subr.mxu0 0.0
        %2054 = vmatpush1.msra.mxu0 0.0
        %2055 = vmatprep.subr.mxu0 0.0
        %2056 = vmatpush1.msra.mxu0 0.0
        %2057 = vmatprep.subr.mxu0 0.0
        %2058 = vmatpush1.msra.mxu0 0.0
        %2059 = vmatprep.subr.mxu0 0.0
        %2060 = vmatpush1.msra.mxu0 0.0
        %2061 = vmatprep.subr.mxu0 0.0
        %2062 = vmatpush1.msra.mxu0 0.0
        %2063 = vmatprep.subr.mxu0 0.0
        %2064 = vmatpush1.msra.mxu0 0.0
        %2065 = vmatprep.subr.mxu0 0.0
        %2066 = vmatpush1.msra.mxu0 0.0
        %2067 = vmatprep.subr.mxu0 0.0
        %2068 = vmatpush1.msra.mxu0 0.0
        %2069 = vmatprep.subr.mxu0 0.0
        %2070 = vmatpush1.msra.mxu0 0.0
        %2071 = vmatprep.subr.mxu0 0.0
        %2072 = vmatpush1.msra.mxu0 0.0
        %2073 = vmatprep.subr.mxu0 0.0
        %2074 = vmatpush1.msra.mxu0 0.0
        %2075 = vmatprep.subr.mxu0 0.0
        %2076 = vmatpush1.msra.mxu0 0.0
        %2077 = vmatprep.subr.mxu0 0.0
        %2078 = vmatpush1.msra.mxu0 0.0
        %2079 = vmatprep.subr.mxu0 0.0
        %2080 = vmatpush1.msra.mxu0 0.0
        %2081 = vmatprep.subr.mxu0 0.0
        %2082 = vmatpush1.msra.mxu0 0.0
        %2083 = vmatprep.subr.mxu0 0.0
        %2084 = vmatpush1.msra.mxu0 0.0
        %2085 = vmatprep.mubr.f32.mxu0 0.0
        %2086 = vmatmul.mubr.f32.gmra.mrb[0].mxu0 %v1971
        %v2087 = vpop.f32.mrb[0].mxu0
        %v2088 = vadd.f32 0.0, %v2087
        %v2089 = vpop.f32.mrb[0].mxu0
        %2090 = vmatprep.mubr.f32.mxu0 0.0
        %2091 = vmatmul.mubr.f32.gmra.mrb[0].mxu0 %v1974
        %v2092 = vpop.f32.mrb[0].mxu0
        %v2093 = vadd.f32 0.0, %v2092
        %v2094 = vpop.f32.mrb[0].mxu0
        %2095 = vmatprep.mubr.f32.mxu0 0.0
        %2096 = vmatmul.mubr.f32.gmra.mrb[0].mxu0 %v1977
        %v2097 = vpop.f32.mrb[0].mxu0
        %v2098 = vadd.f32 0.0, %v2097
        %v2099 = vpop.f32.mrb[0].mxu0
        %2100 = vmatprep.mubr.f32.mxu0 0.0
        %2101 = vmatmul.mubr.f32.gmra.mrb[0].mxu0 %v1980
        %v2102 = vpop.f32.mrb[0].mxu0
        %v2103 = vadd.f32 0.0, %v2102
        %v2104 = vpop.f32.mrb[0].mxu0
        %2105 = vmatprep.mubr.f32.mxu0 0.0
        %2106 = vmatmul.mubr.f32.gmra.mrb[0].mxu0 %v1983
        %v2107 = vpop.f32.mrb[0].mxu0
        %v2108 = vadd.f32 0.0, %v2107
        %v2109 = vpop.f32.mrb[0].mxu0
        %2110 = vmatprep.mubr.f32.mxu0 0.0
        %2111 = vmatmul.mubr.f32.gmra.mrb[0].mxu0 %v1986
        %v2112 = vpop.f32.mrb[0].mxu0
        %v2113 = vadd.f32 0.0, %v2112
        %v2114 = vpop.f32.mrb[0].mxu0
        %2115 = vmatprep.mubr.f32.mxu0 0.0
        %2116 = vmatmul.mubr.f32.gmra.mrb[0].mxu0 %v1989
        %v2117 = vpop.f32.mrb[0].mxu0
        %v2118 = vadd.f32 0.0, %v2117
        %v2119 = vpop.f32.mrb[0].mxu0
        %2120 = vmatprep.mubr.f32.mxu0 0.0
        %2121 = vmatmul.mubr.f32.gmra.mrb[0].mxu0 %v1992
        %v2122 = vpop.f32.mrb[0].mxu0
        %v2123 = vadd.f32 0.0, %v2122
        %v2124 = vpop.f32.mrb[0].mxu0
        %2125 = vmatprep.mubr.f32.mxu0 0.0
        %2126 = vmatmul.mubr.f32.gmra.mrb[0].mxu0 %v1995
        %v2127 = vpop.f32.mrb[0].mxu0
        %v2128 = vadd.f32 0.0, %v2127
        %v2129 = vpop.f32.mrb[0].mxu0
        %2130 = vmatprep.mubr.f32.mxu0 0.0
        %2131 = vmatmul.mubr.f32.gmra.mrb[0].mxu0 %v1998
        %v2132 = vpop.f32.mrb[0].mxu0
        %v2133 = vadd.f32 0.0, %v2132
        %v2134 = vpop.f32.mrb[0].mxu0
        %2135 = vmatprep.mubr.f32.mxu0 0.0
        %2136 = vmatmul.mubr.f32.gmra.mrb[0].mxu0 %v2001
        %v2137 = vpop.f32.mrb[0].mxu0
        %v2138 = vadd.f32 0.0, %v2137
        %v2139 = vpop.f32.mrb[0].mxu0
        %2140 = vmatprep.mubr.f32.mxu0 0.0
        %2141 = vmatmul.mubr.f32.gmra.mrb[0].mxu0 %v2004
        %v2142 = vpop.f32.mrb[0].mxu0
        %v2143 = vadd.f32 0.0, %v2142
        %v2144 = vpop.f32.mrb[0].mxu0
        %2145 = vmatprep.mubr.f32.mxu0 0.0
        %2146 = vmatmul.mubr.f32.gmra.mrb[0].mxu0 %v2007
        %v2147 = vpop.f32.mrb[0].mxu0
        %v2148 = vadd.f32 0.0, %v2147
        %v2149 = vpop.f32.mrb[0].mxu0
        %2150 = vmatprep.mubr.f32.mxu0 0.0
        %2151 = vmatmul.mubr.f32.gmra.mrb[0].mxu0 %v2010
        %v2152 = vpop.f32.mrb[0].mxu0
        %v2153 = vadd.f32 0.0, %v2152
        %v2154 = vpop.f32.mrb[0].mxu0
        %2155 = vmatprep.mubr.f32.mxu0 0.0
        %2156 = vmatmul.mubr.f32.gmra.mrb[0].mxu0 %v2013
        %v2157 = vpop.f32.mrb[0].mxu0
        %v2158 = vadd.f32 0.0, %v2157
        %v2159 = vpop.f32.mrb[0].mxu0
        %2160 = vmatprep.mubr.f32.mxu0 0.0
        %2161 = vmatmul.mubr.f32.gmra.mrb[0].mxu0 %v2016
        %v2162 = vpop.f32.mrb[0].mxu0
        %v2163 = vadd.f32 0.0, %v2162
        %v2164 = vpop.f32.mrb[0].mxu0
        %2165 = vdwg.mxu0
        %s2166 = scalar_lea.vmem [#allocation2], 160
        %v2167 = vld [vmem:[%s2166] sm:$0xff]
        %v2168 = vld [vmem:[%s2166 + $0x8] sm:$0xff]
        %v2169 = vld [vmem:[%s2166 + $0x10] sm:$0xff]
        %v2170 = vld [vmem:[%s2166 + $0x18] sm:$0xff]
        %v2171 = vld [vmem:[%s2166 + $0x20] sm:$0xff]
        %v2172 = vld [vmem:[%s2166 + $0x28] sm:$0xff]
        %v2173 = vld [vmem:[%s2166 + $0x30] sm:$0xff]
        %v2174 = vld [vmem:[%s2166 + $0x38] sm:$0xff]
        %v2175 = vld [vmem:[%s2166 + $0x40] sm:$0xf]
        %v2176 = vld [vmem:[%s2166 + $0x48] sm:$0xf]
        %v2178 = vsel %vm691, %v2088, 0
        %v2181 = vsel %vm691, %v2093, 0
        %v2184 = vsel %vm691, %v2098, 0
        %v2187 = vsel %vm691, %v2103, 0
        %v2190 = vsel %vm691, %v2108, 0
        %v2193 = vsel %vm691, %v2113, 0
        %v2196 = vsel %vm691, %v2118, 0
        %v2199 = vsel %vm691, %v2123, 0
        %v2202 = vsel %vm691, %v2128, 0
        %v2205 = vsel %vm691, %v2133, 0
        %v2208 = vsel %vm691, %v2138, 0
        %v2211 = vsel %vm691, %v2143, 0
        %v2214 = vsel %vm691, %v2148, 0
        %v2217 = vsel %vm691, %v2153, 0
        %v2220 = vsel %vm691, %v2158, 0
        %v2223 = vsel %vm691, %v2163, 0
        %v2226 = vsel %vm395, %v2175, 0
        %v2229 = vsel %vm395, %v2176, 0
        %2231 = vmatprep.subr.mxu0 %v2168
        %2232 = vmatpush1.msra.mxu0 %v2167
        %2233 = vmatprep.subr.mxu0 %v2170
        %2234 = vmatpush1.msra.mxu0 %v2169
        %2235 = vmatprep.subr.mxu0 %v2172
        %2236 = vmatpush1.msra.mxu0 %v2171
        %2237 = vmatprep.subr.mxu0 %v2174
        %2238 = vmatpush1.msra.mxu0 %v2173
        %2239 = vmatprep.subr.mxu0 %v2229
        %2240 = vmatpush1.msra.mxu0 %v2226
        %2241 = vmatprep.subr.mxu0 0.0
        %2242 = vmatpush1.msra.mxu0 0.0
        %2243 = vmatprep.subr.mxu0 0.0
        %2244 = vmatpush1.msra.mxu0 0.0
        %2245 = vmatprep.subr.mxu0 0.0
        %2246 = vmatpush1.msra.mxu0 0.0
        %2247 = vmatprep.subr.mxu0 0.0
        %2248 = vmatpush1.msra.mxu0 0.0
        %2249 = vmatprep.subr.mxu0 0.0
        %2250 = vmatpush1.msra.mxu0 0.0
        %2251 = vmatprep.subr.mxu0 0.0
        %2252 = vmatpush1.msra.mxu0 0.0
        %2253 = vmatprep.subr.mxu0 0.0
        %2254 = vmatpush1.msra.mxu0 0.0
        %2255 = vmatprep.subr.mxu0 0.0
        %2256 = vmatpush1.msra.mxu0 0.0
        %2257 = vmatprep.subr.mxu0 0.0
        %2258 = vmatpush1.msra.mxu0 0.0
        %2259 = vmatprep.subr.mxu0 0.0
        %2260 = vmatpush1.msra.mxu0 0.0
        %2261 = vmatprep.subr.mxu0 0.0
        %2262 = vmatpush1.msra.mxu0 0.0
        %2263 = vmatprep.subr.mxu0 0.0
        %2264 = vmatpush1.msra.mxu0 0.0
        %2265 = vmatprep.subr.mxu0 0.0
        %2266 = vmatpush1.msra.mxu0 0.0
        %2267 = vmatprep.subr.mxu0 0.0
        %2268 = vmatpush1.msra.mxu0 0.0
        %2269 = vmatprep.subr.mxu0 0.0
        %2270 = vmatpush1.msra.mxu0 0.0
        %2271 = vmatprep.subr.mxu0 0.0
        %2272 = vmatpush1.msra.mxu0 0.0
        %2273 = vmatprep.subr.mxu0 0.0
        %2274 = vmatpush1.msra.mxu0 0.0
        %2275 = vmatprep.subr.mxu0 0.0
        %2276 = vmatpush1.msra.mxu0 0.0
        %2277 = vmatprep.subr.mxu0 0.0
        %2278 = vmatpush1.msra.mxu0 0.0
        %2279 = vmatprep.subr.mxu0 0.0
        %2280 = vmatpush1.msra.mxu0 0.0
        %2281 = vmatprep.subr.mxu0 0.0
        %2282 = vmatpush1.msra.mxu0 0.0
        %2283 = vmatprep.subr.mxu0 0.0
        %2284 = vmatpush1.msra.mxu0 0.0
        %2285 = vmatprep.subr.mxu0 0.0
        %2286 = vmatpush1.msra.mxu0 0.0
        %2287 = vmatprep.subr.mxu0 0.0
        %2288 = vmatpush1.msra.mxu0 0.0
        %2289 = vmatprep.subr.mxu0 0.0
        %2290 = vmatpush1.msra.mxu0 0.0
        %2291 = vmatprep.subr.mxu0 0.0
        %2292 = vmatpush1.msra.mxu0 0.0
        %2293 = vmatprep.subr.mxu0 0.0
        %2294 = vmatpush1.msra.mxu0 0.0
        %2295 = vmatprep.mubr.f32.mxu0 0.0
        %2296 = vmatmul.mubr.f32.gmra.mrb[0].mxu0 %v2178
        %v2297 = vpop.f32.mrb[0].mxu0
        %v2298 = vadd.f32 0.0, %v2297
        %v2299 = vpop.f32.mrb[0].mxu0
        %v2300 = vadd.f32 0.0, %v2299
        %2301 = vmatprep.mubr.f32.mxu0 0.0
        %2302 = vmatmul.mubr.f32.gmra.mrb[0].mxu0 %v2181
        %v2303 = vpop.f32.mrb[0].mxu0
        %v2304 = vadd.f32 0.0, %v2303
        %v2305 = vpop.f32.mrb[0].mxu0
        %v2306 = vadd.f32 0.0, %v2305
        %2307 = vmatprep.mubr.f32.mxu0 0.0
        %2308 = vmatmul.mubr.f32.gmra.mrb[0].mxu0 %v2184
        %v2309 = vpop.f32.mrb[0].mxu0
        %v2310 = vadd.f32 0.0, %v2309
        %v2311 = vpop.f32.mrb[0].mxu0
        %v2312 = vadd.f32 0.0, %v2311
        %2313 = vmatprep.mubr.f32.mxu0 0.0
        %2314 = vmatmul.mubr.f32.gmra.mrb[0].mxu0 %v2187
        %v2315 = vpop.f32.mrb[0].mxu0
        %v2316 = vadd.f32 0.0, %v2315
        %v2317 = vpop.f32.mrb[0].mxu0
        %v2318 = vadd.f32 0.0, %v2317
        %2319 = vmatprep.mubr.f32.mxu0 0.0
        %2320 = vmatmul.mubr.f32.gmra.mrb[0].mxu0 %v2190
        %v2321 = vpop.f32.mrb[0].mxu0
        %v2322 = vadd.f32 0.0, %v2321
        %v2323 = vpop.f32.mrb[0].mxu0
        %v2324 = vadd.f32 0.0, %v2323
        %2325 = vmatprep.mubr.f32.mxu0 0.0
        %2326 = vmatmul.mubr.f32.gmra.mrb[0].mxu0 %v2193
        %v2327 = vpop.f32.mrb[0].mxu0
        %v2328 = vadd.f32 0.0, %v2327
        %v2329 = vpop.f32.mrb[0].mxu0
        %v2330 = vadd.f32 0.0, %v2329
        %2331 = vmatprep.mubr.f32.mxu0 0.0
        %2332 = vmatmul.mubr.f32.gmra.mrb[0].mxu0 %v2196
        %v2333 = vpop.f32.mrb[0].mxu0
        %v2334 = vadd.f32 0.0, %v2333
        %v2335 = vpop.f32.mrb[0].mxu0
        %v2336 = vadd.f32 0.0, %v2335
        %2337 = vmatprep.mubr.f32.mxu0 0.0
        %2338 = vmatmul.mubr.f32.gmra.mrb[0].mxu0 %v2199
        %v2339 = vpop.f32.mrb[0].mxu0
        %v2340 = vadd.f32 0.0, %v2339
        %v2341 = vpop.f32.mrb[0].mxu0
        %v2342 = vadd.f32 0.0, %v2341
        %2343 = vmatprep.mubr.f32.mxu0 0.0
        %2344 = vmatmul.mubr.f32.gmra.mrb[0].mxu0 %v2202
        %v2345 = vpop.f32.mrb[0].mxu0
        %v2346 = vadd.f32 0.0, %v2345
        %v2347 = vpop.f32.mrb[0].mxu0
        %v2348 = vadd.f32 0.0, %v2347
        %2349 = vmatprep.mubr.f32.mxu0 0.0
        %2350 = vmatmul.mubr.f32.gmra.mrb[0].mxu0 %v2205
        %v2351 = vpop.f32.mrb[0].mxu0
        %v2352 = vadd.f32 0.0, %v2351
        %v2353 = vpop.f32.mrb[0].mxu0
        %v2354 = vadd.f32 0.0, %v2353
        %2355 = vmatprep.mubr.f32.mxu0 0.0
        %2356 = vmatmul.mubr.f32.gmra.mrb[0].mxu0 %v2208
        %v2357 = vpop.f32.mrb[0].mxu0
        %v2358 = vadd.f32 0.0, %v2357
        %v2359 = vpop.f32.mrb[0].mxu0
        %v2360 = vadd.f32 0.0, %v2359
        %2361 = vmatprep.mubr.f32.mxu0 0.0
        %2362 = vmatmul.mubr.f32.gmra.mrb[0].mxu0 %v2211
        %v2363 = vpop.f32.mrb[0].mxu0
        %v2364 = vadd.f32 0.0, %v2363
        %v2365 = vpop.f32.mrb[0].mxu0
        %v2366 = vadd.f32 0.0, %v2365
        %2367 = vmatprep.mubr.f32.mxu0 0.0
        %2368 = vmatmul.mubr.f32.gmra.mrb[0].mxu0 %v2214
        %v2369 = vpop.f32.mrb[0].mxu0
        %v2370 = vadd.f32 0.0, %v2369
        %v2371 = vpop.f32.mrb[0].mxu0
        %v2372 = vadd.f32 0.0, %v2371
        %2373 = vmatprep.mubr.f32.mxu0 0.0
        %2374 = vmatmul.mubr.f32.gmra.mrb[0].mxu0 %v2217
        %v2375 = vpop.f32.mrb[0].mxu0
        %v2376 = vadd.f32 0.0, %v2375
        %v2377 = vpop.f32.mrb[0].mxu0
        %v2378 = vadd.f32 0.0, %v2377
        %2379 = vmatprep.mubr.f32.mxu0 0.0
        %2380 = vmatmul.mubr.f32.gmra.mrb[0].mxu0 %v2220
        %v2381 = vpop.f32.mrb[0].mxu0
        %v2382 = vadd.f32 0.0, %v2381
        %v2383 = vpop.f32.mrb[0].mxu0
        %v2384 = vadd.f32 0.0, %v2383
        %2385 = vmatprep.mubr.f32.mxu0 0.0
        %2386 = vmatmul.mubr.f32.gmra.mrb[0].mxu0 %v2223
        %v2387 = vpop.f32.mrb[0].mxu0
        %v2388 = vadd.f32 0.0, %v2387
        %v2389 = vpop.f32.mrb[0].mxu0
        %v2390 = vadd.f32 0.0, %v2389
        %2391 = vdwg.mxu0
        %v2392 = vadd.f32 %v1740, %v2298
        %v2393 = vadd.f32 %v1741, %v2300
        %v2394 = vadd.f32 %v1742, %v2304
        %v2395 = vadd.f32 %v1743, %v2306
        %v2396 = vadd.f32 %v1744, %v2310
        %v2397 = vadd.f32 %v1745, %v2312
        %v2398 = vadd.f32 %v1746, %v2316
        %v2399 = vadd.f32 %v1747, %v2318
        %v2400 = vadd.f32 %v1748, %v2322
        %v2401 = vadd.f32 %v1749, %v2324
        %v2402 = vadd.f32 %v1750, %v2328
        %v2403 = vadd.f32 %v1751, %v2330
        %v2404 = vadd.f32 %v1752, %v2334
        %v2405 = vadd.f32 %v1753, %v2336
        %v2406 = vadd.f32 %v1754, %v2340
        %v2407 = vadd.f32 %v1755, %v2342
        %v2408 = vadd.f32 %v1756, %v2346
        %v2409 = vadd.f32 %v1757, %v2348
        %v2410 = vadd.f32 %v1758, %v2352
        %v2411 = vadd.f32 %v1759, %v2354
        %v2412 = vadd.f32 %v1760, %v2358
        %v2413 = vadd.f32 %v1761, %v2360
        %v2414 = vadd.f32 %v1762, %v2364
        %v2415 = vadd.f32 %v1763, %v2366
        %v2416 = vadd.f32 %v1764, %v2370
        %v2417 = vadd.f32 %v1765, %v2372
        %v2418 = vadd.f32 %v1766, %v2376
        %v2419 = vadd.f32 %v1767, %v2378
        %v2420 = vadd.f32 %v1768, %v2382
        %v2421 = vadd.f32 %v1769, %v2384
        %v2422 = vadd.f32 %v1770, %v2388
        %v2423 = vadd.f32 %v1771, %v2390
        %s2424 = scalar_lea.vmem %s1, 768
        %v2425 = vld [vmem:[%s2424] sm:$0xff]
        %v2426 = vld [vmem:[%s2424 + $0x8] sm:$0xff]
        %v2427 = vld [vmem:[%s2424 + $0x10] sm:$0xff]
        %v2428 = vld [vmem:[%s2424 + $0x18] sm:$0xff]
        %v2429 = vld [vmem:[%s2424 + $0x20] sm:$0xff]
        %v2430 = vld [vmem:[%s2424 + $0x28] sm:$0xff]
        %v2431 = vld [vmem:[%s2424 + $0x30] sm:$0xff]
        %v2432 = vld [vmem:[%s2424 + $0x38] sm:$0xff]
        %v2433 = vld [vmem:[%s2424 + $0x40] sm:$0xff]
        %v2434 = vld [vmem:[%s2424 + $0x48] sm:$0xff]
        %v2435 = vld [vmem:[%s2424 + $0x50] sm:$0xff]
        %v2436 = vld [vmem:[%s2424 + $0x58] sm:$0xff]
        %v2437 = vld [vmem:[%s2424 + $0x60] sm:$0xff]
        %v2438 = vld [vmem:[%s2424 + $0x68] sm:$0xff]
        %v2439 = vld [vmem:[%s2424 + $0x70] sm:$0xff]
        %v2440 = vld [vmem:[%s2424 + $0x78] sm:$0xff]
        %v2441 = vld [vmem:[%s2424 + $0x80] sm:$0xff]
        %v2442 = vld [vmem:[%s2424 + $0x88] sm:$0xff]
        %v2443 = vld [vmem:[%s2424 + $0x90] sm:$0xff]
        %v2444 = vld [vmem:[%s2424 + $0x98] sm:$0xff]
        %v2445 = vld [vmem:[%s2424 + $0xa0] sm:$0xff]
        %v2446 = vld [vmem:[%s2424 + $0xa8] sm:$0xff]
        %v2447 = vld [vmem:[%s2424 + $0xb0] sm:$0xff]
        %v2448 = vld [vmem:[%s2424 + $0xb8] sm:$0xff]
        %v2449 = vld [vmem:[%s2424 + $0xc0] sm:$0xff]
        %v2450 = vld [vmem:[%s2424 + $0xc8] sm:$0xff]
        %v2451 = vld [vmem:[%s2424 + $0xd0] sm:$0xff]
        %v2452 = vld [vmem:[%s2424 + $0xd8] sm:$0xff]
        %v2453 = vld [vmem:[%s2424 + $0xe0] sm:$0xff]
        %v2454 = vld [vmem:[%s2424 + $0xe8] sm:$0xff]
        %v2455 = vld [vmem:[%s2424 + $0xf0] sm:$0xff]
        %v2456 = vld [vmem:[%s2424 + $0xf8] sm:$0xff]
        %2457 = vmatprep.subr.mxu0 0.0
        %2458 = vmatpush1.msra.mxu0 %v2425
        %2459 = vmatprep.subr.mxu0 0.0
        %2460 = vmatpush1.msra.mxu0 %v2426
        %2461 = vmatprep.subr.mxu0 0.0
        %2462 = vmatpush1.msra.mxu0 %v2427
        %2463 = vmatprep.subr.mxu0 0.0
        %2464 = vmatpush1.msra.mxu0 %v2428
        %2465 = vmatprep.subr.mxu0 0.0
        %2466 = vmatpush1.msra.mxu0 %v2429
        %2467 = vmatprep.subr.mxu0 0.0
        %2468 = vmatpush1.msra.mxu0 %v2430
        %2469 = vmatprep.subr.mxu0 0.0
        %2470 = vmatpush1.msra.mxu0 %v2431
        %2471 = vmatprep.subr.mxu0 0.0
        %2472 = vmatpush1.msra.mxu0 %v2432
        %2473 = vmatprep.subr.mxu0 0.0
        %2474 = vmatpush1.msra.mxu0 %v2433
        %2475 = vmatprep.subr.mxu0 0.0
        %2476 = vmatpush1.msra.mxu0 %v2434
        %2477 = vmatprep.subr.mxu0 0.0
        %2478 = vmatpush1.msra.mxu0 %v2435
        %2479 = vmatprep.subr.mxu0 0.0
        %2480 = vmatpush1.msra.mxu0 %v2436
        %2481 = vmatprep.subr.mxu0 0.0
        %2482 = vmatpush1.msra.mxu0 %v2437
        %2483 = vmatprep.subr.mxu0 0.0
        %2484 = vmatpush1.msra.mxu0 %v2438
        %2485 = vmatprep.subr.mxu0 0.0
        %2486 = vmatpush1.msra.mxu0 %v2439
        %2487 = vmatprep.subr.mxu0 0.0
        %2488 = vmatpush1.msra.mxu0 %v2440
        %2489 = vmatprep.subr.mxu0 0.0
        %2490 = vmatpush1.msra.mxu0 %v2441
        %2491 = vmatprep.subr.mxu0 0.0
        %2492 = vmatpush1.msra.mxu0 %v2442
        %2493 = vmatprep.subr.mxu0 0.0
        %2494 = vmatpush1.msra.mxu0 %v2443
        %2495 = vmatprep.subr.mxu0 0.0
        %2496 = vmatpush1.msra.mxu0 %v2444
        %2497 = vmatprep.subr.mxu0 0.0
        %2498 = vmatpush1.msra.mxu0 %v2445
        %2499 = vmatprep.subr.mxu0 0.0
        %2500 = vmatpush1.msra.mxu0 %v2446
        %2501 = vmatprep.subr.mxu0 0.0
        %2502 = vmatpush1.msra.mxu0 %v2447
        %2503 = vmatprep.subr.mxu0 0.0
        %2504 = vmatpush1.msra.mxu0 %v2448
        %2505 = vmatprep.subr.mxu0 0.0
        %2506 = vmatpush1.msra.mxu0 %v2449
        %2507 = vmatprep.subr.mxu0 0.0
        %2508 = vmatpush1.msra.mxu0 %v2450
        %2509 = vmatprep.subr.mxu0 0.0
        %2510 = vmatpush1.msra.mxu0 %v2451
        %2511 = vmatprep.subr.mxu0 0.0
        %2512 = vmatpush1.msra.mxu0 %v2452
        %2513 = vmatprep.subr.mxu0 0.0
        %2514 = vmatpush1.msra.mxu0 %v2453
        %2515 = vmatprep.subr.mxu0 0.0
        %2516 = vmatpush1.msra.mxu0 %v2454
        %2517 = vmatprep.subr.mxu0 0.0
        %2518 = vmatpush1.msra.mxu0 %v2455
        %2519 = vmatprep.subr.mxu0 0.0
        %2520 = vmatpush1.msra.mxu0 %v2456
        %2521 = vmatprep.mubr.f32.mxu0 %v318
        %2522 = vmatmul.mubr.f32.gmra.mrb[0].mxu0 %v267
        %v2523 = vpop.f32.mrb[0].mxu0
        %v2524 = vadd.f32 0.0, %v2523
        %v2525 = vpop.f32.mrb[0].mxu0
        %2526 = vdwg.mxu0
        %s2527 = scalar_lea.vmem %s3, 12
        %v2528 = vld [vmem:[%s2527] sm:$0xf]
        %v2530 = vsel %vm391, %v2528, 0
        %v2533 = vsel %vm395, %v2524, 0
        %2535 = vmatprep.subr.mxu0 0.0
        %2536 = vmatpush1.msra.mxu0 %v2533
        %2537 = vmatprep.subr.mxu0 0.0
        %2538 = vmatpush1.msra.mxu0 0.0
        %2539 = vmatprep.subr.mxu0 0.0
        %2540 = vmatpush1.msra.mxu0 0.0
        %2541 = vmatprep.subr.mxu0 0.0
        %2542 = vmatpush1.msra.mxu0 0.0
        %2543 = vmatprep.subr.mxu0 0.0
        %2544 = vmatpush1.msra.mxu0 0.0
        %2545 = vmatprep.subr.mxu0 0.0
        %2546 = vmatpush1.msra.mxu0 0.0
        %2547 = vmatprep.subr.mxu0 0.0
        %2548 = vmatpush1.msra.mxu0 0.0
        %2549 = vmatprep.subr.mxu0 0.0
        %2550 = vmatpush1.msra.mxu0 0.0
        %2551 = vmatprep.subr.mxu0 0.0
        %2552 = vmatpush1.msra.mxu0 0.0
        %2553 = vmatprep.subr.mxu0 0.0
        %2554 = vmatpush1.msra.mxu0 0.0
        %2555 = vmatprep.subr.mxu0 0.0
        %2556 = vmatpush1.msra.mxu0 0.0
        %2557 = vmatprep.subr.mxu0 0.0
        %2558 = vmatpush1.msra.mxu0 0.0
        %2559 = vmatprep.subr.mxu0 0.0
        %2560 = vmatpush1.msra.mxu0 0.0
        %2561 = vmatprep.subr.mxu0 0.0
        %2562 = vmatpush1.msra.mxu0 0.0
        %2563 = vmatprep.subr.mxu0 0.0
        %2564 = vmatpush1.msra.mxu0 0.0
        %2565 = vmatprep.subr.mxu0 0.0
        %2566 = vmatpush1.msra.mxu0 0.0
        %2567 = vmatprep.subr.mxu0 0.0
        %2568 = vmatpush1.msra.mxu0 0.0
        %2569 = vmatprep.subr.mxu0 0.0
        %2570 = vmatpush1.msra.mxu0 0.0
        %2571 = vmatprep.subr.mxu0 0.0
        %2572 = vmatpush1.msra.mxu0 0.0
        %2573 = vmatprep.subr.mxu0 0.0
        %2574 = vmatpush1.msra.mxu0 0.0
        %2575 = vmatprep.subr.mxu0 0.0
        %2576 = vmatpush1.msra.mxu0 0.0
        %2577 = vmatprep.subr.mxu0 0.0
        %2578 = vmatpush1.msra.mxu0 0.0
        %2579 = vmatprep.subr.mxu0 0.0
        %2580 = vmatpush1.msra.mxu0 0.0
        %2581 = vmatprep.subr.mxu0 0.0
        %2582 = vmatpush1.msra.mxu0 0.0
        %2583 = vmatprep.subr.mxu0 0.0
        %2584 = vmatpush1.msra.mxu0 0.0
        %2585 = vmatprep.subr.mxu0 0.0
        %2586 = vmatpush1.msra.mxu0 0.0
        %2587 = vmatprep.subr.mxu0 0.0
        %2588 = vmatpush1.msra.mxu0 0.0
        %2589 = vmatprep.subr.mxu0 0.0
        %2590 = vmatpush1.msra.mxu0 0.0
        %2591 = vmatprep.subr.mxu0 0.0
        %2592 = vmatpush1.msra.mxu0 0.0
        %2593 = vmatprep.subr.mxu0 0.0
        %2594 = vmatpush1.msra.mxu0 0.0
        %2595 = vmatprep.subr.mxu0 0.0
        %2596 = vmatpush1.msra.mxu0 0.0
        %2597 = vmatprep.subr.mxu0 0.0
        %2598 = vmatpush1.msra.mxu0 0.0
        %2599 = vmatprep.mubr.f32.mxu0 0.0
        %2600 = vmatmul.mubr.f32.gmra.mrb[0].mxu0 %v2530
        %v2601 = vpop.f32.mrb[0].mxu0
        %v2602 = vadd.f32 0.0, %v2601
        %v2603 = vpop.f32.mrb[0].mxu0
        %2604 = vdwg.mxu0
        %s2605 = scalar_lea.vmem %s4, 384
        %v2606 = vld [vmem:[%s2605] sm:$0xff]
        %v2607 = vld [vmem:[%s2605 + $0x8] sm:$0xff]
        %v2608 = vld [vmem:[%s2605 + $0x10] sm:$0xff]
        %v2609 = vld [vmem:[%s2605 + $0x18] sm:$0xff]
        %v2610 = vld [vmem:[%s2605 + $0x20] sm:$0xff]
        %v2611 = vld [vmem:[%s2605 + $0x28] sm:$0xff]
        %v2612 = vld [vmem:[%s2605 + $0x30] sm:$0xff]
        %v2613 = vld [vmem:[%s2605 + $0x38] sm:$0xff]
        %v2614 = vld [vmem:[%s2605 + $0x40] sm:$0xff]
        %v2615 = vld [vmem:[%s2605 + $0x48] sm:$0xff]
        %v2616 = vld [vmem:[%s2605 + $0x50] sm:$0xff]
        %v2617 = vld [vmem:[%s2605 + $0x58] sm:$0xff]
        %v2618 = vld [vmem:[%s2605 + $0x60] sm:$0xff]
        %v2619 = vld [vmem:[%s2605 + $0x68] sm:$0xff]
        %v2620 = vld [vmem:[%s2605 + $0x70] sm:$0xff]
        %v2621 = vld [vmem:[%s2605 + $0x78] sm:$0xff]
        %v2623 = vsel %vm391, %v2606, 0
        %v2626 = vsel %vm391, %v2607, 0
        %v2629 = vsel %vm391, %v2608, 0
        %v2632 = vsel %vm391, %v2609, 0
        %v2635 = vsel %vm391, %v2610, 0
        %v2638 = vsel %vm391, %v2611, 0
        %v2641 = vsel %vm391, %v2612, 0
        %v2644 = vsel %vm391, %v2613, 0
        %v2647 = vsel %vm391, %v2614, 0
        %v2650 = vsel %vm391, %v2615, 0
        %v2653 = vsel %vm391, %v2616, 0
        %v2656 = vsel %vm391, %v2617, 0
        %v2659 = vsel %vm391, %v2618, 0
        %v2662 = vsel %vm391, %v2619, 0
        %v2665 = vsel %vm391, %v2620, 0
        %v2668 = vsel %vm391, %v2621, 0
        %v2671 = vsel %vm395, %v2602, 0
        %2673 = vmatprep.subr.mxu0 0.0
        %2674 = vmatpush1.msra.mxu0 %v2671
        %2675 = vmatprep.subr.mxu0 0.0
        %2676 = vmatpush1.msra.mxu0 0.0
        %2677 = vmatprep.subr.mxu0 0.0
        %2678 = vmatpush1.msra.mxu0 0.0
        %2679 = vmatprep.subr.mxu0 0.0
        %2680 = vmatpush1.msra.mxu0 0.0
        %2681 = vmatprep.subr.mxu0 0.0
        %2682 = vmatpush1.msra.mxu0 0.0
        %2683 = vmatprep.subr.mxu0 0.0
        %2684 = vmatpush1.msra.mxu0 0.0
        %2685 = vmatprep.subr.mxu0 0.0
        %2686 = vmatpush1.msra.mxu0 0.0
        %2687 = vmatprep.subr.mxu0 0.0
        %2688 = vmatpush1.msra.mxu0 0.0
        %2689 = vmatprep.subr.mxu0 0.0
        %2690 = vmatpush1.msra.mxu0 0.0
        %2691 = vmatprep.subr.mxu0 0.0
        %2692 = vmatpush1.msra.mxu0 0.0
        %2693 = vmatprep.subr.mxu0 0.0
        %2694 = vmatpush1.msra.mxu0 0.0
        %2695 = vmatprep.subr.mxu0 0.0
        %2696 = vmatpush1.msra.mxu0 0.0
        %2697 = vmatprep.subr.mxu0 0.0
        %2698 = vmatpush1.msra.mxu0 0.0
        %2699 = vmatprep.subr.mxu0 0.0
        %2700 = vmatpush1.msra.mxu0 0.0
        %2701 = vmatprep.subr.mxu0 0.0
        %2702 = vmatpush1.msra.mxu0 0.0
        %2703 = vmatprep.subr.mxu0 0.0
        %2704 = vmatpush1.msra.mxu0 0.0
        %2705 = vmatprep.subr.mxu0 0.0
        %2706 = vmatpush1.msra.mxu0 0.0
        %2707 = vmatprep.subr.mxu0 0.0
        %2708 = vmatpush1.msra.mxu0 0.0
        %2709 = vmatprep.subr.mxu0 0.0
        %2710 = vmatpush1.msra.mxu0 0.0
        %2711 = vmatprep.subr.mxu0 0.0
        %2712 = vmatpush1.msra.mxu0 0.0
        %2713 = vmatprep.subr.mxu0 0.0
        %2714 = vmatpush1.msra.mxu0 0.0
        %2715 = vmatprep.subr.mxu0 0.0
        %2716 = vmatpush1.msra.mxu0 0.0
        %2717 = vmatprep.subr.mxu0 0.0
        %2718 = vmatpush1.msra.mxu0 0.0
        %2719 = vmatprep.subr.mxu0 0.0
        %2720 = vmatpush1.msra.mxu0 0.0
        %2721 = vmatprep.subr.mxu0 0.0
        %2722 = vmatpush1.msra.mxu0 0.0
        %2723 = vmatprep.subr.mxu0 0.0
        %2724 = vmatpush1.msra.mxu0 0.0
        %2725 = vmatprep.subr.mxu0 0.0
        %2726 = vmatpush1.msra.mxu0 0.0
        %2727 = vmatprep.subr.mxu0 0.0
        %2728 = vmatpush1.msra.mxu0 0.0
        %2729 = vmatprep.subr.mxu0 0.0
        %2730 = vmatpush1.msra.mxu0 0.0
        %2731 = vmatprep.subr.mxu0 0.0
        %2732 = vmatpush1.msra.mxu0 0.0
        %2733 = vmatprep.subr.mxu0 0.0
        %2734 = vmatpush1.msra.mxu0 0.0
        %2735 = vmatprep.subr.mxu0 0.0
        %2736 = vmatpush1.msra.mxu0 0.0
        %2737 = vmatprep.mubr.f32.mxu0 0.0
        %2738 = vmatmul.mubr.f32.gmra.mrb[0].mxu0 %v2623
        %v2739 = vpop.f32.mrb[0].mxu0
        %v2740 = vadd.f32 0.0, %v2739
        %v2741 = vpop.f32.mrb[0].mxu0
        %2742 = vmatprep.mubr.f32.mxu0 0.0
        %2743 = vmatmul.mubr.f32.gmra.mrb[0].mxu0 %v2626
        %v2744 = vpop.f32.mrb[0].mxu0
        %v2745 = vadd.f32 0.0, %v2744
        %v2746 = vpop.f32.mrb[0].mxu0
        %2747 = vmatprep.mubr.f32.mxu0 0.0
        %2748 = vmatmul.mubr.f32.gmra.mrb[0].mxu0 %v2629
        %v2749 = vpop.f32.mrb[0].mxu0
        %v2750 = vadd.f32 0.0, %v2749
        %v2751 = vpop.f32.mrb[0].mxu0
        %2752 = vmatprep.mubr.f32.mxu0 0.0
        %2753 = vmatmul.mubr.f32.gmra.mrb[0].mxu0 %v2632
        %v2754 = vpop.f32.mrb[0].mxu0
        %v2755 = vadd.f32 0.0, %v2754
        %v2756 = vpop.f32.mrb[0].mxu0
        %2757 = vmatprep.mubr.f32.mxu0 0.0
        %2758 = vmatmul.mubr.f32.gmra.mrb[0].mxu0 %v2635
        %v2759 = vpop.f32.mrb[0].mxu0
        %v2760 = vadd.f32 0.0, %v2759
        %v2761 = vpop.f32.mrb[0].mxu0
        %2762 = vmatprep.mubr.f32.mxu0 0.0
        %2763 = vmatmul.mubr.f32.gmra.mrb[0].mxu0 %v2638
        %v2764 = vpop.f32.mrb[0].mxu0
        %v2765 = vadd.f32 0.0, %v2764
        %v2766 = vpop.f32.mrb[0].mxu0
        %2767 = vmatprep.mubr.f32.mxu0 0.0
        %2768 = vmatmul.mubr.f32.gmra.mrb[0].mxu0 %v2641
        %v2769 = vpop.f32.mrb[0].mxu0
        %v2770 = vadd.f32 0.0, %v2769
        %v2771 = vpop.f32.mrb[0].mxu0
        %2772 = vmatprep.mubr.f32.mxu0 0.0
        %2773 = vmatmul.mubr.f32.gmra.mrb[0].mxu0 %v2644
        %v2774 = vpop.f32.mrb[0].mxu0
        %v2775 = vadd.f32 0.0, %v2774
        %v2776 = vpop.f32.mrb[0].mxu0
        %2777 = vmatprep.mubr.f32.mxu0 0.0
        %2778 = vmatmul.mubr.f32.gmra.mrb[0].mxu0 %v2647
        %v2779 = vpop.f32.mrb[0].mxu0
        %v2780 = vadd.f32 0.0, %v2779
        %v2781 = vpop.f32.mrb[0].mxu0
        %2782 = vmatprep.mubr.f32.mxu0 0.0
        %2783 = vmatmul.mubr.f32.gmra.mrb[0].mxu0 %v2650
        %v2784 = vpop.f32.mrb[0].mxu0
        %v2785 = vadd.f32 0.0, %v2784
        %v2786 = vpop.f32.mrb[0].mxu0
        %2787 = vmatprep.mubr.f32.mxu0 0.0
        %2788 = vmatmul.mubr.f32.gmra.mrb[0].mxu0 %v2653
        %v2789 = vpop.f32.mrb[0].mxu0
        %v2790 = vadd.f32 0.0, %v2789
        %v2791 = vpop.f32.mrb[0].mxu0
        %2792 = vmatprep.mubr.f32.mxu0 0.0
        %2793 = vmatmul.mubr.f32.gmra.mrb[0].mxu0 %v2656
        %v2794 = vpop.f32.mrb[0].mxu0
        %v2795 = vadd.f32 0.0, %v2794
        %v2796 = vpop.f32.mrb[0].mxu0
        %2797 = vmatprep.mubr.f32.mxu0 0.0
        %2798 = vmatmul.mubr.f32.gmra.mrb[0].mxu0 %v2659
        %v2799 = vpop.f32.mrb[0].mxu0
        %v2800 = vadd.f32 0.0, %v2799
        %v2801 = vpop.f32.mrb[0].mxu0
        %2802 = vmatprep.mubr.f32.mxu0 0.0
        %2803 = vmatmul.mubr.f32.gmra.mrb[0].mxu0 %v2662
        %v2804 = vpop.f32.mrb[0].mxu0
        %v2805 = vadd.f32 0.0, %v2804
        %v2806 = vpop.f32.mrb[0].mxu0
        %2807 = vmatprep.mubr.f32.mxu0 0.0
        %2808 = vmatmul.mubr.f32.gmra.mrb[0].mxu0 %v2665
        %v2809 = vpop.f32.mrb[0].mxu0
        %v2810 = vadd.f32 0.0, %v2809
        %v2811 = vpop.f32.mrb[0].mxu0
        %2812 = vmatprep.mubr.f32.mxu0 0.0
        %2813 = vmatmul.mubr.f32.gmra.mrb[0].mxu0 %v2668
        %v2814 = vpop.f32.mrb[0].mxu0
        %v2815 = vadd.f32 0.0, %v2814
        %v2816 = vpop.f32.mrb[0].mxu0
        %2817 = vdwg.mxu0
        %s2818 = scalar_lea.vmem [#allocation2], 240
        %v2819 = vld [vmem:[%s2818] sm:$0xff]
        %v2820 = vld [vmem:[%s2818 + $0x8] sm:$0xff]
        %v2821 = vld [vmem:[%s2818 + $0x10] sm:$0xff]
        %v2822 = vld [vmem:[%s2818 + $0x18] sm:$0xff]
        %v2823 = vld [vmem:[%s2818 + $0x20] sm:$0xff]
        %v2824 = vld [vmem:[%s2818 + $0x28] sm:$0xff]
        %v2825 = vld [vmem:[%s2818 + $0x30] sm:$0xff]
        %v2826 = vld [vmem:[%s2818 + $0x38] sm:$0xff]
        %v2827 = vld [vmem:[%s2818 + $0x40] sm:$0xf]
        %v2828 = vld [vmem:[%s2818 + $0x48] sm:$0xf]
        %v2830 = vsel %vm691, %v2740, 0
        %v2833 = vsel %vm691, %v2745, 0
        %v2836 = vsel %vm691, %v2750, 0
        %v2839 = vsel %vm691, %v2755, 0
        %v2842 = vsel %vm691, %v2760, 0
        %v2845 = vsel %vm691, %v2765, 0
        %v2848 = vsel %vm691, %v2770, 0
        %v2851 = vsel %vm691, %v2775, 0
        %v2854 = vsel %vm691, %v2780, 0
        %v2857 = vsel %vm691, %v2785, 0
        %v2860 = vsel %vm691, %v2790, 0
        %v2863 = vsel %vm691, %v2795, 0
        %v2866 = vsel %vm691, %v2800, 0
        %v2869 = vsel %vm691, %v2805, 0
        %v2872 = vsel %vm691, %v2810, 0
        %v2875 = vsel %vm691, %v2815, 0
        %v2878 = vsel %vm395, %v2827, 0
        %v2881 = vsel %vm395, %v2828, 0
        %2883 = vmatprep.subr.mxu0 %v2820
        %2884 = vmatpush1.msra.mxu0 %v2819
        %2885 = vmatprep.subr.mxu0 %v2822
        %2886 = vmatpush1.msra.mxu0 %v2821
        %2887 = vmatprep.subr.mxu0 %v2824
        %2888 = vmatpush1.msra.mxu0 %v2823
        %2889 = vmatprep.subr.mxu0 %v2826
        %2890 = vmatpush1.msra.mxu0 %v2825
        %2891 = vmatprep.subr.mxu0 %v2881
        %2892 = vmatpush1.msra.mxu0 %v2878
        %2893 = vmatprep.subr.mxu0 0.0
        %2894 = vmatpush1.msra.mxu0 0.0
        %2895 = vmatprep.subr.mxu0 0.0
        %2896 = vmatpush1.msra.mxu0 0.0
        %2897 = vmatprep.subr.mxu0 0.0
        %2898 = vmatpush1.msra.mxu0 0.0
        %2899 = vmatprep.subr.mxu0 0.0
        %2900 = vmatpush1.msra.mxu0 0.0
        %2901 = vmatprep.subr.mxu0 0.0
        %2902 = vmatpush1.msra.mxu0 0.0
        %2903 = vmatprep.subr.mxu0 0.0
        %2904 = vmatpush1.msra.mxu0 0.0
        %2905 = vmatprep.subr.mxu0 0.0
        %2906 = vmatpush1.msra.mxu0 0.0
        %2907 = vmatprep.subr.mxu0 0.0
        %2908 = vmatpush1.msra.mxu0 0.0
        %2909 = vmatprep.subr.mxu0 0.0
        %2910 = vmatpush1.msra.mxu0 0.0
        %2911 = vmatprep.subr.mxu0 0.0
        %2912 = vmatpush1.msra.mxu0 0.0
        %2913 = vmatprep.subr.mxu0 0.0
        %2914 = vmatpush1.msra.mxu0 0.0
        %2915 = vmatprep.subr.mxu0 0.0
        %2916 = vmatpush1.msra.mxu0 0.0
        %2917 = vmatprep.subr.mxu0 0.0
        %2918 = vmatpush1.msra.mxu0 0.0
        %2919 = vmatprep.subr.mxu0 0.0
        %2920 = vmatpush1.msra.mxu0 0.0
        %2921 = vmatprep.subr.mxu0 0.0
        %2922 = vmatpush1.msra.mxu0 0.0
        %2923 = vmatprep.subr.mxu0 0.0
        %2924 = vmatpush1.msra.mxu0 0.0
        %2925 = vmatprep.subr.mxu0 0.0
        %2926 = vmatpush1.msra.mxu0 0.0
        %2927 = vmatprep.subr.mxu0 0.0
        %2928 = vmatpush1.msra.mxu0 0.0
        %2929 = vmatprep.subr.mxu0 0.0
        %2930 = vmatpush1.msra.mxu0 0.0
        %2931 = vmatprep.subr.mxu0 0.0
        %2932 = vmatpush1.msra.mxu0 0.0
        %2933 = vmatprep.subr.mxu0 0.0
        %2934 = vmatpush1.msra.mxu0 0.0
        %2935 = vmatprep.subr.mxu0 0.0
        %2936 = vmatpush1.msra.mxu0 0.0
        %2937 = vmatprep.subr.mxu0 0.0
        %2938 = vmatpush1.msra.mxu0 0.0
        %2939 = vmatprep.subr.mxu0 0.0
        %2940 = vmatpush1.msra.mxu0 0.0
        %2941 = vmatprep.subr.mxu0 0.0
        %2942 = vmatpush1.msra.mxu0 0.0
        %2943 = vmatprep.subr.mxu0 0.0
        %2944 = vmatpush1.msra.mxu0 0.0
        %2945 = vmatprep.subr.mxu0 0.0
        %2946 = vmatpush1.msra.mxu0 0.0
        %2947 = vmatprep.mubr.f32.mxu0 0.0
        %2948 = vmatmul.mubr.f32.gmra.mrb[0].mxu0 %v2830
        %v2949 = vpop.f32.mrb[0].mxu0
        %v2950 = vadd.f32 0.0, %v2949
        %v2951 = vpop.f32.mrb[0].mxu0
        %v2952 = vadd.f32 0.0, %v2951
        %2953 = vmatprep.mubr.f32.mxu0 0.0
        %2954 = vmatmul.mubr.f32.gmra.mrb[0].mxu0 %v2833
        %v2955 = vpop.f32.mrb[0].mxu0
        %v2956 = vadd.f32 0.0, %v2955
        %v2957 = vpop.f32.mrb[0].mxu0
        %v2958 = vadd.f32 0.0, %v2957
        %2959 = vmatprep.mubr.f32.mxu0 0.0
        %2960 = vmatmul.mubr.f32.gmra.mrb[0].mxu0 %v2836
        %v2961 = vpop.f32.mrb[0].mxu0
        %v2962 = vadd.f32 0.0, %v2961
        %v2963 = vpop.f32.mrb[0].mxu0
        %v2964 = vadd.f32 0.0, %v2963
        %2965 = vmatprep.mubr.f32.mxu0 0.0
        %2966 = vmatmul.mubr.f32.gmra.mrb[0].mxu0 %v2839
        %v2967 = vpop.f32.mrb[0].mxu0
        %v2968 = vadd.f32 0.0, %v2967
        %v2969 = vpop.f32.mrb[0].mxu0
        %v2970 = vadd.f32 0.0, %v2969
        %2971 = vmatprep.mubr.f32.mxu0 0.0
        %2972 = vmatmul.mubr.f32.gmra.mrb[0].mxu0 %v2842
        %v2973 = vpop.f32.mrb[0].mxu0
        %v2974 = vadd.f32 0.0, %v2973
        %v2975 = vpop.f32.mrb[0].mxu0
        %v2976 = vadd.f32 0.0, %v2975
        %2977 = vmatprep.mubr.f32.mxu0 0.0
        %2978 = vmatmul.mubr.f32.gmra.mrb[0].mxu0 %v2845
        %v2979 = vpop.f32.mrb[0].mxu0
        %v2980 = vadd.f32 0.0, %v2979
        %v2981 = vpop.f32.mrb[0].mxu0
        %v2982 = vadd.f32 0.0, %v2981
        %2983 = vmatprep.mubr.f32.mxu0 0.0
        %2984 = vmatmul.mubr.f32.gmra.mrb[0].mxu0 %v2848
        %v2985 = vpop.f32.mrb[0].mxu0
        %v2986 = vadd.f32 0.0, %v2985
        %v2987 = vpop.f32.mrb[0].mxu0
        %v2988 = vadd.f32 0.0, %v2987
        %2989 = vmatprep.mubr.f32.mxu0 0.0
        %2990 = vmatmul.mubr.f32.gmra.mrb[0].mxu0 %v2851
        %v2991 = vpop.f32.mrb[0].mxu0
        %v2992 = vadd.f32 0.0, %v2991
        %v2993 = vpop.f32.mrb[0].mxu0
        %v2994 = vadd.f32 0.0, %v2993
        %2995 = vmatprep.mubr.f32.mxu0 0.0
        %2996 = vmatmul.mubr.f32.gmra.mrb[0].mxu0 %v2854
        %v2997 = vpop.f32.mrb[0].mxu0
        %v2998 = vadd.f32 0.0, %v2997
        %v2999 = vpop.f32.mrb[0].mxu0
        %v3000 = vadd.f32 0.0, %v2999
        %3001 = vmatprep.mubr.f32.mxu0 0.0
        %3002 = vmatmul.mubr.f32.gmra.mrb[0].mxu0 %v2857
        %v3003 = vpop.f32.mrb[0].mxu0
        %v3004 = vadd.f32 0.0, %v3003
        %v3005 = vpop.f32.mrb[0].mxu0
        %v3006 = vadd.f32 0.0, %v3005
        %3007 = vmatprep.mubr.f32.mxu0 0.0
        %3008 = vmatmul.mubr.f32.gmra.mrb[0].mxu0 %v2860
        %v3009 = vpop.f32.mrb[0].mxu0
        %v3010 = vadd.f32 0.0, %v3009
        %v3011 = vpop.f32.mrb[0].mxu0
        %v3012 = vadd.f32 0.0, %v3011
        %3013 = vmatprep.mubr.f32.mxu0 0.0
        %3014 = vmatmul.mubr.f32.gmra.mrb[0].mxu0 %v2863
        %v3015 = vpop.f32.mrb[0].mxu0
        %v3016 = vadd.f32 0.0, %v3015
        %v3017 = vpop.f32.mrb[0].mxu0
        %v3018 = vadd.f32 0.0, %v3017
        %3019 = vmatprep.mubr.f32.mxu0 0.0
        %3020 = vmatmul.mubr.f32.gmra.mrb[0].mxu0 %v2866
        %v3021 = vpop.f32.mrb[0].mxu0
        %v3022 = vadd.f32 0.0, %v3021
        %v3023 = vpop.f32.mrb[0].mxu0
        %v3024 = vadd.f32 0.0, %v3023
        %3025 = vmatprep.mubr.f32.mxu0 0.0
        %3026 = vmatmul.mubr.f32.gmra.mrb[0].mxu0 %v2869
        %v3027 = vpop.f32.mrb[0].mxu0
        %v3028 = vadd.f32 0.0, %v3027
        %v3029 = vpop.f32.mrb[0].mxu0
        %v3030 = vadd.f32 0.0, %v3029
        %3031 = vmatprep.mubr.f32.mxu0 0.0
        %3032 = vmatmul.mubr.f32.gmra.mrb[0].mxu0 %v2872
        %v3033 = vpop.f32.mrb[0].mxu0
        %v3034 = vadd.f32 0.0, %v3033
        %v3035 = vpop.f32.mrb[0].mxu0
        %v3036 = vadd.f32 0.0, %v3035
        %3037 = vmatprep.mubr.f32.mxu0 0.0
        %3038 = vmatmul.mubr.f32.gmra.mrb[0].mxu0 %v2875
        %v3039 = vpop.f32.mrb[0].mxu0
        %v3040 = vadd.f32 0.0, %v3039
        %v3041 = vpop.f32.mrb[0].mxu0
        %v3042 = vadd.f32 0.0, %v3041
        %3043 = vdwg.mxu0
        %v3044 = vadd.f32 %v2392, %v2950
        %v3045 = vadd.f32 %v2393, %v2952
        %v3046 = vadd.f32 %v2394, %v2956
        %v3047 = vadd.f32 %v2395, %v2958
        %v3048 = vadd.f32 %v2396, %v2962
        %v3049 = vadd.f32 %v2397, %v2964
        %v3050 = vadd.f32 %v2398, %v2968
        %v3051 = vadd.f32 %v2399, %v2970
        %v3052 = vadd.f32 %v2400, %v2974
        %v3053 = vadd.f32 %v2401, %v2976
        %v3054 = vadd.f32 %v2402, %v2980
        %v3055 = vadd.f32 %v2403, %v2982
        %v3056 = vadd.f32 %v2404, %v2986
        %v3057 = vadd.f32 %v2405, %v2988
        %v3058 = vadd.f32 %v2406, %v2992
        %v3059 = vadd.f32 %v2407, %v2994
        %v3060 = vadd.f32 %v2408, %v2998
        %v3061 = vadd.f32 %v2409, %v3000
        %v3062 = vadd.f32 %v2410, %v3004
        %v3063 = vadd.f32 %v2411, %v3006
        %v3064 = vadd.f32 %v2412, %v3010
        %v3065 = vadd.f32 %v2413, %v3012
        %v3066 = vadd.f32 %v2414, %v3016
        %v3067 = vadd.f32 %v2415, %v3018
        %v3068 = vadd.f32 %v2416, %v3022
        %v3069 = vadd.f32 %v2417, %v3024
        %v3070 = vadd.f32 %v2418, %v3028
        %v3071 = vadd.f32 %v2419, %v3030
        %v3072 = vadd.f32 %v2420, %v3034
        %v3073 = vadd.f32 %v2421, %v3036
        %v3074 = vadd.f32 %v2422, %v3040
        %v3075 = vadd.f32 %v2423, %v3042
        %v3076 = vld [vmem:[%s5] sm:$0xff]
        %v3077 = vld [vmem:[%s5 + $0x8] sm:$0xff]
        %v3078 = vld [vmem:[%s5 + $0x10] sm:$0xff]
        %v3079 = vld [vmem:[%s5 + $0x18] sm:$0xff]
        %v3080 = vld [vmem:[%s5 + $0x20] sm:$0xff]
        %v3081 = vld [vmem:[%s5 + $0x28] sm:$0xff]
        %v3082 = vld [vmem:[%s5 + $0x30] sm:$0xff]
        %v3083 = vld [vmem:[%s5 + $0x38] sm:$0xff]
        %v3084 = vld [vmem:[%s5 + $0x40] sm:$0xff]
        %v3085 = vld [vmem:[%s5 + $0x48] sm:$0xff]
        %v3086 = vld [vmem:[%s5 + $0x50] sm:$0xff]
        %v3087 = vld [vmem:[%s5 + $0x58] sm:$0xff]
        %v3088 = vld [vmem:[%s5 + $0x60] sm:$0xff]
        %v3089 = vld [vmem:[%s5 + $0x68] sm:$0xff]
        %v3090 = vld [vmem:[%s5 + $0x70] sm:$0xff]
        %v3091 = vld [vmem:[%s5 + $0x78] sm:$0xff]
        %3093 = vset.pattern.permute.xlu0 0
        %3094 = vperm.xlu0 %3093, %v3076
        %v3095 = vpop.permute.xlu0 %3094
        %3098 = vset.pattern.permute.xlu0 0
        %3099 = vperm.xlu0 %3098, %v3077
        %v3100 = vpop.permute.xlu0 %3099
        %3103 = vset.pattern.permute.xlu0 0
        %3104 = vperm.xlu0 %3103, %v3078
        %v3105 = vpop.permute.xlu0 %3104
        %3108 = vset.pattern.permute.xlu0 0
        %3109 = vperm.xlu0 %3108, %v3079
        %v3110 = vpop.permute.xlu0 %3109
        %3113 = vset.pattern.permute.xlu0 0
        %3114 = vperm.xlu0 %3113, %v3080
        %v3115 = vpop.permute.xlu0 %3114
        %3118 = vset.pattern.permute.xlu0 0
        %3119 = vperm.xlu0 %3118, %v3081
        %v3120 = vpop.permute.xlu0 %3119
        %3123 = vset.pattern.permute.xlu0 0
        %3124 = vperm.xlu0 %3123, %v3082
        %v3125 = vpop.permute.xlu0 %3124
        %3128 = vset.pattern.permute.xlu0 0
        %3129 = vperm.xlu0 %3128, %v3083
        %v3130 = vpop.permute.xlu0 %3129
        %3133 = vset.pattern.permute.xlu0 0
        %3134 = vperm.xlu0 %3133, %v3084
        %v3135 = vpop.permute.xlu0 %3134
        %3138 = vset.pattern.permute.xlu0 0
        %3139 = vperm.xlu0 %3138, %v3085
        %v3140 = vpop.permute.xlu0 %3139
        %3143 = vset.pattern.permute.xlu0 0
        %3144 = vperm.xlu0 %3143, %v3086
        %v3145 = vpop.permute.xlu0 %3144
        %3148 = vset.pattern.permute.xlu0 0
        %3149 = vperm.xlu0 %3148, %v3087
        %v3150 = vpop.permute.xlu0 %3149
        %3153 = vset.pattern.permute.xlu0 0
        %3154 = vperm.xlu0 %3153, %v3088
        %v3155 = vpop.permute.xlu0 %3154
        %3158 = vset.pattern.permute.xlu0 0
        %3159 = vperm.xlu0 %3158, %v3089
        %v3160 = vpop.permute.xlu0 %3159
        %3163 = vset.pattern.permute.xlu0 0
        %3164 = vperm.xlu0 %3163, %v3090
        %v3165 = vpop.permute.xlu0 %3164
        %3168 = vset.pattern.permute.xlu0 0
        %3169 = vperm.xlu0 %3168, %v3091
        %v3170 = vpop.permute.xlu0 %3169
        %v3172 = vadd.f32 %v3044, %v3095
        %v3173 = vadd.f32 %v3045, %v3095
        %v3174 = vadd.f32 %v3046, %v3100
        %v3175 = vadd.f32 %v3047, %v3100
        %v3176 = vadd.f32 %v3048, %v3105
        %v3177 = vadd.f32 %v3049, %v3105
        %v3178 = vadd.f32 %v3050, %v3110
        %v3179 = vadd.f32 %v3051, %v3110
        %v3180 = vadd.f32 %v3052, %v3115
        %v3181 = vadd.f32 %v3053, %v3115
        %v3182 = vadd.f32 %v3054, %v3120
        %v3183 = vadd.f32 %v3055, %v3120
        %v3184 = vadd.f32 %v3056, %v3125
        %v3185 = vadd.f32 %v3057, %v3125
        %v3186 = vadd.f32 %v3058, %v3130
        %v3187 = vadd.f32 %v3059, %v3130
        %v3188 = vadd.f32 %v3060, %v3135
        %v3189 = vadd.f32 %v3061, %v3135
        %v3190 = vadd.f32 %v3062, %v3140
        %v3191 = vadd.f32 %v3063, %v3140
        %v3192 = vadd.f32 %v3064, %v3145
        %v3193 = vadd.f32 %v3065, %v3145
        %v3194 = vadd.f32 %v3066, %v3150
        %v3195 = vadd.f32 %v3067, %v3150
        %v3196 = vadd.f32 %v3068, %v3155
        %v3197 = vadd.f32 %v3069, %v3155
        %v3198 = vadd.f32 %v3070, %v3160
        %v3199 = vadd.f32 %v3071, %v3160
        %v3200 = vadd.f32 %v3072, %v3165
        %v3201 = vadd.f32 %v3073, %v3165
        %v3202 = vadd.f32 %v3074, %v3170
        %v3203 = vadd.f32 %v3075, %v3170
        %v3204 = vmax.f32 %v3172, 0.0
        %v3205 = vmax.f32 %v3173, 0.0
        %v3206 = vmax.f32 %v3174, 0.0
        %v3207 = vmax.f32 %v3175, 0.0
        %v3208 = vmax.f32 %v3176, 0.0
        %v3209 = vmax.f32 %v3177, 0.0
        %v3210 = vmax.f32 %v3178, 0.0
        %v3211 = vmax.f32 %v3179, 0.0
        %v3212 = vmax.f32 %v3180, 0.0
        %v3213 = vmax.f32 %v3181, 0.0
        %v3214 = vmax.f32 %v3182, 0.0
        %v3215 = vmax.f32 %v3183, 0.0
        %v3216 = vmax.f32 %v3184, 0.0
        %v3217 = vmax.f32 %v3185, 0.0
        %v3218 = vmax.f32 %v3186, 0.0
        %v3219 = vmax.f32 %v3187, 0.0
        %v3220 = vmax.f32 %v3188, 0.0
        %v3221 = vmax.f32 %v3189, 0.0
        %v3222 = vmax.f32 %v3190, 0.0
        %v3223 = vmax.f32 %v3191, 0.0
        %v3224 = vmax.f32 %v3192, 0.0
        %v3225 = vmax.f32 %v3193, 0.0
        %v3226 = vmax.f32 %v3194, 0.0
        %v3227 = vmax.f32 %v3195, 0.0
        %v3228 = vmax.f32 %v3196, 0.0
        %v3229 = vmax.f32 %v3197, 0.0
        %v3230 = vmax.f32 %v3198, 0.0
        %v3231 = vmax.f32 %v3199, 0.0
        %v3232 = vmax.f32 %v3200, 0.0
        %v3233 = vmax.f32 %v3201, 0.0
        %v3234 = vmax.f32 %v3202, 0.0
        %v3235 = vmax.f32 %v3203, 0.0
        %3236 = vst [vmem:[%s266] sm:$0xff] %v3204
        %3237 = vst [vmem:[%s266 + $0x8] sm:$0xff] %v3205
        %3238 = vst [vmem:[%s266 + $0x10] sm:$0xff] %v3206
        %3239 = vst [vmem:[%s266 + $0x18] sm:$0xff] %v3207
        %3240 = vst [vmem:[%s266 + $0x20] sm:$0xff] %v3208
        %3241 = vst [vmem:[%s266 + $0x28] sm:$0xff] %v3209
        %3242 = vst [vmem:[%s266 + $0x30] sm:$0xff] %v3210
        %3243 = vst [vmem:[%s266 + $0x38] sm:$0xff] %v3211
        %3244 = vst [vmem:[%s266 + $0x40] sm:$0xff] %v3212
        %3245 = vst [vmem:[%s266 + $0x48] sm:$0xff] %v3213
        %3246 = vst [vmem:[%s266 + $0x50] sm:$0xff] %v3214
        %3247 = vst [vmem:[%s266 + $0x58] sm:$0xff] %v3215
        %3248 = vst [vmem:[%s266 + $0x60] sm:$0xff] %v3216
        %3249 = vst [vmem:[%s266 + $0x68] sm:$0xff] %v3217
        %3250 = vst [vmem:[%s266 + $0x70] sm:$0xff] %v3218
        %3251 = vst [vmem:[%s266 + $0x78] sm:$0xff] %v3219
        %3252 = vst [vmem:[%s266 + $0x80] sm:$0xff] %v3220
        %3253 = vst [vmem:[%s266 + $0x88] sm:$0xff] %v3221
        %3254 = vst [vmem:[%s266 + $0x90] sm:$0xff] %v3222
        %3255 = vst [vmem:[%s266 + $0x98] sm:$0xff] %v3223
        %3256 = vst [vmem:[%s266 + $0xa0] sm:$0xff] %v3224
        %3257 = vst [vmem:[%s266 + $0xa8] sm:$0xff] %v3225
        %3258 = vst [vmem:[%s266 + $0xb0] sm:$0xff] %v3226
        %3259 = vst [vmem:[%s266 + $0xb8] sm:$0xff] %v3227
        %3260 = vst [vmem:[%s266 + $0xc0] sm:$0xff] %v3228
        %3261 = vst [vmem:[%s266 + $0xc8] sm:$0xff] %v3229
        %3262 = vst [vmem:[%s266 + $0xd0] sm:$0xff] %v3230
        %3263 = vst [vmem:[%s266 + $0xd8] sm:$0xff] %v3231
        %3264 = vst [vmem:[%s266 + $0xe0] sm:$0xff] %v3232
        %3265 = vst [vmem:[%s266 + $0xe8] sm:$0xff] %v3233
        %3266 = vst [vmem:[%s266 + $0xf0] sm:$0xff] %v3234
        %3267 = vst [vmem:[%s266 + $0xf8] sm:$0xff] %v3235
        %p3268 = scmp.lt.s32.totalorder %s18, 1
        %s3269 = scalar_select %p3268, %s18, 1
        %s3270 = smul.addr %s3269, 32
        %s3271 = smul.addr %s3270, 8
        %s3272 = scalar_lea.vmem %s6, %s3271
        // Predicated region
        $region49: #{psp_forward.1} parent=43 // pred_check
          %p3273 = pneg %p167
        $region50: #{psp_forward.1} parent=43 // pred_check_branch
          %3275 = sbr.rel (%p3273) target = $region52
        $region51: #{psp_forward.1} parent=43 // pred_region
          _
        $region52: #{psp_forward.1} parent=43 // pred_fallthru
          _
      $region44: #{psp_forward.1} parent=5 // pred_fallthru
        _
      %p3276 = scmp.le.s32.totalorder 2, %s13
      // Predicated region
      $region53: #{psp_forward.1} parent=5 // pred_check
        %p3277 = pneg %p3276
      $region54: #{psp_forward.1} parent=5 // pred_check_branch
        %3279 = sbr.rel (%p3277) target = $region56
      $region55: #{psp_forward.1} parent=5 // pred_region
        %s3280 = ssub.s32 %s13, 2
        // Predicated region
        $region57: #{psp_forward.1} parent=55 // pred_check
          %p3281 = pneg %p173
        $region58: #{psp_forward.1} parent=55 // pred_check_branch
          %3283 = sbr.rel (%p3281) target = $region60
        $region59: #{psp_forward.1} parent=55 // pred_region
          %p3284 = scmp.lt.s32.totalorder %s19, 1
          %s3285 = scalar_select %p3284, %s19, 1
          %s3286 = smul.addr %s3285, 32
          %s3287 = smul.addr %s3286, 8
          %s3288 = scalar_lea.vmem %s6, %s3287
        $region60: #{psp_forward.1} parent=55 // pred_fallthru
          _
      $region56: #{psp_forward.1} parent=5 // pred_fallthru
        _
    $region6: #{psp_forward.1} parent=1 // loop_footer
      %s17 = sadd.s32 1, %s13
    $region7: #{psp_forward.1} parent=1 // loop_footer_branch
      %12 = sbr.rel target = $region3
    $region8: #{psp_forward.1} parent=1 // loop_exit
      _
    %3289 = vsyncpa [#allocation3], 1
    %s3290 = scalar_lea.sflag [#allocation3], 1
    %3291 = vsyncpa %s3290, 1

</llo_original>
